<compile_context>
chip_gen: v7x
topology: tpu7x:2x2x1
jax: 0.10.0
libtpu: 0.0.40
codegen_flags: <defaults>
</compile_context>

<pallas_src>
import functools

import jax
import jax.numpy as jnp
from jax.experimental import pallas as pl
from jax.experimental.pallas import tpu as pltpu

HIDDEN_ASYM = 25   # hidden_size of get_asym_conv for resize in (512, 1024)
HIDDEN_ENC = 8     # hidden width of the backbone stand-in


# ----------------------------------------------------------------------------
# Small helpers
# ----------------------------------------------------------------------------
def _pick_tile(total, cap):
    """Largest divisor of `total` that is <= cap (falls back to total)."""
    if total <= cap:
        return total
    for t in range(cap, 0, -1):
        if total % t == 0:
            return t
    return total


@functools.lru_cache(maxsize=None)
def _vmem_limit_bytes():
    # Generation-aware scoped-VMEM budget: 3/4 of physical, capped at 96 MiB.
    cap = 64 * 1024 * 1024  # conservative fallback (= smallest, v7x, VMEM)
    try:
        cap = int(pltpu.get_tpu_info().vmem_capacity_bytes)
    except Exception:
        pass
    return int(min(cap * 3 // 4, 96 * 1024 * 1024))


def _cparams(n_axes):
    return pltpu.CompilerParams(
        dimension_semantics=("parallel",) * n_axes,
        vmem_limit_bytes=_vmem_limit_bytes(),
    )


# ----------------------------------------------------------------------------
# Fused backbone stand-in: conv3x3 -> ReLU -> conv3x3 -> sigmoid
# (single pallas_call, hidden activation kept in VMEM scratch, MXU dots)
# ----------------------------------------------------------------------------
def _make_backbone_kernel(Cin, hidden, T, W):
    Te, We = T + 2, W + 2   # extended (haloed) region for the hidden activation

    def kernel(x_ref, w1_ref, b1_ref, w2_ref, b2_ref, o_ref, h1_ref):
        # x_ref : (1, 1, Cin, T+4, W+4)  padded input row-tile (2-row halo/side)
        # w1_ref: (hidden, 9*Cin)  lane-dense im2col weights, tap order (ci,dh,dw)
        # b1_ref: (hidden, 1)
        # w2_ref: (1, 9*hidden)    tap order (c, dh, dw)
        # b2_ref: (1, 1)
        # o_ref : (1, 1, 1, T*W)   lane-dense flattened output tile
        # h1_ref: VMEM scratch (hidden, T+2, W+2) -- fused intermediate, no HBM
        planes = []
        for ci in range(Cin):
            for dh in range(3):
                for dw in range(3):
                    planes.append(x_ref[0, 0, ci, dh:dh + Te, dw:dw + We])
        slab1 = jnp.stack(planes, axis=0).reshape(Cin * 9, Te * We)
        h1 = jnp.dot(w1_ref[...], slab1, preferred_element_type=jnp.float32)
        h1 = jnp.maximum(h1 + b1_ref[...], 0.0)
        h1_ref[...] = h1.reshape(hidden, Te, We)

        planes2 = []
        for c in range(hidden):
            for dh in range(3):
                for dw in range(3):
                    planes2.append(h1_ref[c, dh:dh + T, dw:dw + W])
        slab2 = jnp.stack(planes2, axis=0).reshape(hidden * 9, T * W)
        y = jnp.dot(w2_ref[...], slab2, preferred_element_type=jnp.float32)
        y = y + b2_ref[...]
        # sigmoid via EUP exp + approx reciprocal (keeps VALU slot free)
        o_ref[0, 0] = pl.reciprocal(1.0 + jnp.exp(-y), approx=True)

    return kernel


def backbone_forward(x, w1, b1, w2, b2, *, row_tile=64):
    """x: (N, Cin, H, W) f32 -> (N, 1, H, W) f32 in sigmoid space."""
    N, Cin, H, W = x.shape
    hidden = w1.shape[0]
    T = _pick_tile(H, row_tile)
    n_tiles = H // T

    xp = jnp.pad(x, ((0, 0), (0, 0), (2, 2), (2, 2)))
    # Overlapping row tiles (T + 4 rows, 2-row halo on each side) are built once
    # in HBM so the BlockSpecs stay non-overlapping and fully pipelined.
    tiles = jnp.stack(
        [xp[:, :, t * T: t * T + T + 4, :] for t in range(n_tiles)], axis=1
    )  # (N, n_tiles, Cin, T+4, W+4)

    kernel = _make_backbone_kernel(Cin, hidden, T, W)
    out = pl.pallas_call(
        kernel,
        out_shape=jax.ShapeDtypeStruct((N, n_tiles, 1, T * W), jnp.float32),
        grid=(N, n_tiles),
        in_specs=[
            pl.BlockSpec((1, 1, Cin, T + 4, W + 4), lambda n, t: (n, t, 0, 0, 0)),
            pl.BlockSpec((hidden, 9 * Cin), lambda n, t: (0, 0)),
            pl.BlockSpec((hidden, 1), lambda n, t: (0, 0)),
            pl.BlockSpec((1, 9 * hidden), lambda n, t: (0, 0)),
            pl.BlockSpec((1, 1), lambda n, t: (0, 0)),
        ],
        out_specs=pl.BlockSpec((1, 1, 1, T * W), lambda n, t: (n, t, 0, 0)),
        scratch_shapes=[pltpu.VMEM((hidden, T + 2, W + 2), jnp.float32)],
        compiler_params=_cparams(2),
    )(tiles, w1, b1, w2, b2)
    return out.reshape(N, 1, H, W)


# ----------------------------------------------------------------------------
# Fused TTA epilogue: y_lin = logit(clamp(1/8 * sum_k y_k))
# ----------------------------------------------------------------------------
def _reduce_logit_kernel(y_ref, o_ref):
    # y_ref: (1, 8, CHUNK) ; o_ref: (1, 1, CHUNK)
    s = 0.125 * jnp.sum(y_ref[0], axis=0, keepdims=True)
    p = jnp.clip(s, 1e-6, 1.0 - 1e-6)
    o_ref[0] = jnp.log(p) - jnp.log(1.0 - p)   # two EUP logs, no divide


def tta_reduce_logit(y_stack, *, chunk_cap=64 * 1024):
    """y_stack: (B, 8, HW) -> (B, 1, HW)."""
    B, n_tta, HW = y_stack.shape
    chunk = _pick_tile(HW, chunk_cap)
    if chunk != HW and chunk % 128 != 0:
        chunk = HW
    n_chunks = HW // chunk
    return pl.pallas_call(
        _reduce_logit_kernel,
        out_shape=jax.ShapeDtypeStruct((B, 1, HW), jnp.float32),
        grid=(B, n_chunks),
        in_specs=[pl.BlockSpec((1, n_tta, chunk), lambda b, c: (b, 0, c))],
        out_specs=pl.BlockSpec((1, 1, chunk), lambda b, c: (b, 0, c)),
        compiler_params=_cparams(2),
    )(y_stack)


# ----------------------------------------------------------------------------
# asym_conv for resize == 1024 (exactly as specified):
#   Conv2d(1, 25, kernel=5, stride=2, padding=2) -> ReLU -> Conv2d(25, 1, 1)
# Stride-2 conv expressed over a 2x2 phase decomposition + im2col + MXU dots.
# ----------------------------------------------------------------------------
def _make_asym_kernel(To, Wo):
    def kernel(ph_ref, w1_ref, b1_ref, w2_ref, b2_ref, o_ref):
        # ph_ref: (1, 1, 4, To+2, Wh)  phases of the zero-padded input
        # w1_ref: (25, 25) ; b1_ref: (25, 1) ; w2_ref: (1, 25) ; b2_ref: (1, 1)
        # o_ref : (1, 1, 1, To*Wo)
        planes = []
        for dh in range(5):
            for dw in range(5):
                a, b = dh % 2, dw % 2
                oh, ow = dh // 2, dw // 2
                planes.append(ph_ref[0, 0, 2 * a + b, oh:oh + To, ow:ow + Wo])
        slab = jnp.stack(planes, axis=0).reshape(25, To * Wo)
        h = jnp.dot(w1_ref[...], slab, preferred_element_type=jnp.float32)
        h = jnp.maximum(h + b1_ref[...], 0.0)
        y = jnp.dot(w2_ref[...], h, preferred_element_type=jnp.float32)
        o_ref[0, 0] = y + b2_ref[...]

    return kernel


def asym_conv_1024(y_lin, w1, b1, w2, b2, *, row_tile=128):
    """y_lin: (B,1,H,W). w1: (25,5,5); b1: (25,); w2: (25,); b2: (1,)."""
    B, _, H, W = y_lin.shape
    Ho = (H + 4 - 5) // 2 + 1
    Wo = (W + 4 - 5) // 2 + 1
    yp = jnp.pad(y_lin[:, 0], ((0, 0), (2, 2), (2, 2)))          # (B, H+4, W+4)
    Wh = (W + 4) // 2
    phases = jnp.stack(
        [yp[:, a::2, b::2] for a in range(2) for b in range(2)], axis=1
    )  # (B, 4, Hh, Wh) with phase(a,b)[m,n] = yp[2m+a, 2n+b]

    To = _pick_tile(Ho, row_tile)
    n_ot = Ho // To
    ptiles = jnp.stack(
        [phases[:, :, t * To: t * To + To + 2, :] for t in range(n_ot)], axis=1
    )  # (B, n_ot, 4, To+2, Wh)

    kernel = _make_asym_kernel(To, Wo)
    out = pl.pallas_call(
        kernel,
        out_shape=jax.ShapeDtypeStruct((B, n_ot, 1, To * Wo), jnp.float32),
        grid=(B, n_ot),
        in_specs=[
            pl.BlockSpec((1, 1, 4, To + 2, Wh), lambda b, t: (b, t, 0, 0, 0)),
            pl.BlockSpec((HIDDEN_ASYM, 25), lambda b, t: (0, 0)),
            pl.BlockSpec((HIDDEN_ASYM, 1), lambda b, t: (0, 0)),
            pl.BlockSpec((1, HIDDEN_ASYM), lambda b, t: (0, 0)),
            pl.BlockSpec((1, 1), lambda b, t: (0, 0)),
        ],
        out_specs=pl.BlockSpec((1, 1, 1, To * Wo), lambda b, t: (b, t, 0, 0)),
        compiler_params=_cparams(2),
    )(
        ptiles,
        w1.reshape(HIDDEN_ASYM, 25),       # tap order (dh, dw) matches kernel
        b1.reshape(HIDDEN_ASYM, 1),
        w2.reshape(1, HIDDEN_ASYM),
        b2.reshape(1, 1),
    )
    return out.reshape(B, 1, Ho, Wo)


# ----------------------------------------------------------------------------
# Model forward: batched TTA -> fused backbone -> fused average/logit -> asym
# ----------------------------------------------------------------------------
def create_tta(x, k):
    # matches torch: rot90(x, k, [2,3]); concat with flip(dim=3)
    xr = jnp.rot90(x, k, axes=(2, 3))
    return jnp.concatenate([xr, jnp.flip(xr, axis=3)], axis=0).astype(jnp.float32)


def forward(x, params, *, backbone_row_tile=64, asym_row_tile=128,
            reduce_chunk_cap=64 * 1024):
    B = x.shape[0]
    H, W = x.shape[2], x.shape[3]

    # 1) Build the full 8-way TTA batch once (4 rotations x [identity, hflip]).
    x_all = jnp.concatenate([create_tta(x, k) for k in range(4)], axis=0)  # (8B,3,H,W)

    # 2) Fused backbone (conv->ReLU->conv->sigmoid) in a single pallas_call.
    y_all = backbone_forward(
        x_all, params["w_enc"], params["b_enc"], params["w_seg"], params["b_seg"],
        row_tile=backbone_row_tile)                                        # (8B,1,H,W)

    # The torch model returns the (post-sigmoid) y_sym of the LAST TTA iteration.
    y_sym = y_all[6 * B:]

    # 3) Undo the TTA transforms (pure data movement -> XLA glue) and stack.
    undone = []
    for k in range(4):
        blk = y_all[2 * k * B: 2 * (k + 1) * B]
        undone.append(jnp.rot90(blk[:B], -k, axes=(2, 3)))
        undone.append(jnp.rot90(jnp.flip(blk[B:], axis=3), -k, axes=(2, 3)))
    y_stack = jnp.stack(undone, axis=1).reshape(B, 8, H * W)

    # 4) Fused 1/8-average + clamp + logit.
    y_lin = tta_reduce_logit(y_stack, chunk_cap=reduce_chunk_cap).reshape(B, 1, H, W)

    # 5) Asym head (exact Conv2d(1,25,5,s2,p2) -> ReLU -> Conv2d(25,1,1)).
    y_pred = asym_conv_1024(
        y_lin, params["w_asym1"], params["b_asym1"],
        params["w_asym2"], params["b_asym2"], row_tile=asym_row_tile)
    return y_sym, y_pred


def init_params(key, hidden=HIDDEN_ENC):
    ks = jax.random.split(key, 8)
    return {
        # Backbone stand-in, lane-dense im2col layouts:
        #   w: (out_ch, in_ch*3*3) with tap order (ci, dh, dw); b: (out_ch, 1)
        "w_enc": 0.2 * jax.random.normal(ks[0], (hidden, 3 * 9), jnp.float32),
        "b_enc": 0.05 * jax.random.normal(ks[1], (hidden, 1), jnp.float32),
        "w_seg": 0.2 * jax.random.normal(ks[2], (1, hidden * 9), jnp.float32),
        "b_seg": 0.05 * jax.random.normal(ks[3], (1, 1), jnp.float32),
        # Asym head (PyTorch Conv2d-like shapes, reshaped lane-dense in wrapper)
        "w_asym1": 0.2 * jax.random.normal(ks[4], (HIDDEN_ASYM, 5, 5), jnp.float32),
        "b_asym1": 0.05 * jax.random.normal(ks[5], (HIDDEN_ASYM,), jnp.float32),
        "w_asym2": 0.2 * jax.random.normal(ks[6], (HIDDEN_ASYM,), jnp.float32),
        "b_asym2": 0.05 * jax.random.normal(ks[7], (1,), jnp.float32),
    }


if __name__ == "__main__":
    key = jax.random.PRNGKey(0)
    kx, kp = jax.random.split(key)
    B, H, W = 2, 16, 16
    x = jax.random.normal(kx, (B, 3, H, W), jnp.float32)
    params = init_params(kp)

    # Small tiles/chunks so the multi-tile (halo) paths are exercised at 16x16.
    y_sym, y_pred = forward(x, params, backbone_row_tile=8, asym_row_tile=4,
                            reduce_chunk_cap=128)
    jax.block_until_ready((y_sym, y_pred))

    assert y_sym.shape == (2 * B, 1, H, W), y_sym.shape
    Ho = (H + 4 - 5) // 2 + 1
    assert y_pred.shape == (B, 1, Ho, Ho), y_pred.shape
    assert bool(jnp.all(jnp.isfinite(y_sym))) and bool(jnp.all(jnp.isfinite(y_pred)))
    print("KERNEL_OK")
</pallas_src>

<mosaic_0001>
module attributes {stable_mosaic.version = 11 : i64} {
  func.func @kernel(%arg0: i32, %arg1: i32, %arg2: memref<1x1x3x12x20xf32, #tpu.memory_space<vmem>>, %arg3: memref<8x27xf32, #tpu.memory_space<vmem>>, %arg4: memref<8x1xf32, #tpu.memory_space<vmem>>, %arg5: memref<1x72xf32, #tpu.memory_space<vmem>>, %arg6: memref<1x1xf32, #tpu.memory_space<vmem>>, %arg7: memref<1x1x1x128xf32, #tpu.memory_space<vmem>>, %arg8: memref<8x10x18xf32, #tpu.memory_space<vmem>>) attributes {dimension_semantics = [#tpu.dimension_semantics<parallel>, #tpu.dimension_semantics<parallel>], iteration_bounds = array<i64: 16, 2>, scalar_prefetch = 0 : i64, scratch_operands = 1 : i64, tpu.core_type = #tpu.core_type<tc>, window_params = [{transform_indices = @transform_0, window_bounds = array<i64: 1, 1, 3, 12, 20>}, {pipeline_mode = #tpu.pipeline_mode<synchronous>, transform_indices = @transform_1, window_bounds = array<i64: 8, 27>}, {pipeline_mode = #tpu.pipeline_mode<synchronous>, transform_indices = @transform_2, window_bounds = array<i64: 8, 1>}, {pipeline_mode = #tpu.pipeline_mode<synchronous>, transform_indices = @transform_3, window_bounds = array<i64: 1, 72>}, {pipeline_mode = #tpu.pipeline_mode<synchronous>, transform_indices = @transform_4, window_bounds = array<i64: 1, 1>}, {transform_indices = @transform_5, window_bounds = array<i64: 1, 1, 1, 128>}]} {
    %c0 = arith.constant 0 : index
    %c0_0 = arith.constant 0 : index
    %c0_1 = arith.constant 0 : index
    %c0_2 = arith.constant 0 : index
    %c0_3 = arith.constant 0 : index
    %0 = vector.load %arg2[%c0, %c0_0, %c0_1, %c0_2, %c0_3] : memref<1x1x3x12x20xf32, #tpu.memory_space<vmem>>, vector<1x1x1x10x18xf32>
    %1 = vector.shape_cast %0 : vector<1x1x1x10x18xf32> to vector<10x18xf32>
    %c0_4 = arith.constant 0 : index
    %c0_5 = arith.constant 0 : index
    %c0_6 = arith.constant 0 : index
    %c0_7 = arith.constant 0 : index
    %c1 = arith.constant 1 : index
    %2 = vector.load %arg2[%c0_4, %c0_5, %c0_6, %c0_7, %c1] : memref<1x1x3x12x20xf32, #tpu.memory_space<vmem>>, vector<1x1x1x10x18xf32>
    %3 = vector.shape_cast %2 : vector<1x1x1x10x18xf32> to vector<10x18xf32>
    %c0_8 = arith.constant 0 : index
    %c0_9 = arith.constant 0 : index
    %c0_10 = arith.constant 0 : index
    %c0_11 = arith.constant 0 : index
    %c2 = arith.constant 2 : index
    %4 = vector.load %arg2[%c0_8, %c0_9, %c0_10, %c0_11, %c2] : memref<1x1x3x12x20xf32, #tpu.memory_space<vmem>>, vector<1x1x1x10x18xf32>
    %5 = vector.shape_cast %4 : vector<1x1x1x10x18xf32> to vector<10x18xf32>
    %c0_12 = arith.constant 0 : index
    %c0_13 = arith.constant 0 : index
    %c0_14 = arith.constant 0 : index
    %c1_15 = arith.constant 1 : index
    %c0_16 = arith.constant 0 : index
    %6 = vector.load %arg2[%c0_12, %c0_13, %c0_14, %c1_15, %c0_16] : memref<1x1x3x12x20xf32, #tpu.memory_space<vmem>>, vector<1x1x1x10x18xf32>
    %7 = vector.shape_cast %6 : vector<1x1x1x10x18xf32> to vector<10x18xf32>
    %c0_17 = arith.constant 0 : index
    %c0_18 = arith.constant 0 : index
    %c0_19 = arith.constant 0 : index
    %c1_20 = arith.constant 1 : index
    %c1_21 = arith.constant 1 : index
    %8 = vector.load %arg2[%c0_17, %c0_18, %c0_19, %c1_20, %c1_21] : memref<1x1x3x12x20xf32, #tpu.memory_space<vmem>>, vector<1x1x1x10x18xf32>
    %9 = vector.shape_cast %8 : vector<1x1x1x10x18xf32> to vector<10x18xf32>
    %c0_22 = arith.constant 0 : index
    %c0_23 = arith.constant 0 : index
    %c0_24 = arith.constant 0 : index
    %c1_25 = arith.constant 1 : index
    %c2_26 = arith.constant 2 : index
    %10 = vector.load %arg2[%c0_22, %c0_23, %c0_24, %c1_25, %c2_26] : memref<1x1x3x12x20xf32, #tpu.memory_space<vmem>>, vector<1x1x1x10x18xf32>
    %11 = vector.shape_cast %10 : vector<1x1x1x10x18xf32> to vector<10x18xf32>
    %c0_27 = arith.constant 0 : index
    %c0_28 = arith.constant 0 : index
    %c0_29 = arith.constant 0 : index
    %c2_30 = arith.constant 2 : index
    %c0_31 = arith.constant 0 : index
    %12 = vector.load %arg2[%c0_27, %c0_28, %c0_29, %c2_30, %c0_31] : memref<1x1x3x12x20xf32, #tpu.memory_space<vmem>>, vector<1x1x1x10x18xf32>
    %13 = vector.shape_cast %12 : vector<1x1x1x10x18xf32> to vector<10x18xf32>
    %c0_32 = arith.constant 0 : index
    %c0_33 = arith.constant 0 : index
    %c0_34 = arith.constant 0 : index
    %c2_35 = arith.constant 2 : index
    %c1_36 = arith.constant 1 : index
    %14 = vector.load %arg2[%c0_32, %c0_33, %c0_34, %c2_35, %c1_36] : memref<1x1x3x12x20xf32, #tpu.memory_space<vmem>>, vector<1x1x1x10x18xf32>
    %15 = vector.shape_cast %14 : vector<1x1x1x10x18xf32> to vector<10x18xf32>
    %c0_37 = arith.constant 0 : index
    %c0_38 = arith.constant 0 : index
    %c0_39 = arith.constant 0 : index
    %c2_40 = arith.constant 2 : index
    %c2_41 = arith.constant 2 : index
    %16 = vector.load %arg2[%c0_37, %c0_38, %c0_39, %c2_40, %c2_41] : memref<1x1x3x12x20xf32, #tpu.memory_space<vmem>>, vector<1x1x1x10x18xf32>
    %17 = vector.shape_cast %16 : vector<1x1x1x10x18xf32> to vector<10x18xf32>
    %c0_42 = arith.constant 0 : index
    %c0_43 = arith.constant 0 : index
    %c1_44 = arith.constant 1 : index
    %c0_45 = arith.constant 0 : index
    %c0_46 = arith.constant 0 : index
    %18 = vector.load %arg2[%c0_42, %c0_43, %c1_44, %c0_45, %c0_46] : memref<1x1x3x12x20xf32, #tpu.memory_space<vmem>>, vector<1x1x1x10x18xf32>
    %19 = vector.shape_cast %18 : vector<1x1x1x10x18xf32> to vector<10x18xf32>
    %c0_47 = arith.constant 0 : index
    %c0_48 = arith.constant 0 : index
    %c1_49 = arith.constant 1 : index
    %c0_50 = arith.constant 0 : index
    %c1_51 = arith.constant 1 : index
    %20 = vector.load %arg2[%c0_47, %c0_48, %c1_49, %c0_50, %c1_51] : memref<1x1x3x12x20xf32, #tpu.memory_space<vmem>>, vector<1x1x1x10x18xf32>
    %21 = vector.shape_cast %20 : vector<1x1x1x10x18xf32> to vector<10x18xf32>
    %c0_52 = arith.constant 0 : index
    %c0_53 = arith.constant 0 : index
    %c1_54 = arith.constant 1 : index
    %c0_55 = arith.constant 0 : index
    %c2_56 = arith.constant 2 : index
    %22 = vector.load %arg2[%c0_52, %c0_53, %c1_54, %c0_55, %c2_56] : memref<1x1x3x12x20xf32, #tpu.memory_space<vmem>>, vector<1x1x1x10x18xf32>
    %23 = vector.shape_cast %22 : vector<1x1x1x10x18xf32> to vector<10x18xf32>
    %c0_57 = arith.constant 0 : index
    %c0_58 = arith.constant 0 : index
    %c1_59 = arith.constant 1 : index
    %c1_60 = arith.constant 1 : index
    %c0_61 = arith.constant 0 : index
    %24 = vector.load %arg2[%c0_57, %c0_58, %c1_59, %c1_60, %c0_61] : memref<1x1x3x12x20xf32, #tpu.memory_space<vmem>>, vector<1x1x1x10x18xf32>
    %25 = vector.shape_cast %24 : vector<1x1x1x10x18xf32> to vector<10x18xf32>
    %c0_62 = arith.constant 0 : index
    %c0_63 = arith.constant 0 : index
    %c1_64 = arith.constant 1 : index
    %c1_65 = arith.constant 1 : index
    %c1_66 = arith.constant 1 : index
    %26 = vector.load %arg2[%c0_62, %c0_63, %c1_64, %c1_65, %c1_66] : memref<1x1x3x12x20xf32, #tpu.memory_space<vmem>>, vector<1x1x1x10x18xf32>
    %27 = vector.shape_cast %26 : vector<1x1x1x10x18xf32> to vector<10x18xf32>
    %c0_67 = arith.constant 0 : index
    %c0_68 = arith.constant 0 : index
    %c1_69 = arith.constant 1 : index
    %c1_70 = arith.constant 1 : index
    %c2_71 = arith.constant 2 : index
    %28 = vector.load %arg2[%c0_67, %c0_68, %c1_69, %c1_70, %c2_71] : memref<1x1x3x12x20xf32, #tpu.memory_space<vmem>>, vector<1x1x1x10x18xf32>
    %29 = vector.shape_cast %28 : vector<1x1x1x10x18xf32> to vector<10x18xf32>
    %c0_72 = arith.constant 0 : index
    %c0_73 = arith.constant 0 : index
    %c1_74 = arith.constant 1 : index
    %c2_75 = arith.constant 2 : index
    %c0_76 = arith.constant 0 : index
    %30 = vector.load %arg2[%c0_72, %c0_73, %c1_74, %c2_75, %c0_76] : memref<1x1x3x12x20xf32, #tpu.memory_space<vmem>>, vector<1x1x1x10x18xf32>
    %31 = vector.shape_cast %30 : vector<1x1x1x10x18xf32> to vector<10x18xf32>
    %c0_77 = arith.constant 0 : index
    %c0_78 = arith.constant 0 : index
    %c1_79 = arith.constant 1 : index
    %c2_80 = arith.constant 2 : index
    %c1_81 = arith.constant 1 : index
    %32 = vector.load %arg2[%c0_77, %c0_78, %c1_79, %c2_80, %c1_81] : memref<1x1x3x12x20xf32, #tpu.memory_space<vmem>>, vector<1x1x1x10x18xf32>
    %33 = vector.shape_cast %32 : vector<1x1x1x10x18xf32> to vector<10x18xf32>
    %c0_82 = arith.constant 0 : index
    %c0_83 = arith.constant 0 : index
    %c1_84 = arith.constant 1 : index
    %c2_85 = arith.constant 2 : index
    %c2_86 = arith.constant 2 : index
    %34 = vector.load %arg2[%c0_82, %c0_83, %c1_84, %c2_85, %c2_86] : memref<1x1x3x12x20xf32, #tpu.memory_space<vmem>>, vector<1x1x1x10x18xf32>
    %35 = vector.shape_cast %34 : vector<1x1x1x10x18xf32> to vector<10x18xf32>
    %c0_87 = arith.constant 0 : index
    %c0_88 = arith.constant 0 : index
    %c2_89 = arith.constant 2 : index
    %c0_90 = arith.constant 0 : index
    %c0_91 = arith.constant 0 : index
    %36 = vector.load %arg2[%c0_87, %c0_88, %c2_89, %c0_90, %c0_91] : memref<1x1x3x12x20xf32, #tpu.memory_space<vmem>>, vector<1x1x1x10x18xf32>
    %37 = vector.shape_cast %36 : vector<1x1x1x10x18xf32> to vector<10x18xf32>
    %c0_92 = arith.constant 0 : index
    %c0_93 = arith.constant 0 : index
    %c2_94 = arith.constant 2 : index
    %c0_95 = arith.constant 0 : index
    %c1_96 = arith.constant 1 : index
    %38 = vector.load %arg2[%c0_92, %c0_93, %c2_94, %c0_95, %c1_96] : memref<1x1x3x12x20xf32, #tpu.memory_space<vmem>>, vector<1x1x1x10x18xf32>
    %39 = vector.shape_cast %38 : vector<1x1x1x10x18xf32> to vector<10x18xf32>
    %c0_97 = arith.constant 0 : index
    %c0_98 = arith.constant 0 : index
    %c2_99 = arith.constant 2 : index
    %c0_100 = arith.constant 0 : index
    %c2_101 = arith.constant 2 : index
    %40 = vector.load %arg2[%c0_97, %c0_98, %c2_99, %c0_100, %c2_101] : memref<1x1x3x12x20xf32, #tpu.memory_space<vmem>>, vector<1x1x1x10x18xf32>
    %41 = vector.shape_cast %40 : vector<1x1x1x10x18xf32> to vector<10x18xf32>
    %c0_102 = arith.constant 0 : index
    %c0_103 = arith.constant 0 : index
    %c2_104 = arith.constant 2 : index
    %c1_105 = arith.constant 1 : index
    %c0_106 = arith.constant 0 : index
    %42 = vector.load %arg2[%c0_102, %c0_103, %c2_104, %c1_105, %c0_106] : memref<1x1x3x12x20xf32, #tpu.memory_space<vmem>>, vector<1x1x1x10x18xf32>
    %43 = vector.shape_cast %42 : vector<1x1x1x10x18xf32> to vector<10x18xf32>
    %c0_107 = arith.constant 0 : index
    %c0_108 = arith.constant 0 : index
    %c2_109 = arith.constant 2 : index
    %c1_110 = arith.constant 1 : index
    %c1_111 = arith.constant 1 : index
    %44 = vector.load %arg2[%c0_107, %c0_108, %c2_109, %c1_110, %c1_111] : memref<1x1x3x12x20xf32, #tpu.memory_space<vmem>>, vector<1x1x1x10x18xf32>
    %45 = vector.shape_cast %44 : vector<1x1x1x10x18xf32> to vector<10x18xf32>
    %c0_112 = arith.constant 0 : index
    %c0_113 = arith.constant 0 : index
    %c2_114 = arith.constant 2 : index
    %c1_115 = arith.constant 1 : index
    %c2_116 = arith.constant 2 : index
    %46 = vector.load %arg2[%c0_112, %c0_113, %c2_114, %c1_115, %c2_116] : memref<1x1x3x12x20xf32, #tpu.memory_space<vmem>>, vector<1x1x1x10x18xf32>
    %47 = vector.shape_cast %46 : vector<1x1x1x10x18xf32> to vector<10x18xf32>
    %c0_117 = arith.constant 0 : index
    %c0_118 = arith.constant 0 : index
    %c2_119 = arith.constant 2 : index
    %c2_120 = arith.constant 2 : index
    %c0_121 = arith.constant 0 : index
    %48 = vector.load %arg2[%c0_117, %c0_118, %c2_119, %c2_120, %c0_121] : memref<1x1x3x12x20xf32, #tpu.memory_space<vmem>>, vector<1x1x1x10x18xf32>
    %49 = vector.shape_cast %48 : vector<1x1x1x10x18xf32> to vector<10x18xf32>
    %c0_122 = arith.constant 0 : index
    %c0_123 = arith.constant 0 : index
    %c2_124 = arith.constant 2 : index
    %c2_125 = arith.constant 2 : index
    %c1_126 = arith.constant 1 : index
    %50 = vector.load %arg2[%c0_122, %c0_123, %c2_124, %c2_125, %c1_126] : memref<1x1x3x12x20xf32, #tpu.memory_space<vmem>>, vector<1x1x1x10x18xf32>
    %51 = vector.shape_cast %50 : vector<1x1x1x10x18xf32> to vector<10x18xf32>
    %c0_127 = arith.constant 0 : index
    %c0_128 = arith.constant 0 : index
    %c2_129 = arith.constant 2 : index
    %c2_130 = arith.constant 2 : index
    %c2_131 = arith.constant 2 : index
    %52 = vector.load %arg2[%c0_127, %c0_128, %c2_129, %c2_130, %c2_131] : memref<1x1x3x12x20xf32, #tpu.memory_space<vmem>>, vector<1x1x1x10x18xf32>
    %53 = vector.shape_cast %52 : vector<1x1x1x10x18xf32> to vector<10x18xf32>
    %54 = vector.shape_cast %1 : vector<10x18xf32> to vector<1x10x18xf32>
    %55 = vector.shape_cast %3 : vector<10x18xf32> to vector<1x10x18xf32>
    %56 = vector.shape_cast %5 : vector<10x18xf32> to vector<1x10x18xf32>
    %57 = vector.shape_cast %7 : vector<10x18xf32> to vector<1x10x18xf32>
    %58 = vector.shape_cast %9 : vector<10x18xf32> to vector<1x10x18xf32>
    %59 = vector.shape_cast %11 : vector<10x18xf32> to vector<1x10x18xf32>
    %60 = vector.shape_cast %13 : vector<10x18xf32> to vector<1x10x18xf32>
    %61 = vector.shape_cast %15 : vector<10x18xf32> to vector<1x10x18xf32>
    %62 = vector.shape_cast %17 : vector<10x18xf32> to vector<1x10x18xf32>
    %63 = vector.shape_cast %19 : vector<10x18xf32> to vector<1x10x18xf32>
    %64 = vector.shape_cast %21 : vector<10x18xf32> to vector<1x10x18xf32>
    %65 = vector.shape_cast %23 : vector<10x18xf32> to vector<1x10x18xf32>
    %66 = vector.shape_cast %25 : vector<10x18xf32> to vector<1x10x18xf32>
    %67 = vector.shape_cast %27 : vector<10x18xf32> to vector<1x10x18xf32>
    %68 = vector.shape_cast %29 : vector<10x18xf32> to vector<1x10x18xf32>
    %69 = vector.shape_cast %31 : vector<10x18xf32> to vector<1x10x18xf32>
    %70 = vector.shape_cast %33 : vector<10x18xf32> to vector<1x10x18xf32>
    %71 = vector.shape_cast %35 : vector<10x18xf32> to vector<1x10x18xf32>
    %72 = vector.shape_cast %37 : vector<10x18xf32> to vector<1x10x18xf32>
    %73 = vector.shape_cast %39 : vector<10x18xf32> to vector<1x10x18xf32>
    %74 = vector.shape_cast %41 : vector<10x18xf32> to vector<1x10x18xf32>
    %75 = vector.shape_cast %43 : vector<10x18xf32> to vector<1x10x18xf32>
    %76 = vector.shape_cast %45 : vector<10x18xf32> to vector<1x10x18xf32>
    %77 = vector.shape_cast %47 : vector<10x18xf32> to vector<1x10x18xf32>
    %78 = vector.shape_cast %49 : vector<10x18xf32> to vector<1x10x18xf32>
    %79 = vector.shape_cast %51 : vector<10x18xf32> to vector<1x10x18xf32>
    %80 = vector.shape_cast %53 : vector<10x18xf32> to vector<1x10x18xf32>
    %81 = tpu.concatenate %54, %55, %56, %57, %58, %59, %60, %61, %62, %63, %64, %65, %66, %67, %68, %69 in 0 : vector<1x10x18xf32>, vector<1x10x18xf32>, vector<1x10x18xf32>, vector<1x10x18xf32>, vector<1x10x18xf32>, vector<1x10x18xf32>, vector<1x10x18xf32>, vector<1x10x18xf32>, vector<1x10x18xf32>, vector<1x10x18xf32>, vector<1x10x18xf32>, vector<1x10x18xf32>, vector<1x10x18xf32>, vector<1x10x18xf32>, vector<1x10x18xf32>, vector<1x10x18xf32> -> vector<16x10x18xf32>
    %82 = tpu.concatenate %70, %71, %72, %73, %74, %75, %76, %77, %78, %79, %80 in 0 : vector<1x10x18xf32>, vector<1x10x18xf32>, vector<1x10x18xf32>, vector<1x10x18xf32>, vector<1x10x18xf32>, vector<1x10x18xf32>, vector<1x10x18xf32>, vector<1x10x18xf32>, vector<1x10x18xf32>, vector<1x10x18xf32>, vector<1x10x18xf32> -> vector<11x10x18xf32>
    %83 = tpu.concatenate %81, %82 in 0 : vector<16x10x18xf32>, vector<11x10x18xf32> -> vector<27x10x18xf32>
    %84 = vector.shape_cast %83 : vector<27x10x18xf32> to vector<27x180xf32>
    %c0_132 = arith.constant 0 : index
    %c0_133 = arith.constant 0 : index
    %85 = vector.load %arg3[%c0_132, %c0_133] : memref<8x27xf32, #tpu.memory_space<vmem>>, vector<8x27xf32>
    %cst = arith.constant dense<0.000000e+00> : vector<8x180xf32>
    %86 = tpu.matmul %85, %84, %cst {dimension_numbers = #tpu.dot_dimension_numbers<[1], [0], [0], [1], [0, 0, 1, 1], [], []>} : vector<8x27xf32>, vector<27x180xf32>, vector<8x180xf32> -> vector<8x180xf32>
    %c0_134 = arith.constant 0 : index
    %c0_135 = arith.constant 0 : index
    %87 = vector.load %arg4[%c0_134, %c0_135] : memref<8x1xf32, #tpu.memory_space<vmem>>, vector<8x1xf32>
    %88 = vector.broadcast %87 : vector<8x1xf32> to vector<8x180xf32>
    %89 = arith.addf %86, %88 : vector<8x180xf32>
    %cst_136 = arith.constant 0.000000e+00 : f32
    %90 = vector.broadcast %cst_136 : f32 to vector<8x180xf32>
    %91 = arith.maximumf %89, %90 : vector<8x180xf32>
    %92 = vector.shape_cast %91 : vector<8x180xf32> to vector<8x10x18xf32>
    %c0_137 = arith.constant 0 : index
    %c0_138 = arith.constant 0 : index
    %c0_139 = arith.constant 0 : index
    %93 = vector.load %arg8[%c0_137, %c0_138, %c0_139] : memref<8x10x18xf32, #tpu.memory_space<vmem>>, vector<8x10x18xf32>
    tpu.vector_store %arg8[%c0_137, %c0_138, %c0_139], %92 {strides = array<i32>} : memref<8x10x18xf32, #tpu.memory_space<vmem>>, vector<8x10x18xf32>,
    %c0_140 = arith.constant 0 : index
    %c0_141 = arith.constant 0 : index
    %c0_142 = arith.constant 0 : index
    %94 = vector.load %arg8[%c0_140, %c0_141, %c0_142] : memref<8x10x18xf32, #tpu.memory_space<vmem>>, vector<1x8x16xf32>
    %95 = vector.shape_cast %94 : vector<1x8x16xf32> to vector<8x16xf32>
    %c0_143 = arith.constant 0 : index
    %c0_144 = arith.constant 0 : index
    %c1_145 = arith.constant 1 : index
    %96 = vector.load %arg8[%c0_143, %c0_144, %c1_145] : memref<8x10x18xf32, #tpu.memory_space<vmem>>, vector<1x8x16xf32>
    %97 = vector.shape_cast %96 : vector<1x8x16xf32> to vector<8x16xf32>
    %c0_146 = arith.constant 0 : index
    %c0_147 = arith.constant 0 : index
    %c2_148 = arith.constant 2 : index
    %98 = vector.load %arg8[%c0_146, %c0_147, %c2_148] : memref<8x10x18xf32, #tpu.memory_space<vmem>>, vector<1x8x16xf32>
    %99 = vector.shape_cast %98 : vector<1x8x16xf32> to vector<8x16xf32>
    %c0_149 = arith.constant 0 : index
    %c1_150 = arith.constant 1 : index
    %c0_151 = arith.constant 0 : index
    %100 = vector.load %arg8[%c0_149, %c1_150, %c0_151] : memref<8x10x18xf32, #tpu.memory_space<vmem>>, vector<1x8x16xf32>
    %101 = vector.shape_cast %100 : vector<1x8x16xf32> to vector<8x16xf32>
    %c0_152 = arith.constant 0 : index
    %c1_153 = arith.constant 1 : index
    %c1_154 = arith.constant 1 : index
    %102 = vector.load %arg8[%c0_152, %c1_153, %c1_154] : memref<8x10x18xf32, #tpu.memory_space<vmem>>, vector<1x8x16xf32>
    %103 = vector.shape_cast %102 : vector<1x8x16xf32> to vector<8x16xf32>
    %c0_155 = arith.constant 0 : index
    %c1_156 = arith.constant 1 : index
    %c2_157 = arith.constant 2 : index
    %104 = vector.load %arg8[%c0_155, %c1_156, %c2_157] : memref<8x10x18xf32, #tpu.memory_space<vmem>>, vector<1x8x16xf32>
    %105 = vector.shape_cast %104 : vector<1x8x16xf32> to vector<8x16xf32>
    %c0_158 = arith.constant 0 : index
    %c2_159 = arith.constant 2 : index
    %c0_160 = arith.constant 0 : index
    %106 = vector.load %arg8[%c0_158, %c2_159, %c0_160] : memref<8x10x18xf32, #tpu.memory_space<vmem>>, vector<1x8x16xf32>
    %107 = vector.shape_cast %106 : vector<1x8x16xf32> to vector<8x16xf32>
    %c0_161 = arith.constant 0 : index
    %c2_162 = arith.constant 2 : index
    %c1_163 = arith.constant 1 : index
    %108 = vector.load %arg8[%c0_161, %c2_162, %c1_163] : memref<8x10x18xf32, #tpu.memory_space<vmem>>, vector<1x8x16xf32>
    %109 = vector.shape_cast %108 : vector<1x8x16xf32> to vector<8x16xf32>
    %c0_164 = arith.constant 0 : index
    %c2_165 = arith.constant 2 : index
    %c2_166 = arith.constant 2 : index
    %110 = vector.load %arg8[%c0_164, %c2_165, %c2_166] : memref<8x10x18xf32, #tpu.memory_space<vmem>>, vector<1x8x16xf32>
    %111 = vector.shape_cast %110 : vector<1x8x16xf32> to vector<8x16xf32>
    %c1_167 = arith.constant 1 : index
    %c0_168 = arith.constant 0 : index
    %c0_169 = arith.constant 0 : index
    %112 = vector.load %arg8[%c1_167, %c0_168, %c0_169] : memref<8x10x18xf32, #tpu.memory_space<vmem>>, vector<1x8x16xf32>
    %113 = vector.shape_cast %112 : vector<1x8x16xf32> to vector<8x16xf32>
    %c1_170 = arith.constant 1 : index
    %c0_171 = arith.constant 0 : index
    %c1_172 = arith.constant 1 : index
    %114 = vector.load %arg8[%c1_170, %c0_171, %c1_172] : memref<8x10x18xf32, #tpu.memory_space<vmem>>, vector<1x8x16xf32>
    %115 = vector.shape_cast %114 : vector<1x8x16xf32> to vector<8x16xf32>
    %c1_173 = arith.constant 1 : index
    %c0_174 = arith.constant 0 : index
    %c2_175 = arith.constant 2 : index
    %116 = vector.load %arg8[%c1_173, %c0_174, %c2_175] : memref<8x10x18xf32, #tpu.memory_space<vmem>>, vector<1x8x16xf32>
    %117 = vector.shape_cast %116 : vector<1x8x16xf32> to vector<8x16xf32>
    %c1_176 = arith.constant 1 : index
    %c1_177 = arith.constant 1 : index
    %c0_178 = arith.constant 0 : index
    %118 = vector.load %arg8[%c1_176, %c1_177, %c0_178] : memref<8x10x18xf32, #tpu.memory_space<vmem>>, vector<1x8x16xf32>
    %119 = vector.shape_cast %118 : vector<1x8x16xf32> to vector<8x16xf32>
    %c1_179 = arith.constant 1 : index
    %c1_180 = arith.constant 1 : index
    %c1_181 = arith.constant 1 : index
    %120 = vector.load %arg8[%c1_179, %c1_180, %c1_181] : memref<8x10x18xf32, #tpu.memory_space<vmem>>, vector<1x8x16xf32>
    %121 = vector.shape_cast %120 : vector<1x8x16xf32> to vector<8x16xf32>
    %c1_182 = arith.constant 1 : index
    %c1_183 = arith.constant 1 : index
    %c2_184 = arith.constant 2 : index
    %122 = vector.load %arg8[%c1_182, %c1_183, %c2_184] : memref<8x10x18xf32, #tpu.memory_space<vmem>>, vector<1x8x16xf32>
    %123 = vector.shape_cast %122 : vector<1x8x16xf32> to vector<8x16xf32>
    %c1_185 = arith.constant 1 : index
    %c2_186 = arith.constant 2 : index
    %c0_187 = arith.constant 0 : index
    %124 = vector.load %arg8[%c1_185, %c2_186, %c0_187] : memref<8x10x18xf32, #tpu.memory_space<vmem>>, vector<1x8x16xf32>
    %125 = vector.shape_cast %124 : vector<1x8x16xf32> to vector<8x16xf32>
    %c1_188 = arith.constant 1 : index
    %c2_189 = arith.constant 2 : index
    %c1_190 = arith.constant 1 : index
    %126 = vector.load %arg8[%c1_188, %c2_189, %c1_190] : memref<8x10x18xf32, #tpu.memory_space<vmem>>, vector<1x8x16xf32>
    %127 = vector.shape_cast %126 : vector<1x8x16xf32> to vector<8x16xf32>
    %c1_191 = arith.constant 1 : index
    %c2_192 = arith.constant 2 : index
    %c2_193 = arith.constant 2 : index
    %128 = vector.load %arg8[%c1_191, %c2_192, %c2_193] : memref<8x10x18xf32, #tpu.memory_space<vmem>>, vector<1x8x16xf32>
    %129 = vector.shape_cast %128 : vector<1x8x16xf32> to vector<8x16xf32>
    %c2_194 = arith.constant 2 : index
    %c0_195 = arith.constant 0 : index
    %c0_196 = arith.constant 0 : index
    %130 = vector.load %arg8[%c2_194, %c0_195, %c0_196] : memref<8x10x18xf32, #tpu.memory_space<vmem>>, vector<1x8x16xf32>
    %131 = vector.shape_cast %130 : vector<1x8x16xf32> to vector<8x16xf32>
    %c2_197 = arith.constant 2 : index
    %c0_198 = arith.constant 0 : index
    %c1_199 = arith.constant 1 : index
    %132 = vector.load %arg8[%c2_197, %c0_198, %c1_199] : memref<8x10x18xf32, #tpu.memory_space<vmem>>, vector<1x8x16xf32>
    %133 = vector.shape_cast %132 : vector<1x8x16xf32> to vector<8x16xf32>
    %c2_200 = arith.constant 2 : index
    %c0_201 = arith.constant 0 : index
    %c2_202 = arith.constant 2 : index
    %134 = vector.load %arg8[%c2_200, %c0_201, %c2_202] : memref<8x10x18xf32, #tpu.memory_space<vmem>>, vector<1x8x16xf32>
    %135 = vector.shape_cast %134 : vector<1x8x16xf32> to vector<8x16xf32>
    %c2_203 = arith.constant 2 : index
    %c1_204 = arith.constant 1 : index
    %c0_205 = arith.constant 0 : index
    %136 = vector.load %arg8[%c2_203, %c1_204, %c0_205] : memref<8x10x18xf32, #tpu.memory_space<vmem>>, vector<1x8x16xf32>
    %137 = vector.shape_cast %136 : vector<1x8x16xf32> to vector<8x16xf32>
    %c2_206 = arith.constant 2 : index
    %c1_207 = arith.constant 1 : index
    %c1_208 = arith.constant 1 : index
    %138 = vector.load %arg8[%c2_206, %c1_207, %c1_208] : memref<8x10x18xf32, #tpu.memory_space<vmem>>, vector<1x8x16xf32>
    %139 = vector.shape_cast %138 : vector<1x8x16xf32> to vector<8x16xf32>
    %c2_209 = arith.constant 2 : index
    %c1_210 = arith.constant 1 : index
    %c2_211 = arith.constant 2 : index
    %140 = vector.load %arg8[%c2_209, %c1_210, %c2_211] : memref<8x10x18xf32, #tpu.memory_space<vmem>>, vector<1x8x16xf32>
    %141 = vector.shape_cast %140 : vector<1x8x16xf32> to vector<8x16xf32>
    %c2_212 = arith.constant 2 : index
    %c2_213 = arith.constant 2 : index
    %c0_214 = arith.constant 0 : index
    %142 = vector.load %arg8[%c2_212, %c2_213, %c0_214] : memref<8x10x18xf32, #tpu.memory_space<vmem>>, vector<1x8x16xf32>
    %143 = vector.shape_cast %142 : vector<1x8x16xf32> to vector<8x16xf32>
    %c2_215 = arith.constant 2 : index
    %c2_216 = arith.constant 2 : index
    %c1_217 = arith.constant 1 : index
    %144 = vector.load %arg8[%c2_215, %c2_216, %c1_217] : memref<8x10x18xf32, #tpu.memory_space<vmem>>, vector<1x8x16xf32>
    %145 = vector.shape_cast %144 : vector<1x8x16xf32> to vector<8x16xf32>
    %c2_218 = arith.constant 2 : index
    %c2_219 = arith.constant 2 : index
    %c2_220 = arith.constant 2 : index
    %146 = vector.load %arg8[%c2_218, %c2_219, %c2_220] : memref<8x10x18xf32, #tpu.memory_space<vmem>>, vector<1x8x16xf32>
    %147 = vector.shape_cast %146 : vector<1x8x16xf32> to vector<8x16xf32>
    %c3 = arith.constant 3 : index
    %c0_221 = arith.constant 0 : index
    %c0_222 = arith.constant 0 : index
    %148 = vector.load %arg8[%c3, %c0_221, %c0_222] : memref<8x10x18xf32, #tpu.memory_space<vmem>>, vector<1x8x16xf32>
    %149 = vector.shape_cast %148 : vector<1x8x16xf32> to vector<8x16xf32>
    %c3_223 = arith.constant 3 : index
    %c0_224 = arith.constant 0 : index
    %c1_225 = arith.constant 1 : index
    %150 = vector.load %arg8[%c3_223, %c0_224, %c1_225] : memref<8x10x18xf32, #tpu.memory_space<vmem>>, vector<1x8x16xf32>
    %151 = vector.shape_cast %150 : vector<1x8x16xf32> to vector<8x16xf32>
    %c3_226 = arith.constant 3 : index
    %c0_227 = arith.constant 0 : index
    %c2_228 = arith.constant 2 : index
    %152 = vector.load %arg8[%c3_226, %c0_227, %c2_228] : memref<8x10x18xf32, #tpu.memory_space<vmem>>, vector<1x8x16xf32>
    %153 = vector.shape_cast %152 : vector<1x8x16xf32> to vector<8x16xf32>
    %c3_229 = arith.constant 3 : index
    %c1_230 = arith.constant 1 : index
    %c0_231 = arith.constant 0 : index
    %154 = vector.load %arg8[%c3_229, %c1_230, %c0_231] : memref<8x10x18xf32, #tpu.memory_space<vmem>>, vector<1x8x16xf32>
    %155 = vector.shape_cast %154 : vector<1x8x16xf32> to vector<8x16xf32>
    %c3_232 = arith.constant 3 : index
    %c1_233 = arith.constant 1 : index
    %c1_234 = arith.constant 1 : index
    %156 = vector.load %arg8[%c3_232, %c1_233, %c1_234] : memref<8x10x18xf32, #tpu.memory_space<vmem>>, vector<1x8x16xf32>
    %157 = vector.shape_cast %156 : vector<1x8x16xf32> to vector<8x16xf32>
    %c3_235 = arith.constant 3 : index
    %c1_236 = arith.constant 1 : index
    %c2_237 = arith.constant 2 : index
    %158 = vector.load %arg8[%c3_235, %c1_236, %c2_237] : memref<8x10x18xf32, #tpu.memory_space<vmem>>, vector<1x8x16xf32>
    %159 = vector.shape_cast %158 : vector<1x8x16xf32> to vector<8x16xf32>
    %c3_238 = arith.constant 3 : index
    %c2_239 = arith.constant 2 : index
    %c0_240 = arith.constant 0 : index
    %160 = vector.load %arg8[%c3_238, %c2_239, %c0_240] : memref<8x10x18xf32, #tpu.memory_space<vmem>>, vector<1x8x16xf32>
    %161 = vector.shape_cast %160 : vector<1x8x16xf32> to vector<8x16xf32>
    %c3_241 = arith.constant 3 : index
    %c2_242 = arith.constant 2 : index
    %c1_243 = arith.constant 1 : index
    %162 = vector.load %arg8[%c3_241, %c2_242, %c1_243] : memref<8x10x18xf32, #tpu.memory_space<vmem>>, vector<1x8x16xf32>
    %163 = vector.shape_cast %162 : vector<1x8x16xf32> to vector<8x16xf32>
    %c3_244 = arith.constant 3 : index
    %c2_245 = arith.constant 2 : index
    %c2_246 = arith.constant 2 : index
    %164 = vector.load %arg8[%c3_244, %c2_245, %c2_246] : memref<8x10x18xf32, #tpu.memory_space<vmem>>, vector<1x8x16xf32>
    %165 = vector.shape_cast %164 : vector<1x8x16xf32> to vector<8x16xf32>
    %c4 = arith.constant 4 : index
    %c0_247 = arith.constant 0 : index
    %c0_248 = arith.constant 0 : index
    %166 = vector.load %arg8[%c4, %c0_247, %c0_248] : memref<8x10x18xf32, #tpu.memory_space<vmem>>, vector<1x8x16xf32>
    %167 = vector.shape_cast %166 : vector<1x8x16xf32> to vector<8x16xf32>
    %c4_249 = arith.constant 4 : index
    %c0_250 = arith.constant 0 : index
    %c1_251 = arith.constant 1 : index
    %168 = vector.load %arg8[%c4_249, %c0_250, %c1_251] : memref<8x10x18xf32, #tpu.memory_space<vmem>>, vector<1x8x16xf32>
    %169 = vector.shape_cast %168 : vector<1x8x16xf32> to vector<8x16xf32>
    %c4_252 = arith.constant 4 : index
    %c0_253 = arith.constant 0 : index
    %c2_254 = arith.constant 2 : index
    %170 = vector.load %arg8[%c4_252, %c0_253, %c2_254] : memref<8x10x18xf32, #tpu.memory_space<vmem>>, vector<1x8x16xf32>
    %171 = vector.shape_cast %170 : vector<1x8x16xf32> to vector<8x16xf32>
    %c4_255 = arith.constant 4 : index
    %c1_256 = arith.constant 1 : index
    %c0_257 = arith.constant 0 : index
    %172 = vector.load %arg8[%c4_255, %c1_256, %c0_257] : memref<8x10x18xf32, #tpu.memory_space<vmem>>, vector<1x8x16xf32>
    %173 = vector.shape_cast %172 : vector<1x8x16xf32> to vector<8x16xf32>
    %c4_258 = arith.constant 4 : index
    %c1_259 = arith.constant 1 : index
    %c1_260 = arith.constant 1 : index
    %174 = vector.load %arg8[%c4_258, %c1_259, %c1_260] : memref<8x10x18xf32, #tpu.memory_space<vmem>>, vector<1x8x16xf32>
    %175 = vector.shape_cast %174 : vector<1x8x16xf32> to vector<8x16xf32>
    %c4_261 = arith.constant 4 : index
    %c1_262 = arith.constant 1 : index
    %c2_263 = arith.constant 2 : index
    %176 = vector.load %arg8[%c4_261, %c1_262, %c2_263] : memref<8x10x18xf32, #tpu.memory_space<vmem>>, vector<1x8x16xf32>
    %177 = vector.shape_cast %176 : vector<1x8x16xf32> to vector<8x16xf32>
    %c4_264 = arith.constant 4 : index
    %c2_265 = arith.constant 2 : index
    %c0_266 = arith.constant 0 : index
    %178 = vector.load %arg8[%c4_264, %c2_265, %c0_266] : memref<8x10x18xf32, #tpu.memory_space<vmem>>, vector<1x8x16xf32>
    %179 = vector.shape_cast %178 : vector<1x8x16xf32> to vector<8x16xf32>
    %c4_267 = arith.constant 4 : index
    %c2_268 = arith.constant 2 : index
    %c1_269 = arith.constant 1 : index
    %180 = vector.load %arg8[%c4_267, %c2_268, %c1_269] : memref<8x10x18xf32, #tpu.memory_space<vmem>>, vector<1x8x16xf32>
    %181 = vector.shape_cast %180 : vector<1x8x16xf32> to vector<8x16xf32>
    %c4_270 = arith.constant 4 : index
    %c2_271 = arith.constant 2 : index
    %c2_272 = arith.constant 2 : index
    %182 = vector.load %arg8[%c4_270, %c2_271, %c2_272] : memref<8x10x18xf32, #tpu.memory_space<vmem>>, vector<1x8x16xf32>
    %183 = vector.shape_cast %182 : vector<1x8x16xf32> to vector<8x16xf32>
    %c5 = arith.constant 5 : index
    %c0_273 = arith.constant 0 : index
    %c0_274 = arith.constant 0 : index
    %184 = vector.load %arg8[%c5, %c0_273, %c0_274] : memref<8x10x18xf32, #tpu.memory_space<vmem>>, vector<1x8x16xf32>
    %185 = vector.shape_cast %184 : vector<1x8x16xf32> to vector<8x16xf32>
    %c5_275 = arith.constant 5 : index
    %c0_276 = arith.constant 0 : index
    %c1_277 = arith.constant 1 : index
    %186 = vector.load %arg8[%c5_275, %c0_276, %c1_277] : memref<8x10x18xf32, #tpu.memory_space<vmem>>, vector<1x8x16xf32>
    %187 = vector.shape_cast %186 : vector<1x8x16xf32> to vector<8x16xf32>
    %c5_278 = arith.constant 5 : index
    %c0_279 = arith.constant 0 : index
    %c2_280 = arith.constant 2 : index
    %188 = vector.load %arg8[%c5_278, %c0_279, %c2_280] : memref<8x10x18xf32, #tpu.memory_space<vmem>>, vector<1x8x16xf32>
    %189 = vector.shape_cast %188 : vector<1x8x16xf32> to vector<8x16xf32>
    %c5_281 = arith.constant 5 : index
    %c1_282 = arith.constant 1 : index
    %c0_283 = arith.constant 0 : index
    %190 = vector.load %arg8[%c5_281, %c1_282, %c0_283] : memref<8x10x18xf32, #tpu.memory_space<vmem>>, vector<1x8x16xf32>
    %191 = vector.shape_cast %190 : vector<1x8x16xf32> to vector<8x16xf32>
    %c5_284 = arith.constant 5 : index
    %c1_285 = arith.constant 1 : index
    %c1_286 = arith.constant 1 : index
    %192 = vector.load %arg8[%c5_284, %c1_285, %c1_286] : memref<8x10x18xf32, #tpu.memory_space<vmem>>, vector<1x8x16xf32>
    %193 = vector.shape_cast %192 : vector<1x8x16xf32> to vector<8x16xf32>
    %c5_287 = arith.constant 5 : index
    %c1_288 = arith.constant 1 : index
    %c2_289 = arith.constant 2 : index
    %194 = vector.load %arg8[%c5_287, %c1_288, %c2_289] : memref<8x10x18xf32, #tpu.memory_space<vmem>>, vector<1x8x16xf32>
    %195 = vector.shape_cast %194 : vector<1x8x16xf32> to vector<8x16xf32>
    %c5_290 = arith.constant 5 : index
    %c2_291 = arith.constant 2 : index
    %c0_292 = arith.constant 0 : index
    %196 = vector.load %arg8[%c5_290, %c2_291, %c0_292] : memref<8x10x18xf32, #tpu.memory_space<vmem>>, vector<1x8x16xf32>
    %197 = vector.shape_cast %196 : vector<1x8x16xf32> to vector<8x16xf32>
    %c5_293 = arith.constant 5 : index
    %c2_294 = arith.constant 2 : index
    %c1_295 = arith.constant 1 : index
    %198 = vector.load %arg8[%c5_293, %c2_294, %c1_295] : memref<8x10x18xf32, #tpu.memory_space<vmem>>, vector<1x8x16xf32>
    %199 = vector.shape_cast %198 : vector<1x8x16xf32> to vector<8x16xf32>
    %c5_296 = arith.constant 5 : index
    %c2_297 = arith.constant 2 : index
    %c2_298 = arith.constant 2 : index
    %200 = vector.load %arg8[%c5_296, %c2_297, %c2_298] : memref<8x10x18xf32, #tpu.memory_space<vmem>>, vector<1x8x16xf32>
    %201 = vector.shape_cast %200 : vector<1x8x16xf32> to vector<8x16xf32>
    %c6 = arith.constant 6 : index
    %c0_299 = arith.constant 0 : index
    %c0_300 = arith.constant 0 : index
    %202 = vector.load %arg8[%c6, %c0_299, %c0_300] : memref<8x10x18xf32, #tpu.memory_space<vmem>>, vector<1x8x16xf32>
    %203 = vector.shape_cast %202 : vector<1x8x16xf32> to vector<8x16xf32>
    %c6_301 = arith.constant 6 : index
    %c0_302 = arith.constant 0 : index
    %c1_303 = arith.constant 1 : index
    %204 = vector.load %arg8[%c6_301, %c0_302, %c1_303] : memref<8x10x18xf32, #tpu.memory_space<vmem>>, vector<1x8x16xf32>
    %205 = vector.shape_cast %204 : vector<1x8x16xf32> to vector<8x16xf32>
    %c6_304 = arith.constant 6 : index
    %c0_305 = arith.constant 0 : index
    %c2_306 = arith.constant 2 : index
    %206 = vector.load %arg8[%c6_304, %c0_305, %c2_306] : memref<8x10x18xf32, #tpu.memory_space<vmem>>, vector<1x8x16xf32>
    %207 = vector.shape_cast %206 : vector<1x8x16xf32> to vector<8x16xf32>
    %c6_307 = arith.constant 6 : index
    %c1_308 = arith.constant 1 : index
    %c0_309 = arith.constant 0 : index
    %208 = vector.load %arg8[%c6_307, %c1_308, %c0_309] : memref<8x10x18xf32, #tpu.memory_space<vmem>>, vector<1x8x16xf32>
    %209 = vector.shape_cast %208 : vector<1x8x16xf32> to vector<8x16xf32>
    %c6_310 = arith.constant 6 : index
    %c1_311 = arith.constant 1 : index
    %c1_312 = arith.constant 1 : index
    %210 = vector.load %arg8[%c6_310, %c1_311, %c1_312] : memref<8x10x18xf32, #tpu.memory_space<vmem>>, vector<1x8x16xf32>
    %211 = vector.shape_cast %210 : vector<1x8x16xf32> to vector<8x16xf32>
    %c6_313 = arith.constant 6 : index
    %c1_314 = arith.constant 1 : index
    %c2_315 = arith.constant 2 : index
    %212 = vector.load %arg8[%c6_313, %c1_314, %c2_315] : memref<8x10x18xf32, #tpu.memory_space<vmem>>, vector<1x8x16xf32>
    %213 = vector.shape_cast %212 : vector<1x8x16xf32> to vector<8x16xf32>
    %c6_316 = arith.constant 6 : index
    %c2_317 = arith.constant 2 : index
    %c0_318 = arith.constant 0 : index
    %214 = vector.load %arg8[%c6_316, %c2_317, %c0_318] : memref<8x10x18xf32, #tpu.memory_space<vmem>>, vector<1x8x16xf32>
    %215 = vector.shape_cast %214 : vector<1x8x16xf32> to vector<8x16xf32>
    %c6_319 = arith.constant 6 : index
    %c2_320 = arith.constant 2 : index
    %c1_321 = arith.constant 1 : index
    %216 = vector.load %arg8[%c6_319, %c2_320, %c1_321] : memref<8x10x18xf32, #tpu.memory_space<vmem>>, vector<1x8x16xf32>
    %217 = vector.shape_cast %216 : vector<1x8x16xf32> to vector<8x16xf32>
    %c6_322 = arith.constant 6 : index
    %c2_323 = arith.constant 2 : index
    %c2_324 = arith.constant 2 : index
    %218 = vector.load %arg8[%c6_322, %c2_323, %c2_324] : memref<8x10x18xf32, #tpu.memory_space<vmem>>, vector<1x8x16xf32>
    %219 = vector.shape_cast %218 : vector<1x8x16xf32> to vector<8x16xf32>
    %c7 = arith.constant 7 : index
    %c0_325 = arith.constant 0 : index
    %c0_326 = arith.constant 0 : index
    %220 = vector.load %arg8[%c7, %c0_325, %c0_326] : memref<8x10x18xf32, #tpu.memory_space<vmem>>, vector<1x8x16xf32>
    %221 = vector.shape_cast %220 : vector<1x8x16xf32> to vector<8x16xf32>
    %c7_327 = arith.constant 7 : index
    %c0_328 = arith.constant 0 : index
    %c1_329 = arith.constant 1 : index
    %222 = vector.load %arg8[%c7_327, %c0_328, %c1_329] : memref<8x10x18xf32, #tpu.memory_space<vmem>>, vector<1x8x16xf32>
    %223 = vector.shape_cast %222 : vector<1x8x16xf32> to vector<8x16xf32>
    %c7_330 = arith.constant 7 : index
    %c0_331 = arith.constant 0 : index
    %c2_332 = arith.constant 2 : index
    %224 = vector.load %arg8[%c7_330, %c0_331, %c2_332] : memref<8x10x18xf32, #tpu.memory_space<vmem>>, vector<1x8x16xf32>
    %225 = vector.shape_cast %224 : vector<1x8x16xf32> to vector<8x16xf32>
    %c7_333 = arith.constant 7 : index
    %c1_334 = arith.constant 1 : index
    %c0_335 = arith.constant 0 : index
    %226 = vector.load %arg8[%c7_333, %c1_334, %c0_335] : memref<8x10x18xf32, #tpu.memory_space<vmem>>, vector<1x8x16xf32>
    %227 = vector.shape_cast %226 : vector<1x8x16xf32> to vector<8x16xf32>
    %c7_336 = arith.constant 7 : index
    %c1_337 = arith.constant 1 : index
    %c1_338 = arith.constant 1 : index
    %228 = vector.load %arg8[%c7_336, %c1_337, %c1_338] : memref<8x10x18xf32, #tpu.memory_space<vmem>>, vector<1x8x16xf32>
    %229 = vector.shape_cast %228 : vector<1x8x16xf32> to vector<8x16xf32>
    %c7_339 = arith.constant 7 : index
    %c1_340 = arith.constant 1 : index
    %c2_341 = arith.constant 2 : index
    %230 = vector.load %arg8[%c7_339, %c1_340, %c2_341] : memref<8x10x18xf32, #tpu.memory_space<vmem>>, vector<1x8x16xf32>
    %231 = vector.shape_cast %230 : vector<1x8x16xf32> to vector<8x16xf32>
    %c7_342 = arith.constant 7 : index
    %c2_343 = arith.constant 2 : index
    %c0_344 = arith.constant 0 : index
    %232 = vector.load %arg8[%c7_342, %c2_343, %c0_344] : memref<8x10x18xf32, #tpu.memory_space<vmem>>, vector<1x8x16xf32>
    %233 = vector.shape_cast %232 : vector<1x8x16xf32> to vector<8x16xf32>
    %c7_345 = arith.constant 7 : index
    %c2_346 = arith.constant 2 : index
    %c1_347 = arith.constant 1 : index
    %234 = vector.load %arg8[%c7_345, %c2_346, %c1_347] : memref<8x10x18xf32, #tpu.memory_space<vmem>>, vector<1x8x16xf32>
    %235 = vector.shape_cast %234 : vector<1x8x16xf32> to vector<8x16xf32>
    %c7_348 = arith.constant 7 : index
    %c2_349 = arith.constant 2 : index
    %c2_350 = arith.constant 2 : index
    %236 = vector.load %arg8[%c7_348, %c2_349, %c2_350] : memref<8x10x18xf32, #tpu.memory_space<vmem>>, vector<1x8x16xf32>
    %237 = vector.shape_cast %236 : vector<1x8x16xf32> to vector<8x16xf32>
    %238 = vector.shape_cast %95 : vector<8x16xf32> to vector<1x8x16xf32>
    %239 = vector.shape_cast %97 : vector<8x16xf32> to vector<1x8x16xf32>
    %240 = vector.shape_cast %99 : vector<8x16xf32> to vector<1x8x16xf32>
    %241 = vector.shape_cast %101 : vector<8x16xf32> to vector<1x8x16xf32>
    %242 = vector.shape_cast %103 : vector<8x16xf32> to vector<1x8x16xf32>
    %243 = vector.shape_cast %105 : vector<8x16xf32> to vector<1x8x16xf32>
    %244 = vector.shape_cast %107 : vector<8x16xf32> to vector<1x8x16xf32>
    %245 = vector.shape_cast %109 : vector<8x16xf32> to vector<1x8x16xf32>
    %246 = vector.shape_cast %111 : vector<8x16xf32> to vector<1x8x16xf32>
    %247 = vector.shape_cast %113 : vector<8x16xf32> to vector<1x8x16xf32>
    %248 = vector.shape_cast %115 : vector<8x16xf32> to vector<1x8x16xf32>
    %249 = vector.shape_cast %117 : vector<8x16xf32> to vector<1x8x16xf32>
    %250 = vector.shape_cast %119 : vector<8x16xf32> to vector<1x8x16xf32>
    %251 = vector.shape_cast %121 : vector<8x16xf32> to vector<1x8x16xf32>
    %252 = vector.shape_cast %123 : vector<8x16xf32> to vector<1x8x16xf32>
    %253 = vector.shape_cast %125 : vector<8x16xf32> to vector<1x8x16xf32>
    %254 = vector.shape_cast %127 : vector<8x16xf32> to vector<1x8x16xf32>
    %255 = vector.shape_cast %129 : vector<8x16xf32> to vector<1x8x16xf32>
    %256 = vector.shape_cast %131 : vector<8x16xf32> to vector<1x8x16xf32>
    %257 = vector.shape_cast %133 : vector<8x16xf32> to vector<1x8x16xf32>
    %258 = vector.shape_cast %135 : vector<8x16xf32> to vector<1x8x16xf32>
    %259 = vector.shape_cast %137 : vector<8x16xf32> to vector<1x8x16xf32>
    %260 = vector.shape_cast %139 : vector<8x16xf32> to vector<1x8x16xf32>
    %261 = vector.shape_cast %141 : vector<8x16xf32> to vector<1x8x16xf32>
    %262 = vector.shape_cast %143 : vector<8x16xf32> to vector<1x8x16xf32>
    %263 = vector.shape_cast %145 : vector<8x16xf32> to vector<1x8x16xf32>
    %264 = vector.shape_cast %147 : vector<8x16xf32> to vector<1x8x16xf32>
    %265 = vector.shape_cast %149 : vector<8x16xf32> to vector<1x8x16xf32>
    %266 = vector.shape_cast %151 : vector<8x16xf32> to vector<1x8x16xf32>
    %267 = vector.shape_cast %153 : vector<8x16xf32> to vector<1x8x16xf32>
    %268 = vector.shape_cast %155 : vector<8x16xf32> to vector<1x8x16xf32>
    %269 = vector.shape_cast %157 : vector<8x16xf32> to vector<1x8x16xf32>
    %270 = vector.shape_cast %159 : vector<8x16xf32> to vector<1x8x16xf32>
    %271 = vector.shape_cast %161 : vector<8x16xf32> to vector<1x8x16xf32>
    %272 = vector.shape_cast %163 : vector<8x16xf32> to vector<1x8x16xf32>
    %273 = vector.shape_cast %165 : vector<8x16xf32> to vector<1x8x16xf32>
    %274 = vector.shape_cast %167 : vector<8x16xf32> to vector<1x8x16xf32>
    %275 = vector.shape_cast %169 : vector<8x16xf32> to vector<1x8x16xf32>
    %276 = vector.shape_cast %171 : vector<8x16xf32> to vector<1x8x16xf32>
    %277 = vector.shape_cast %173 : vector<8x16xf32> to vector<1x8x16xf32>
    %278 = vector.shape_cast %175 : vector<8x16xf32> to vector<1x8x16xf32>
    %279 = vector.shape_cast %177 : vector<8x16xf32> to vector<1x8x16xf32>
    %280 = vector.shape_cast %179 : vector<8x16xf32> to vector<1x8x16xf32>
    %281 = vector.shape_cast %181 : vector<8x16xf32> to vector<1x8x16xf32>
    %282 = vector.shape_cast %183 : vector<8x16xf32> to vector<1x8x16xf32>
    %283 = vector.shape_cast %185 : vector<8x16xf32> to vector<1x8x16xf32>
    %284 = vector.shape_cast %187 : vector<8x16xf32> to vector<1x8x16xf32>
    %285 = vector.shape_cast %189 : vector<8x16xf32> to vector<1x8x16xf32>
    %286 = vector.shape_cast %191 : vector<8x16xf32> to vector<1x8x16xf32>
    %287 = vector.shape_cast %193 : vector<8x16xf32> to vector<1x8x16xf32>
    %288 = vector.shape_cast %195 : vector<8x16xf32> to vector<1x8x16xf32>
    %289 = vector.shape_cast %197 : vector<8x16xf32> to vector<1x8x16xf32>
    %290 = vector.shape_cast %199 : vector<8x16xf32> to vector<1x8x16xf32>
    %291 = vector.shape_cast %201 : vector<8x16xf32> to vector<1x8x16xf32>
    %292 = vector.shape_cast %203 : vector<8x16xf32> to vector<1x8x16xf32>
    %293 = vector.shape_cast %205 : vector<8x16xf32> to vector<1x8x16xf32>
    %294 = vector.shape_cast %207 : vector<8x16xf32> to vector<1x8x16xf32>
    %295 = vector.shape_cast %209 : vector<8x16xf32> to vector<1x8x16xf32>
    %296 = vector.shape_cast %211 : vector<8x16xf32> to vector<1x8x16xf32>
    %297 = vector.shape_cast %213 : vector<8x16xf32> to vector<1x8x16xf32>
    %298 = vector.shape_cast %215 : vector<8x16xf32> to vector<1x8x16xf32>
    %299 = vector.shape_cast %217 : vector<8x16xf32> to vector<1x8x16xf32>
    %300 = vector.shape_cast %219 : vector<8x16xf32> to vector<1x8x16xf32>
    %301 = vector.shape_cast %221 : vector<8x16xf32> to vector<1x8x16xf32>
    %302 = vector.shape_cast %223 : vector<8x16xf32> to vector<1x8x16xf32>
    %303 = vector.shape_cast %225 : vector<8x16xf32> to vector<1x8x16xf32>
    %304 = vector.shape_cast %227 : vector<8x16xf32> to vector<1x8x16xf32>
    %305 = vector.shape_cast %229 : vector<8x16xf32> to vector<1x8x16xf32>
    %306 = vector.shape_cast %231 : vector<8x16xf32> to vector<1x8x16xf32>
    %307 = vector.shape_cast %233 : vector<8x16xf32> to vector<1x8x16xf32>
    %308 = vector.shape_cast %235 : vector<8x16xf32> to vector<1x8x16xf32>
    %309 = vector.shape_cast %237 : vector<8x16xf32> to vector<1x8x16xf32>
    %310 = tpu.concatenate %238, %239, %240, %241, %242, %243, %244, %245, %246, %247, %248, %249, %250, %251, %252, %253 in 0 : vector<1x8x16xf32>, vector<1x8x16xf32>, vector<1x8x16xf32>, vector<1x8x16xf32>, vector<1x8x16xf32>, vector<1x8x16xf32>, vector<1x8x16xf32>, vector<1x8x16xf32>, vector<1x8x16xf32>, vector<1x8x16xf32>, vector<1x8x16xf32>, vector<1x8x16xf32>, vector<1x8x16xf32>, vector<1x8x16xf32>, vector<1x8x16xf32>, vector<1x8x16xf32> -> vector<16x8x16xf32>
    %311 = tpu.concatenate %254, %255, %256, %257, %258, %259, %260, %261, %262, %263, %264, %265, %266, %267, %268, %269 in 0 : vector<1x8x16xf32>, vector<1x8x16xf32>, vector<1x8x16xf32>, vector<1x8x16xf32>, vector<1x8x16xf32>, vector<1x8x16xf32>, vector<1x8x16xf32>, vector<1x8x16xf32>, vector<1x8x16xf32>, vector<1x8x16xf32>, vector<1x8x16xf32>, vector<1x8x16xf32>, vector<1x8x16xf32>, vector<1x8x16xf32>, vector<1x8x16xf32>, vector<1x8x16xf32> -> vector<16x8x16xf32>
    %312 = tpu.concatenate %270, %271, %272, %273, %274, %275, %276, %277, %278, %279, %280, %281, %282, %283, %284, %285 in 0 : vector<1x8x16xf32>, vector<1x8x16xf32>, vector<1x8x16xf32>, vector<1x8x16xf32>, vector<1x8x16xf32>, vector<1x8x16xf32>, vector<1x8x16xf32>, vector<1x8x16xf32>, vector<1x8x16xf32>, vector<1x8x16xf32>, vector<1x8x16xf32>, vector<1x8x16xf32>, vector<1x8x16xf32>, vector<1x8x16xf32>, vector<1x8x16xf32>, vector<1x8x16xf32> -> vector<16x8x16xf32>
    %313 = tpu.concatenate %286, %287, %288, %289, %290, %291, %292, %293, %294, %295, %296, %297, %298, %299, %300, %301 in 0 : vector<1x8x16xf32>, vector<1x8x16xf32>, vector<1x8x16xf32>, vector<1x8x16xf32>, vector<1x8x16xf32>, vector<1x8x16xf32>, vector<1x8x16xf32>, vector<1x8x16xf32>, vector<1x8x16xf32>, vector<1x8x16xf32>, vector<1x8x16xf32>, vector<1x8x16xf32>, vector<1x8x16xf32>, vector<1x8x16xf32>, vector<1x8x16xf32>, vector<1x8x16xf32> -> vector<16x8x16xf32>
    %314 = tpu.concatenate %302, %303, %304, %305, %306, %307, %308, %309 in 0 : vector<1x8x16xf32>, vector<1x8x16xf32>, vector<1x8x16xf32>, vector<1x8x16xf32>, vector<1x8x16xf32>, vector<1x8x16xf32>, vector<1x8x16xf32>, vector<1x8x16xf32> -> vector<8x8x16xf32>
    %315 = tpu.concatenate %310, %311, %312, %313, %314 in 0 : vector<16x8x16xf32>, vector<16x8x16xf32>, vector<16x8x16xf32>, vector<16x8x16xf32>, vector<8x8x16xf32> -> vector<72x8x16xf32>
    %316 = vector.shape_cast %315 : vector<72x8x16xf32> to vector<72x128xf32>
    %c0_351 = arith.constant 0 : index
    %c0_352 = arith.constant 0 : index
    %317 = vector.load %arg5[%c0_351, %c0_352] : memref<1x72xf32, #tpu.memory_space<vmem>>, vector<1x72xf32>
    %cst_353 = arith.constant dense<0.000000e+00> : vector<1x128xf32>
    %318 = tpu.matmul %317, %316, %cst_353 {dimension_numbers = #tpu.dot_dimension_numbers<[1], [0], [0], [1], [0, 0, 1, 1], [], []>} : vector<1x72xf32>, vector<72x128xf32>, vector<1x128xf32> -> vector<1x128xf32>
    %c0_354 = arith.constant 0 : index
    %c0_355 = arith.constant 0 : index
    %319 = vector.load %arg6[%c0_354, %c0_355] : memref<1x1xf32, #tpu.memory_space<vmem>>, vector<1x1xf32>
    %320 = vector.broadcast %319 : vector<1x1xf32> to vector<1x128xf32>
    %321 = arith.addf %318, %320 : vector<1x128xf32>
    %cst_356 = arith.constant 0.000000e+00 : f32
    %322 = vector.broadcast %cst_356 : f32 to vector<1x128xf32>
    %323 = arith.subf %322, %321 : vector<1x128xf32>
    %324 = math.exp %323 : vector<1x128xf32>
    %cst_357 = arith.constant 1.000000e+00 : f32
    %325 = vector.broadcast %cst_357 : f32 to vector<1x128xf32>
    %326 = arith.addf %325, %324 : vector<1x128xf32>
    %327 = tpu.reciprocal %326 {approx = true} : vector<1x128xf32> -> vector<1x128xf32>
    %c0_358 = arith.constant 0 : index
    %c0_359 = arith.constant 0 : index
    %c0_360 = arith.constant 0 : index
    %c0_361 = arith.constant 0 : index
    %328 = vector.load %arg7[%c0_358, %c0_359, %c0_360, %c0_361] : memref<1x1x1x128xf32, #tpu.memory_space<vmem>>, vector<1x1x1x128xf32>
    %329 = vector.shape_cast %328 : vector<1x1x1x128xf32> to vector<1x128xf32>
    %330 = vector.shape_cast %327 : vector<1x128xf32> to vector<1x1x1x128xf32>
    tpu.vector_store %arg7[%c0_358, %c0_359, %c0_360, %c0_361], %330 {strides = array<i32>} : memref<1x1x1x128xf32, #tpu.memory_space<vmem>>, vector<1x1x1x128xf32>,
    return
  }
  func.func @transform_0(%arg0: i32, %arg1: i32) -> (i32, i32, i32, i32, i32) {
    %c0_i32 = arith.constant 0 : i32
    %c0_i32_0 = arith.constant 0 : i32
    %c0_i32_1 = arith.constant 0 : i32
    %c0_i32_2 = arith.constant 0 : i32
    return %arg0, %arg1, %c0_i32, %c0_i32_0, %c0_i32_1 : i32, i32, i32, i32, i32
  }
  func.func @transform_1(%arg0: i32, %arg1: i32) -> (i32, i32) {
    %c0_i32 = arith.constant 0 : i32
    %c0_i32_0 = arith.constant 0 : i32
    %c0_i32_1 = arith.constant 0 : i32
    return %c0_i32, %c0_i32_0 : i32, i32
  }
  func.func @transform_2(%arg0: i32, %arg1: i32) -> (i32, i32) {
    %c0_i32 = arith.constant 0 : i32
    %c0_i32_0 = arith.constant 0 : i32
    %c0_i32_1 = arith.constant 0 : i32
    return %c0_i32, %c0_i32_0 : i32, i32
  }
  func.func @transform_3(%arg0: i32, %arg1: i32) -> (i32, i32) {
    %c0_i32 = arith.constant 0 : i32
    %c0_i32_0 = arith.constant 0 : i32
    %c0_i32_1 = arith.constant 0 : i32
    return %c0_i32, %c0_i32_0 : i32, i32
  }
  func.func @transform_4(%arg0: i32, %arg1: i32) -> (i32, i32) {
    %c0_i32 = arith.constant 0 : i32
    %c0_i32_0 = arith.constant 0 : i32
    %c0_i32_1 = arith.constant 0 : i32
    return %c0_i32, %c0_i32_0 : i32, i32
  }
  func.func @transform_5(%arg0: i32, %arg1: i32) -> (i32, i32, i32, i32) {
    %c0_i32 = arith.constant 0 : i32
    %c0_i32_0 = arith.constant 0 : i32
    %c0_i32_1 = arith.constant 0 : i32
    return %arg0, %arg1, %c0_i32, %c0_i32_0 : i32, i32, i32, i32
  }
}

</mosaic_0001>

<llo_original>
// kernel: tpu_custom_call.1
$region0: #{tpu_custom_call.1}
  #allocation0 [shape = 'u32[]', space=smem, size = 0x4, offset = 0x4, fixed_abs, tag = 'smem constant byte address 0x4 - core index']
  #allocation1 [shape = 'u32[144,128]{1,0:T(1,128)}', space=vmem, size = 0x12000, scoped, tag = 'internal scratch']
  #allocation2 [shape = 'f32[8,10,18]{2,1,0:T(8,128)}', space=vmem, size = 0x10000, scoped, tag = 'scratch operand']
  #allocation3 [shape = 'f32[1,1]{1,0:T(1,128)S(1)}', space=vmem, size = 0x200, scoped, tag = 'scoped memory for tpu_custom_call.1']
  %s0 = inlined_call_operand.vmem [shape: f32[16,2,3,12,20], index: 0, kind: input, shape index: {}]
  %s1 = inlined_call_operand.vmem [shape: f32[8,27], index: 1, kind: input, shape index: {}]
  %s2 = inlined_call_operand.vmem [shape: f32[8,1], index: 2, kind: input, shape index: {}]
  %s3 = inlined_call_operand.vmem [shape: f32[1,72], index: 3, kind: input, shape index: {}]
  %s4 = inlined_call_operand.<no memory space> [shape: f32[1,1], index: 4, kind: input, shape index: {}]
  %s5 = inlined_call_operand.hbm [shape: f32[16,2,1,128], index: 5, kind: output, shape index: {}]
  %s6 = sld [smem:[#allocation0]]
  $region53: #{tpu_custom_call.1} parent=0
    _
  %s8 = ssub.s32 1, %s6
  %s9 = scalar_select 0, %s8, %s6
  %v10 = vstv %s4
  %11 = vst [vmem:[#allocation3] sm:$0x1] %v10
  $region1: #{tpu_custom_call.1} parent=0
    #allocation4 [shape = 'u8[1024]{0}', space=vmem, size = 0x400, scoped, tag = 'output window, operand 0']
    #allocation5 [shape = 's32[2]{0}', space=sflag, size = 0x8, scoped, tag = 'scoped memory for tpu_custom_call.1']
    %12 = vsyncpa [#allocation5], 0
    %s13 = scalar_lea.sflag [#allocation5], 1
    %14 = vsyncpa %s13, 0
    loop: start=0, step=1, limit=34
    $region2: #{tpu_custom_call.1} parent=1 // loop_pre_header
      _
    $region3: #{tpu_custom_call.1} parent=1 // loop_header
      %s16 = sphi 0, %s20
      %p17 = scmp.ge.s32.totalorder %s16, 34
      %s23 = sphi 0, %s35
      %s24 = sphi 0, %s31
      %s25 = sphi 0, %s23
      %s26 = sphi 0, %s24
      %s27 = sphi 0, %s25
      %s28 = sphi 0, %s26
      %s40 = sphi 0, %s42
      %s43 = sphi 0, %s40
      %s44 = sphi 0, %s43
      %s60 = sphi 0, %s44
      %s64 = sphi 0, %s64
      %s66 = sphi 0, %s64
      %s67 = sphi 0, %s66
      %s81 = sphi 0, %s67
      %s85 = sphi 0, %s85
      %s87 = sphi 0, %s85
      %s88 = sphi 0, %s87
      %s102 = sphi 0, %s88
      %s106 = sphi 0, %s106
      %s108 = sphi 0, %s106
      %s109 = sphi 0, %s108
      %s123 = sphi 0, %s109
      %s127 = sphi 0, %s127
      %s129 = sphi 0, %s127
      %s130 = sphi 0, %s129
      %s144 = sphi 0, %s130
      %s152 = sphi 0, %s154
      %s155 = sphi 0, %s152
      %s156 = sphi 0, %s155
      %s172 = sphi 0, %s156
    $region4: #{tpu_custom_call.1} parent=1 // loop_header_branch
      %19 = sbr.rel (%p17) target = $region8
    $region5: #{tpu_custom_call.1} parent=1 // loop_body
      %s21 = ssub.s32 %s16, 1
      %s22 = ssub.s32 %s16, 2
      %s29 = sadd.s32 1, %s24
      %p30 = scmp.ge.s32.totalorder %s29, 2
      %s31 = scalar_select %p30, 0, %s29
      %s32 = sadd.s32 1, %s23
      %s33 = scalar_select %p30, %s32, %s23
      %p34 = scmp.ge.s32.totalorder %s33, 16
      %s35 = scalar_select %p34, 0, %s33
      %s36 = ssub.s32 %s23, %s35
      %s37 = ssub.s32 %s24, %s31
      %s38 = sor.u32 %s36, %s37
      %p39 = scmp.eq.s32.totalorder %s38, 0
      %s41 = sadd.s32 %s40, 1
      %s42 = scalar_select %p39, %s40, %s41
      %p45 = pneg %p39
      %p46 = scmp.eq.s32.totalorder %s16, 31
      %p47 = por %p45, %p46
      %p48 = scmp.ne.s32.totalorder %s40, %s43
      %p49 = scmp.eq.s32.totalorder %s16, 0
      %p50 = por %p48, %p49
      %p51 = scmp.ne.s32.totalorder %s40, %s43
      %p52 = scmp.eq.s32.totalorder %s21, 31
      %p53 = por %p51, %p52
      %p54 = scmp.ne.s32.totalorder %s43, %s44
      %p55 = scmp.eq.s32.totalorder %s21, 0
      %p56 = por %p54, %p55
      %p57 = scmp.ne.s32.totalorder %s43, %s44
      %p58 = scmp.eq.s32.totalorder %s22, 31
      %p59 = por %p57, %p58
      %p61 = scmp.ne.s32.totalorder %s44, %s60
      %p62 = scmp.eq.s32.totalorder %s22, 0
      %p63 = por %p61, %p62
      %s65 = sadd.s32 %s64, 1
      %p68 = scmp.eq.s32.totalorder %s16, 31
      %p69 = scmp.ne.s32.totalorder %s64, %s66
      %p70 = scmp.eq.s32.totalorder %s16, 0
      %p71 = por %p69, %p70
      %p72 = scmp.ne.s32.totalorder %s64, %s66
      %p73 = scmp.eq.s32.totalorder %s21, 31
      %p74 = por %p72, %p73
      %p75 = scmp.ne.s32.totalorder %s66, %s67
      %p76 = scmp.eq.s32.totalorder %s21, 0
      %p77 = por %p75, %p76
      %p78 = scmp.ne.s32.totalorder %s66, %s67
      %p79 = scmp.eq.s32.totalorder %s22, 31
      %p80 = por %p78, %p79
      %p82 = scmp.ne.s32.totalorder %s67, %s81
      %p83 = scmp.eq.s32.totalorder %s22, 0
      %p84 = por %p82, %p83
      %s86 = sadd.s32 %s85, 1
      %p89 = scmp.eq.s32.totalorder %s16, 31
      %p90 = scmp.ne.s32.totalorder %s85, %s87
      %p91 = scmp.eq.s32.totalorder %s16, 0
      %p92 = por %p90, %p91
      %p93 = scmp.ne.s32.totalorder %s85, %s87
      %p94 = scmp.eq.s32.totalorder %s21, 31
      %p95 = por %p93, %p94
      %p96 = scmp.ne.s32.totalorder %s87, %s88
      %p97 = scmp.eq.s32.totalorder %s21, 0
      %p98 = por %p96, %p97
      %p99 = scmp.ne.s32.totalorder %s87, %s88
      %p100 = scmp.eq.s32.totalorder %s22, 31
      %p101 = por %p99, %p100
      %p103 = scmp.ne.s32.totalorder %s88, %s102
      %p104 = scmp.eq.s32.totalorder %s22, 0
      %p105 = por %p103, %p104
      %s107 = sadd.s32 %s106, 1
      %p110 = scmp.eq.s32.totalorder %s16, 31
      %p111 = scmp.ne.s32.totalorder %s106, %s108
      %p112 = scmp.eq.s32.totalorder %s16, 0
      %p113 = por %p111, %p112
      %p114 = scmp.ne.s32.totalorder %s106, %s108
      %p115 = scmp.eq.s32.totalorder %s21, 31
      %p116 = por %p114, %p115
      %p117 = scmp.ne.s32.totalorder %s108, %s109
      %p118 = scmp.eq.s32.totalorder %s21, 0
      %p119 = por %p117, %p118
      %p120 = scmp.ne.s32.totalorder %s108, %s109
      %p121 = scmp.eq.s32.totalorder %s22, 31
      %p122 = por %p120, %p121
      %p124 = scmp.ne.s32.totalorder %s109, %s123
      %p125 = scmp.eq.s32.totalorder %s22, 0
      %p126 = por %p124, %p125
      %s128 = sadd.s32 %s127, 1
      %p131 = scmp.eq.s32.totalorder %s16, 31
      %p132 = scmp.ne.s32.totalorder %s127, %s129
      %p133 = scmp.eq.s32.totalorder %s16, 0
      %p134 = por %p132, %p133
      %p135 = scmp.ne.s32.totalorder %s127, %s129
      %p136 = scmp.eq.s32.totalorder %s21, 31
      %p137 = por %p135, %p136
      %p138 = scmp.ne.s32.totalorder %s129, %s130
      %p139 = scmp.eq.s32.totalorder %s21, 0
      %p140 = por %p138, %p139
      %p141 = scmp.ne.s32.totalorder %s129, %s130
      %p142 = scmp.eq.s32.totalorder %s22, 31
      %p143 = por %p141, %p142
      %p145 = scmp.ne.s32.totalorder %s130, %s144
      %p146 = scmp.eq.s32.totalorder %s22, 0
      %p147 = por %p145, %p146
      %s148 = ssub.s32 %s23, %s35
      %s149 = ssub.s32 %s24, %s31
      %s150 = sor.u32 %s148, %s149
      %p151 = scmp.eq.s32.totalorder %s150, 0
      %s153 = sadd.s32 %s152, 1
      %s154 = scalar_select %p151, %s152, %s153
      %p157 = pneg %p151
      %p158 = scmp.eq.s32.totalorder %s16, 31
      %p159 = por %p157, %p158
      %p160 = scmp.ne.s32.totalorder %s152, %s155
      %p161 = scmp.eq.s32.totalorder %s16, 0
      %p162 = por %p160, %p161
      %p163 = scmp.ne.s32.totalorder %s152, %s155
      %p164 = scmp.eq.s32.totalorder %s21, 31
      %p165 = por %p163, %p164
      %p166 = scmp.ne.s32.totalorder %s155, %s156
      %p167 = scmp.eq.s32.totalorder %s21, 0
      %p168 = por %p166, %p167
      %p169 = scmp.ne.s32.totalorder %s155, %s156
      %p170 = scmp.eq.s32.totalorder %s22, 31
      %p171 = por %p169, %p170
      %p173 = scmp.ne.s32.totalorder %s156, %s172
      %p174 = scmp.eq.s32.totalorder %s22, 0
      %p175 = por %p173, %p174
      %p176 = scmp.le.s32.totalorder 1, %s16
      %p177 = scmp.lt.s32.totalorder %s16, 33
      %p178 = pnand %p176, %p177
      %p179 = pneg %p178
      // Predicated region
      $region9: #{tpu_custom_call.1} parent=5 // pred_check
        _
      $region10: #{tpu_custom_call.1} parent=5 // pred_check_branch
        %181 = sbr.rel (%p178) target = $region12
      $region11: #{tpu_custom_call.1} parent=5 // pred_region
        %s182 = ssub.s32 %s16, 1
        // Predicated region
        $region13: #{tpu_custom_call.1} parent=11 // pred_check
          %p183 = pneg %p77
        $region14: #{tpu_custom_call.1} parent=11 // pred_check_branch
          %185 = sbr.rel (%p183) target = $region16
        $region15: #{tpu_custom_call.1} parent=11 // pred_region
          _
        $region16: #{tpu_custom_call.1} parent=11 // pred_fallthru
          _
        // Predicated region
        $region17: #{tpu_custom_call.1} parent=11 // pred_check
          %p186 = pneg %p98
        $region18: #{tpu_custom_call.1} parent=11 // pred_check_branch
          %188 = sbr.rel (%p186) target = $region20
        $region19: #{tpu_custom_call.1} parent=11 // pred_region
          _
        $region20: #{tpu_custom_call.1} parent=11 // pred_fallthru
          _
        // Predicated region
        $region21: #{tpu_custom_call.1} parent=11 // pred_check
          %p189 = pneg %p119
        $region22: #{tpu_custom_call.1} parent=11 // pred_check_branch
          %191 = sbr.rel (%p189) target = $region24
        $region23: #{tpu_custom_call.1} parent=11 // pred_region
          _
        $region24: #{tpu_custom_call.1} parent=11 // pred_fallthru
          _
        // Predicated region
        $region25: #{tpu_custom_call.1} parent=11 // pred_check
          %p192 = pneg %p140
        $region26: #{tpu_custom_call.1} parent=11 // pred_check_branch
          %194 = sbr.rel (%p192) target = $region28
        $region27: #{tpu_custom_call.1} parent=11 // pred_region
          _
        $region28: #{tpu_custom_call.1} parent=11 // pred_fallthru
          _
      $region12: #{tpu_custom_call.1} parent=5 // pred_fallthru
        _
      %p195 = scmp.lt.s32.totalorder %s16, 32
      // Predicated region
      $region29: #{tpu_custom_call.1} parent=5 // pred_check
        %p196 = pneg %p195
      $region30: #{tpu_custom_call.1} parent=5 // pred_check_branch
        %198 = sbr.rel (%p196) target = $region32
      $region31: #{tpu_custom_call.1} parent=5 // pred_region
        // Predicated region
        $region33: #{tpu_custom_call.1} parent=31 // pred_check
          %p199 = pneg %p50
        $region34: #{tpu_custom_call.1} parent=31 // pred_check_branch
          %201 = sbr.rel (%p199) target = $region36
        $region35: #{tpu_custom_call.1} parent=31 // pred_region
          %p202 = scmp.lt.s32.totalorder %s23, 15
          %s203 = scalar_select %p202, %s23, 15
          %p204 = scmp.lt.s32.totalorder %s24, 1
          %s205 = scalar_select %p204, %s24, 1
          %s206 = smul.addr %s205, 6
          %s207 = smul.addr %s203, 12
          %s208 = sadd.s32 %s206, %s207
          %s209 = smul.addr %s208, 8
          %s210 = scalar_lea.vmem %s0, %s209
        $region36: #{tpu_custom_call.1} parent=31 // pred_fallthru
          _
      $region32: #{tpu_custom_call.1} parent=5 // pred_fallthru
        _
      %p211 = scmp.le.s32.totalorder 1, %s16
      %p212 = scmp.lt.s32.totalorder %s16, 33
      %p213 = pnand %p211, %p212
      %p214 = pneg %p213
      // Predicated region
      $region37: #{tpu_custom_call.1} parent=5 // pred_check
        _
      $region38: #{tpu_custom_call.1} parent=5 // pred_check_branch
        %216 = sbr.rel (%p213) target = $region40
      $region39: #{tpu_custom_call.1} parent=5 // pred_region
        %s217 = ssub.s32 %s16, 1
        %p218 = scmp.lt.s32.totalorder %s25, 15
        %s219 = scalar_select %p218, %s25, 15
        %p220 = scmp.lt.s32.totalorder %s26, 1
        %s221 = scalar_select %p220, %s26, 1
        %s222 = smul.addr %s221, 6
        %s223 = smul.addr %s219, 12
        %s224 = sadd.s32 %s222, %s223
        %s225 = smul.addr %s224, 8
        %s226 = scalar_lea.vmem %s0, %s225
        %p227 = pneg %p56
        %p228 = pneg %p53
        %p229 = pneg %p77
        %p230 = pneg %p74
        %p231 = pneg %p98
        %p232 = pneg %p95
        %p233 = pneg %p119
        %p234 = pneg %p116
        %p235 = pneg %p140
        %p236 = pneg %p137
        %p237 = pneg %p168
        %p238 = pneg %p165
        %s239 = sand.u32 %s155, 1
        %s240 = scalar_lea.sflag [#allocation5], %s239
        %s241 = sand.u32 %s155, 1
        %s242 = scalar_lea.vmem [#allocation4], %s241
        %p243 = scmp.lt.s32.totalorder %s25, 15
        %s244 = scalar_select %p243, %s25, 15
        %p245 = scmp.lt.s32.totalorder %s26, 1
        %s246 = scalar_select %p245, %s26, 1
        %s247 = smul.addr %s246, 6
        %s248 = smul.addr %s244, 12
        %s249 = sadd.s32 %s247, %s248
        %s250 = smul.addr %s249, 8
        %s251 = scalar_lea.vmem %s0, %s250
        %v252 = vld [vmem:[%s251] sm:$0xff]
        %v253 = vld [vmem:[%s251 + $0x8] sm:$0x3]
        %v254 = vld [vmem:[%s251 + $0x1] sm:$0xff]
        %v255 = vld [vmem:[%s251 + $0x9] sm:$0x3]
        %v256 = vld [vmem:[%s251 + $0x2] sm:$0xff]
        %v257 = vld [vmem:[%s251 + $0xa] sm:$0x3]
        %s258 = scalar_lea.vmem %s251, 16
        %v259 = vld [vmem:[%s258] sm:$0xff]
        %v260 = vld [vmem:[%s258 + $0x8] sm:$0x3]
        %v261 = vld [vmem:[%s258 + $0x1] sm:$0xff]
        %v262 = vld [vmem:[%s258 + $0x9] sm:$0x3]
        %v263 = vld [vmem:[%s258 + $0x2] sm:$0xff]
        %v264 = vld [vmem:[%s258 + $0xa] sm:$0x3]
        %s265 = scalar_lea.vmem %s251, 32
        %v266 = vld [vmem:[%s265] sm:$0xff]
        %v267 = vld [vmem:[%s265 + $0x8] sm:$0x3]
        %v268 = vld [vmem:[%s265 + $0x1] sm:$0xff]
        %v269 = vld [vmem:[%s265 + $0x9] sm:$0x3]
        %v270 = vld [vmem:[%s265 + $0x2] sm:$0xff]
        %v271 = vld [vmem:[%s265 + $0xa] sm:$0x3]
        %274 = vrot.lane.b32.xlu0 %v252, 127
        %v275 = vpop.permute.xlu0 %274
        %276 = vrot.lane.b32.xlu0 %v253, 127
        %v277 = vpop.permute.xlu0 %276
        %280 = vrot.lane.b32.xlu0 %v252, 126
        %v281 = vpop.permute.xlu0 %280
        %282 = vrot.lane.b32.xlu0 %v253, 126
        %v283 = vpop.permute.xlu0 %282
        %288 = vrot.lane.b32.xlu0 %v254, 127
        %v289 = vpop.permute.xlu0 %288
        %290 = vrot.lane.b32.xlu0 %v255, 127
        %v291 = vpop.permute.xlu0 %290
        %294 = vrot.lane.b32.xlu0 %v254, 126
        %v295 = vpop.permute.xlu0 %294
        %296 = vrot.lane.b32.xlu0 %v255, 126
        %v297 = vpop.permute.xlu0 %296
        %302 = vrot.lane.b32.xlu0 %v256, 127
        %v303 = vpop.permute.xlu0 %302
        %304 = vrot.lane.b32.xlu0 %v257, 127
        %v305 = vpop.permute.xlu0 %304
        %308 = vrot.lane.b32.xlu0 %v256, 126
        %v309 = vpop.permute.xlu0 %308
        %310 = vrot.lane.b32.xlu0 %v257, 126
        %v311 = vpop.permute.xlu0 %310
        %316 = vrot.lane.b32.xlu0 %v259, 127
        %v317 = vpop.permute.xlu0 %316
        %318 = vrot.lane.b32.xlu0 %v260, 127
        %v319 = vpop.permute.xlu0 %318
        %322 = vrot.lane.b32.xlu0 %v259, 126
        %v323 = vpop.permute.xlu0 %322
        %324 = vrot.lane.b32.xlu0 %v260, 126
        %v325 = vpop.permute.xlu0 %324
        %330 = vrot.lane.b32.xlu0 %v261, 127
        %v331 = vpop.permute.xlu0 %330
        %332 = vrot.lane.b32.xlu0 %v262, 127
        %v333 = vpop.permute.xlu0 %332
        %336 = vrot.lane.b32.xlu0 %v261, 126
        %v337 = vpop.permute.xlu0 %336
        %338 = vrot.lane.b32.xlu0 %v262, 126
        %v339 = vpop.permute.xlu0 %338
        %344 = vrot.lane.b32.xlu0 %v263, 127
        %v345 = vpop.permute.xlu0 %344
        %346 = vrot.lane.b32.xlu0 %v264, 127
        %v347 = vpop.permute.xlu0 %346
        %350 = vrot.lane.b32.xlu0 %v266, 1
        %v351 = vpop.permute.xlu0 %350
        %352 = vrot.lane.b32.xlu0 %v267, 1
        %v353 = vpop.permute.xlu0 %352
        %354 = vrot.lane.b32.xlu0 %v266, 127
        %v355 = vpop.permute.xlu0 %354
        %356 = vrot.lane.b32.xlu0 %v267, 127
        %v357 = vpop.permute.xlu0 %356
        %360 = vrot.lane.b32.xlu0 %v268, 1
        %v361 = vpop.permute.xlu0 %360
        %362 = vrot.lane.b32.xlu0 %v269, 1
        %v363 = vpop.permute.xlu0 %362
        %364 = vrot.lane.b32.xlu0 %v268, 127
        %v365 = vpop.permute.xlu0 %364
        %366 = vrot.lane.b32.xlu0 %v269, 127
        %v367 = vpop.permute.xlu0 %366
        %370 = vrot.lane.b32.xlu0 %v270, 1
        %v371 = vpop.permute.xlu0 %370
        %372 = vrot.lane.b32.xlu0 %v271, 1
        %v373 = vpop.permute.xlu0 %372
        %374 = vrot.lane.b32.xlu0 %v270, 127
        %v375 = vpop.permute.xlu0 %374
        %376 = vrot.lane.b32.xlu0 %v271, 127
        %v377 = vpop.permute.xlu0 %376
        %378 = vrot.lane.b32.xlu0 %v345, 127
        %v379 = vpop.permute.xlu0 %378
        %380 = vrot.lane.b32.xlu0 %v347, 127
        %v381 = vpop.permute.xlu0 %380
        %382 = vrot.lane.b32.xlu0 %v351, 127
        %v383 = vpop.permute.xlu0 %382
        %384 = vrot.lane.b32.xlu0 %v353, 127
        %v385 = vpop.permute.xlu0 %384
        %386 = vrot.lane.b32.xlu0 %v355, 127
        %v387 = vpop.permute.xlu0 %386
        %388 = vrot.lane.b32.xlu0 %v357, 127
        %v389 = vpop.permute.xlu0 %388
        %390 = vrot.lane.b32.xlu0 %v361, 127
        %v391 = vpop.permute.xlu0 %390
        %392 = vrot.lane.b32.xlu0 %v363, 127
        %v393 = vpop.permute.xlu0 %392
        %394 = vrot.lane.b32.xlu0 %v365, 127
        %v395 = vpop.permute.xlu0 %394
        %396 = vrot.lane.b32.xlu0 %v367, 127
        %v397 = vpop.permute.xlu0 %396
        %398 = vrot.lane.b32.xlu0 %v371, 127
        %v399 = vpop.permute.xlu0 %398
        %400 = vrot.lane.b32.xlu0 %v373, 127
        %v401 = vpop.permute.xlu0 %400
        %402 = vrot.lane.b32.xlu0 %v375, 127
        %v403 = vpop.permute.xlu0 %402
        %404 = vrot.lane.b32.xlu0 %v377, 127
        %v405 = vpop.permute.xlu0 %404
        %v427 = vcombine.low %v252, %v281
        %v428 = vcombine.high %v252, %v281
        %v430 = vunpack.c.l.s4 1983009808
        %v431 = vunpack.c.0.s8 %v430
        %v432 = vlaneseq
        %v433 = vshrl.u32 %v432, 7
        %v434 = vsub.s32 %v431, %v433
        %v435 = vrot.slane %v427, %v434
        %v437 = vunpack.c.l.s4 1983009808
        %v438 = vunpack.c.0.s8 %v437
        %v439 = vlaneseq
        %v440 = vshrl.u32 %v439, 7
        %v441 = vsub.s32 %v438, %v440
        %v442 = vrot.slane %v428, %v441
        %v443 = vcombine.low %v275, %v254
        %v444 = vcombine.high %v275, %v254
        %v446 = vunpack.c.l.s4 1983009808
        %v447 = vunpack.c.0.s8 %v446
        %v448 = vlaneseq
        %v449 = vshrl.u32 %v448, 7
        %v450 = vsub.s32 %v447, %v449
        %v451 = vrot.slane %v443, %v450
        %v453 = vunpack.c.l.s4 1983009808
        %v454 = vunpack.c.0.s8 %v453
        %v455 = vlaneseq
        %v456 = vshrl.u32 %v455, 7
        %v457 = vsub.s32 %v454, %v456
        %v458 = vrot.slane %v444, %v457
        %v459 = vcombine.low %v289, %v256
        %v460 = vcombine.high %v289, %v256
        %v462 = vunpack.c.l.s4 1983009808
        %v463 = vunpack.c.0.s8 %v462
        %v464 = vlaneseq
        %v465 = vshrl.u32 %v464, 7
        %v466 = vsub.s32 %v463, %v465
        %v467 = vrot.slane %v459, %v466
        %v469 = vunpack.c.l.s4 1983009808
        %v470 = vunpack.c.0.s8 %v469
        %v471 = vlaneseq
        %v472 = vshrl.u32 %v471, 7
        %v473 = vsub.s32 %v470, %v472
        %v474 = vrot.slane %v460, %v473
        %v475 = vcombine.low %v295, %v303
        %v476 = vcombine.high %v295, %v303
        %v478 = vunpack.c.l.s4 1983009808
        %v479 = vunpack.c.0.s8 %v478
        %v480 = vlaneseq
        %v481 = vshrl.u32 %v480, 7
        %v482 = vsub.s32 %v479, %v481
        %v483 = vrot.slane %v475, %v482
        %v485 = vunpack.c.l.s4 1983009808
        %v486 = vunpack.c.0.s8 %v485
        %v487 = vlaneseq
        %v488 = vshrl.u32 %v487, 7
        %v489 = vsub.s32 %v486, %v488
        %v490 = vrot.slane %v476, %v489
        %v491 = vcombine.low %v435, %v451
        %v492 = vcombine.high %v435, %v451
        %v494 = vunpack.c.l.s4 1934713408
        %v495 = vunpack.c.0.s8 %v494
        %v496 = vlaneseq
        %v497 = vshrl.u32 %v496, 7
        %v498 = vsub.s32 %v495, %v497
        %v499 = vrot.slane %v491, %v498
        %v501 = vunpack.c.l.s4 1934713408
        %v502 = vunpack.c.0.s8 %v501
        %v503 = vlaneseq
        %v504 = vshrl.u32 %v503, 7
        %v505 = vsub.s32 %v502, %v504
        %v506 = vrot.slane %v492, %v505
        %v507 = vcombine.low %v442, %v458
        %v508 = vcombine.high %v442, %v458
        %v510 = vunpack.c.l.s4 1934713408
        %v511 = vunpack.c.0.s8 %v510
        %v512 = vlaneseq
        %v513 = vshrl.u32 %v512, 7
        %v514 = vsub.s32 %v511, %v513
        %v515 = vrot.slane %v507, %v514
        %v517 = vunpack.c.l.s4 1934713408
        %v518 = vunpack.c.0.s8 %v517
        %v519 = vlaneseq
        %v520 = vshrl.u32 %v519, 7
        %v521 = vsub.s32 %v518, %v520
        %v522 = vrot.slane %v508, %v521
        %v523 = vcombine.low %v467, %v483
        %v524 = vcombine.high %v467, %v483
        %v526 = vunpack.c.l.s4 1934713408
        %v527 = vunpack.c.0.s8 %v526
        %v528 = vlaneseq
        %v529 = vshrl.u32 %v528, 7
        %v530 = vsub.s32 %v527, %v529
        %v531 = vrot.slane %v523, %v530
        %v533 = vunpack.c.l.s4 1934713408
        %v534 = vunpack.c.0.s8 %v533
        %v535 = vlaneseq
        %v536 = vshrl.u32 %v535, 7
        %v537 = vsub.s32 %v534, %v536
        %v538 = vrot.slane %v524, %v537
        %v539 = vcombine.low %v474, %v490
        %v540 = vcombine.high %v474, %v490
        %v542 = vunpack.c.l.s4 1934713408
        %v543 = vunpack.c.0.s8 %v542
        %v544 = vlaneseq
        %v545 = vshrl.u32 %v544, 7
        %v546 = vsub.s32 %v543, %v545
        %v547 = vrot.slane %v539, %v546
        %v549 = vunpack.c.l.s4 1934713408
        %v550 = vunpack.c.0.s8 %v549
        %v551 = vlaneseq
        %v552 = vshrl.u32 %v551, 7
        %v553 = vsub.s32 %v550, %v552
        %v554 = vrot.slane %v540, %v553
        %v555 = vcombine.low %v499, %v531
        %v556 = vcombine.high %v499, %v531
        %v557 = vcombine.low %v506, %v538
        %v558 = vcombine.high %v506, %v538
        %v559 = vcombine.low %v515, %v547
        %v560 = vcombine.high %v515, %v547
        %v561 = vcombine.low %v522, %v554
        %v562 = vcombine.high %v522, %v554
        %v563 = vcombine.low %v309, %v317
        %v564 = vcombine.high %v309, %v317
        %v566 = vunpack.c.l.s4 1983009808
        %v567 = vunpack.c.0.s8 %v566
        %v568 = vlaneseq
        %v569 = vshrl.u32 %v568, 7
        %v570 = vsub.s32 %v567, %v569
        %v571 = vrot.slane %v563, %v570
        %v573 = vunpack.c.l.s4 1983009808
        %v574 = vunpack.c.0.s8 %v573
        %v575 = vlaneseq
        %v576 = vshrl.u32 %v575, 7
        %v577 = vsub.s32 %v574, %v576
        %v578 = vrot.slane %v564, %v577
        %v579 = vcombine.low %v259, %v323
        %v580 = vcombine.high %v259, %v323
        %v582 = vunpack.c.l.s4 1983009808
        %v583 = vunpack.c.0.s8 %v582
        %v584 = vlaneseq
        %v585 = vshrl.u32 %v584, 7
        %v586 = vsub.s32 %v583, %v585
        %v587 = vrot.slane %v579, %v586
        %v589 = vunpack.c.l.s4 1983009808
        %v590 = vunpack.c.0.s8 %v589
        %v591 = vlaneseq
        %v592 = vshrl.u32 %v591, 7
        %v593 = vsub.s32 %v590, %v592
        %v594 = vrot.slane %v580, %v593
        %v595 = vcombine.low %v261, %v337
        %v596 = vcombine.high %v261, %v337
        %v598 = vunpack.c.l.s4 1983009808
        %v599 = vunpack.c.0.s8 %v598
        %v600 = vlaneseq
        %v601 = vshrl.u32 %v600, 7
        %v602 = vsub.s32 %v599, %v601
        %v603 = vrot.slane %v595, %v602
        %v605 = vunpack.c.l.s4 1983009808
        %v606 = vunpack.c.0.s8 %v605
        %v607 = vlaneseq
        %v608 = vshrl.u32 %v607, 7
        %v609 = vsub.s32 %v606, %v608
        %v610 = vrot.slane %v596, %v609
        %v611 = vcombine.low %v331, %v263
        %v612 = vcombine.high %v331, %v263
        %v614 = vunpack.c.l.s4 1983009808
        %v615 = vunpack.c.0.s8 %v614
        %v616 = vlaneseq
        %v617 = vshrl.u32 %v616, 7
        %v618 = vsub.s32 %v615, %v617
        %v619 = vrot.slane %v611, %v618
        %v621 = vunpack.c.l.s4 1983009808
        %v622 = vunpack.c.0.s8 %v621
        %v623 = vlaneseq
        %v624 = vshrl.u32 %v623, 7
        %v625 = vsub.s32 %v622, %v624
        %v626 = vrot.slane %v612, %v625
        %v627 = vcombine.low %v571, %v587
        %v628 = vcombine.high %v571, %v587
        %v630 = vunpack.c.l.s4 1934713408
        %v631 = vunpack.c.0.s8 %v630
        %v632 = vlaneseq
        %v633 = vshrl.u32 %v632, 7
        %v634 = vsub.s32 %v631, %v633
        %v635 = vrot.slane %v627, %v634
        %v637 = vunpack.c.l.s4 1934713408
        %v638 = vunpack.c.0.s8 %v637
        %v639 = vlaneseq
        %v640 = vshrl.u32 %v639, 7
        %v641 = vsub.s32 %v638, %v640
        %v642 = vrot.slane %v628, %v641
        %v643 = vcombine.low %v578, %v594
        %v644 = vcombine.high %v578, %v594
        %v646 = vunpack.c.l.s4 1934713408
        %v647 = vunpack.c.0.s8 %v646
        %v648 = vlaneseq
        %v649 = vshrl.u32 %v648, 7
        %v650 = vsub.s32 %v647, %v649
        %v651 = vrot.slane %v643, %v650
        %v653 = vunpack.c.l.s4 1934713408
        %v654 = vunpack.c.0.s8 %v653
        %v655 = vlaneseq
        %v656 = vshrl.u32 %v655, 7
        %v657 = vsub.s32 %v654, %v656
        %v658 = vrot.slane %v644, %v657
        %v659 = vcombine.low %v603, %v619
        %v660 = vcombine.high %v603, %v619
        %v662 = vunpack.c.l.s4 1934713408
        %v663 = vunpack.c.0.s8 %v662
        %v664 = vlaneseq
        %v665 = vshrl.u32 %v664, 7
        %v666 = vsub.s32 %v663, %v665
        %v667 = vrot.slane %v659, %v666
        %v669 = vunpack.c.l.s4 1934713408
        %v670 = vunpack.c.0.s8 %v669
        %v671 = vlaneseq
        %v672 = vshrl.u32 %v671, 7
        %v673 = vsub.s32 %v670, %v672
        %v674 = vrot.slane %v660, %v673
        %v675 = vcombine.low %v610, %v626
        %v676 = vcombine.high %v610, %v626
        %v678 = vunpack.c.l.s4 1934713408
        %v679 = vunpack.c.0.s8 %v678
        %v680 = vlaneseq
        %v681 = vshrl.u32 %v680, 7
        %v682 = vsub.s32 %v679, %v681
        %v683 = vrot.slane %v675, %v682
        %v685 = vunpack.c.l.s4 1934713408
        %v686 = vunpack.c.0.s8 %v685
        %v687 = vlaneseq
        %v688 = vshrl.u32 %v687, 7
        %v689 = vsub.s32 %v686, %v688
        %v690 = vrot.slane %v676, %v689
        %v691 = vcombine.low %v635, %v667
        %v692 = vcombine.high %v635, %v667
        %v693 = vcombine.low %v642, %v674
        %v694 = vcombine.high %v642, %v674
        %v695 = vcombine.low %v651, %v683
        %v696 = vcombine.high %v651, %v683
        %v697 = vcombine.low %v658, %v690
        %v698 = vcombine.high %v658, %v690
        %v699 = vcombine.low %v345, %v383
        %v700 = vcombine.high %v345, %v383
        %v702 = vunpack.c.l.s4 1983009808
        %v703 = vunpack.c.0.s8 %v702
        %v704 = vlaneseq
        %v705 = vshrl.u32 %v704, 7
        %v706 = vsub.s32 %v703, %v705
        %v707 = vrot.slane %v699, %v706
        %v709 = vunpack.c.l.s4 1983009808
        %v710 = vunpack.c.0.s8 %v709
        %v711 = vlaneseq
        %v712 = vshrl.u32 %v711, 7
        %v713 = vsub.s32 %v710, %v712
        %v714 = vrot.slane %v700, %v713
        %v715 = vcombine.low %v379, %v355
        %v716 = vcombine.high %v379, %v355
        %v718 = vunpack.c.l.s4 1983009808
        %v719 = vunpack.c.0.s8 %v718
        %v720 = vlaneseq
        %v721 = vshrl.u32 %v720, 7
        %v722 = vsub.s32 %v719, %v721
        %v723 = vrot.slane %v715, %v722
        %v725 = vunpack.c.l.s4 1983009808
        %v726 = vunpack.c.0.s8 %v725
        %v727 = vlaneseq
        %v728 = vshrl.u32 %v727, 7
        %v729 = vsub.s32 %v726, %v728
        %v730 = vrot.slane %v716, %v729
        %v731 = vcombine.low %v387, %v365
        %v732 = vcombine.high %v387, %v365
        %v734 = vunpack.c.l.s4 1983009808
        %v735 = vunpack.c.0.s8 %v734
        %v736 = vlaneseq
        %v737 = vshrl.u32 %v736, 7
        %v738 = vsub.s32 %v735, %v737
        %v739 = vrot.slane %v731, %v738
        %v741 = vunpack.c.l.s4 1983009808
        %v742 = vunpack.c.0.s8 %v741
        %v743 = vlaneseq
        %v744 = vshrl.u32 %v743, 7
        %v745 = vsub.s32 %v742, %v744
        %v746 = vrot.slane %v732, %v745
        %v747 = vcombine.low %v391, %v395
        %v748 = vcombine.high %v391, %v395
        %v750 = vunpack.c.l.s4 1983009808
        %v751 = vunpack.c.0.s8 %v750
        %v752 = vlaneseq
        %v753 = vshrl.u32 %v752, 7
        %v754 = vsub.s32 %v751, %v753
        %v755 = vrot.slane %v747, %v754
        %v757 = vunpack.c.l.s4 1983009808
        %v758 = vunpack.c.0.s8 %v757
        %v759 = vlaneseq
        %v760 = vshrl.u32 %v759, 7
        %v761 = vsub.s32 %v758, %v760
        %v762 = vrot.slane %v748, %v761
        %v763 = vcombine.low %v707, %v723
        %v764 = vcombine.high %v707, %v723
        %v766 = vunpack.c.l.s4 1934713408
        %v767 = vunpack.c.0.s8 %v766
        %v768 = vlaneseq
        %v769 = vshrl.u32 %v768, 7
        %v770 = vsub.s32 %v767, %v769
        %v771 = vrot.slane %v763, %v770
        %v773 = vunpack.c.l.s4 1934713408
        %v774 = vunpack.c.0.s8 %v773
        %v775 = vlaneseq
        %v776 = vshrl.u32 %v775, 7
        %v777 = vsub.s32 %v774, %v776
        %v778 = vrot.slane %v764, %v777
        %v779 = vcombine.low %v714, %v730
        %v780 = vcombine.high %v714, %v730
        %v782 = vunpack.c.l.s4 1934713408
        %v783 = vunpack.c.0.s8 %v782
        %v784 = vlaneseq
        %v785 = vshrl.u32 %v784, 7
        %v786 = vsub.s32 %v783, %v785
        %v787 = vrot.slane %v779, %v786
        %v789 = vunpack.c.l.s4 1934713408
        %v790 = vunpack.c.0.s8 %v789
        %v791 = vlaneseq
        %v792 = vshrl.u32 %v791, 7
        %v793 = vsub.s32 %v790, %v792
        %v794 = vrot.slane %v780, %v793
        %v795 = vcombine.low %v739, %v755
        %v796 = vcombine.high %v739, %v755
        %v798 = vunpack.c.l.s4 1934713408
        %v799 = vunpack.c.0.s8 %v798
        %v800 = vlaneseq
        %v801 = vshrl.u32 %v800, 7
        %v802 = vsub.s32 %v799, %v801
        %v803 = vrot.slane %v795, %v802
        %v805 = vunpack.c.l.s4 1934713408
        %v806 = vunpack.c.0.s8 %v805
        %v807 = vlaneseq
        %v808 = vshrl.u32 %v807, 7
        %v809 = vsub.s32 %v806, %v808
        %v810 = vrot.slane %v796, %v809
        %v811 = vcombine.low %v746, %v762
        %v812 = vcombine.high %v746, %v762
        %v814 = vunpack.c.l.s4 1934713408
        %v815 = vunpack.c.0.s8 %v814
        %v816 = vlaneseq
        %v817 = vshrl.u32 %v816, 7
        %v818 = vsub.s32 %v815, %v817
        %v819 = vrot.slane %v811, %v818
        %v821 = vunpack.c.l.s4 1934713408
        %v822 = vunpack.c.0.s8 %v821
        %v823 = vlaneseq
        %v824 = vshrl.u32 %v823, 7
        %v825 = vsub.s32 %v822, %v824
        %v826 = vrot.slane %v812, %v825
        %v827 = vcombine.low %v771, %v803
        %v828 = vcombine.high %v771, %v803
        %v829 = vcombine.low %v778, %v810
        %v830 = vcombine.high %v778, %v810
        %v831 = vcombine.low %v787, %v819
        %v832 = vcombine.high %v787, %v819
        %v833 = vcombine.low %v794, %v826
        %v834 = vcombine.high %v794, %v826
        %v835 = vcombine.low %v399, %v403
        %v836 = vcombine.high %v399, %v403
        %v838 = vunpack.c.l.s4 1983009808
        %v839 = vunpack.c.0.s8 %v838
        %v840 = vlaneseq
        %v841 = vshrl.u32 %v840, 7
        %v842 = vsub.s32 %v839, %v841
        %v843 = vrot.slane %v835, %v842
        %v845 = vunpack.c.l.s4 1983009808
        %v846 = vunpack.c.0.s8 %v845
        %v847 = vlaneseq
        %v848 = vshrl.u32 %v847, 7
        %v849 = vsub.s32 %v846, %v848
        %v850 = vrot.slane %v836, %v849
        %v851 = vcombine.high %v375, 0.0
        %v853 = vunpack.c.l.s4 1983009808
        %v854 = vunpack.c.0.s8 %v853
        %v855 = vlaneseq
        %v856 = vshrl.u32 %v855, 7
        %v857 = vsub.s32 %v854, %v856
        %v858 = vrot.slane %v375, %v857
        %v860 = vunpack.c.l.s4 1983009808
        %v861 = vunpack.c.0.s8 %v860
        %v862 = vlaneseq
        %v863 = vshrl.u32 %v862, 7
        %v864 = vsub.s32 %v861, %v863
        %v865 = vrot.slane %v851, %v864
        %v866 = vcombine.low %v843, %v858
        %v867 = vcombine.high %v843, %v858
        %v869 = vunpack.c.l.s4 1934713408
        %v870 = vunpack.c.0.s8 %v869
        %v871 = vlaneseq
        %v872 = vshrl.u32 %v871, 7
        %v873 = vsub.s32 %v870, %v872
        %v874 = vrot.slane %v866, %v873
        %v876 = vunpack.c.l.s4 1934713408
        %v877 = vunpack.c.0.s8 %v876
        %v878 = vlaneseq
        %v879 = vshrl.u32 %v878, 7
        %v880 = vsub.s32 %v877, %v879
        %v881 = vrot.slane %v867, %v880
        %v882 = vcombine.low %v850, %v865
        %v883 = vcombine.high %v850, %v865
        %v885 = vunpack.c.l.s4 1934713408
        %v886 = vunpack.c.0.s8 %v885
        %v887 = vlaneseq
        %v888 = vshrl.u32 %v887, 7
        %v889 = vsub.s32 %v886, %v888
        %v890 = vrot.slane %v882, %v889
        %v892 = vunpack.c.l.s4 1934713408
        %v893 = vunpack.c.0.s8 %v892
        %v894 = vlaneseq
        %v895 = vshrl.u32 %v894, 7
        %v896 = vsub.s32 %v893, %v895
        %v897 = vrot.slane %v883, %v896
        %v898 = vcombine.high %v874, 0.0
        %v899 = vcombine.high %v881, 0.0
        %v900 = vcombine.high %v890, 0.0
        %v901 = vcombine.high %v897, 0.0
        %v902 = vcombine.low %v253, %v283
        %v904 = vunpack.c.l.s4 1983009808
        %v905 = vunpack.c.0.s8 %v904
        %v906 = vlaneseq
        %v907 = vshrl.u32 %v906, 7
        %v908 = vsub.s32 %v905, %v907
        %v909 = vrot.slane %v902, %v908
        %v910 = vcombine.low %v277, %v255
        %v912 = vunpack.c.l.s4 1983009808
        %v913 = vunpack.c.0.s8 %v912
        %v914 = vlaneseq
        %v915 = vshrl.u32 %v914, 7
        %v916 = vsub.s32 %v913, %v915
        %v917 = vrot.slane %v910, %v916
        %v918 = vcombine.low %v291, %v257
        %v920 = vunpack.c.l.s4 1983009808
        %v921 = vunpack.c.0.s8 %v920
        %v922 = vlaneseq
        %v923 = vshrl.u32 %v922, 7
        %v924 = vsub.s32 %v921, %v923
        %v925 = vrot.slane %v918, %v924
        %v926 = vcombine.low %v297, %v305
        %v928 = vunpack.c.l.s4 1983009808
        %v929 = vunpack.c.0.s8 %v928
        %v930 = vlaneseq
        %v931 = vshrl.u32 %v930, 7
        %v932 = vsub.s32 %v929, %v931
        %v933 = vrot.slane %v926, %v932
        %v934 = vcombine.low %v909, %v917
        %v936 = vunpack.c.l.s4 1934713408
        %v937 = vunpack.c.0.s8 %v936
        %v938 = vlaneseq
        %v939 = vshrl.u32 %v938, 7
        %v940 = vsub.s32 %v937, %v939
        %v941 = vrot.slane %v934, %v940
        %v942 = vcombine.low %v925, %v933
        %v944 = vunpack.c.l.s4 1934713408
        %v945 = vunpack.c.0.s8 %v944
        %v946 = vlaneseq
        %v947 = vshrl.u32 %v946, 7
        %v948 = vsub.s32 %v945, %v947
        %v949 = vrot.slane %v942, %v948
        %v950 = vcombine.low %v941, %v949
        %v951 = vcombine.high %v941, %v949
        %v952 = vcombine.low %v311, %v319
        %v954 = vunpack.c.l.s4 1983009808
        %v955 = vunpack.c.0.s8 %v954
        %v956 = vlaneseq
        %v957 = vshrl.u32 %v956, 7
        %v958 = vsub.s32 %v955, %v957
        %v959 = vrot.slane %v952, %v958
        %v960 = vcombine.low %v260, %v325
        %v962 = vunpack.c.l.s4 1983009808
        %v963 = vunpack.c.0.s8 %v962
        %v964 = vlaneseq
        %v965 = vshrl.u32 %v964, 7
        %v966 = vsub.s32 %v963, %v965
        %v967 = vrot.slane %v960, %v966
        %v968 = vcombine.low %v262, %v339
        %v970 = vunpack.c.l.s4 1983009808
        %v971 = vunpack.c.0.s8 %v970
        %v972 = vlaneseq
        %v973 = vshrl.u32 %v972, 7
        %v974 = vsub.s32 %v971, %v973
        %v975 = vrot.slane %v968, %v974
        %v976 = vcombine.low %v333, %v264
        %v978 = vunpack.c.l.s4 1983009808
        %v979 = vunpack.c.0.s8 %v978
        %v980 = vlaneseq
        %v981 = vshrl.u32 %v980, 7
        %v982 = vsub.s32 %v979, %v981
        %v983 = vrot.slane %v976, %v982
        %v984 = vcombine.low %v959, %v967
        %v986 = vunpack.c.l.s4 1934713408
        %v987 = vunpack.c.0.s8 %v986
        %v988 = vlaneseq
        %v989 = vshrl.u32 %v988, 7
        %v990 = vsub.s32 %v987, %v989
        %v991 = vrot.slane %v984, %v990
        %v992 = vcombine.low %v975, %v983
        %v994 = vunpack.c.l.s4 1934713408
        %v995 = vunpack.c.0.s8 %v994
        %v996 = vlaneseq
        %v997 = vshrl.u32 %v996, 7
        %v998 = vsub.s32 %v995, %v997
        %v999 = vrot.slane %v992, %v998
        %v1000 = vcombine.low %v991, %v999
        %v1001 = vcombine.high %v991, %v999
        %v1002 = vcombine.low %v347, %v385
        %v1004 = vunpack.c.l.s4 1983009808
        %v1005 = vunpack.c.0.s8 %v1004
        %v1006 = vlaneseq
        %v1007 = vshrl.u32 %v1006, 7
        %v1008 = vsub.s32 %v1005, %v1007
        %v1009 = vrot.slane %v1002, %v1008
        %v1010 = vcombine.low %v381, %v357
        %v1012 = vunpack.c.l.s4 1983009808
        %v1013 = vunpack.c.0.s8 %v1012
        %v1014 = vlaneseq
        %v1015 = vshrl.u32 %v1014, 7
        %v1016 = vsub.s32 %v1013, %v1015
        %v1017 = vrot.slane %v1010, %v1016
        %v1018 = vcombine.low %v389, %v367
        %v1020 = vunpack.c.l.s4 1983009808
        %v1021 = vunpack.c.0.s8 %v1020
        %v1022 = vlaneseq
        %v1023 = vshrl.u32 %v1022, 7
        %v1024 = vsub.s32 %v1021, %v1023
        %v1025 = vrot.slane %v1018, %v1024
        %v1026 = vcombine.low %v393, %v397
        %v1028 = vunpack.c.l.s4 1983009808
        %v1029 = vunpack.c.0.s8 %v1028
        %v1030 = vlaneseq
        %v1031 = vshrl.u32 %v1030, 7
        %v1032 = vsub.s32 %v1029, %v1031
        %v1033 = vrot.slane %v1026, %v1032
        %v1034 = vcombine.low %v1009, %v1017
        %v1036 = vunpack.c.l.s4 1934713408
        %v1037 = vunpack.c.0.s8 %v1036
        %v1038 = vlaneseq
        %v1039 = vshrl.u32 %v1038, 7
        %v1040 = vsub.s32 %v1037, %v1039
        %v1041 = vrot.slane %v1034, %v1040
        %v1042 = vcombine.low %v1025, %v1033
        %v1044 = vunpack.c.l.s4 1934713408
        %v1045 = vunpack.c.0.s8 %v1044
        %v1046 = vlaneseq
        %v1047 = vshrl.u32 %v1046, 7
        %v1048 = vsub.s32 %v1045, %v1047
        %v1049 = vrot.slane %v1042, %v1048
        %v1050 = vcombine.low %v1041, %v1049
        %v1051 = vcombine.high %v1041, %v1049
        %v1052 = vcombine.low %v401, %v405
        %v1054 = vunpack.c.l.s4 1983009808
        %v1055 = vunpack.c.0.s8 %v1054
        %v1056 = vlaneseq
        %v1057 = vshrl.u32 %v1056, 7
        %v1058 = vsub.s32 %v1055, %v1057
        %v1059 = vrot.slane %v1052, %v1058
        %v1061 = vcombine.low %v1059, %v377
        %v1063 = vunpack.c.l.s4 1934713408
        %v1064 = vunpack.c.0.s8 %v1063
        %v1065 = vlaneseq
        %v1066 = vshrl.u32 %v1065, 7
        %v1067 = vsub.s32 %v1064, %v1066
        %v1068 = vrot.slane %v1061, %v1067
        %v1069 = vcombine.high %v1068, 0.0
        %1074 = vrot.lane.b32.xlu0 %v556, 18
        %v1075 = vpop.permute.xlu0 %1074
        %1076 = vrot.lane.b32.xlu0 %v692, 18
        %v1077 = vpop.permute.xlu0 %1076
        %1078 = vrot.lane.b32.xlu0 %v828, 18
        %v1079 = vpop.permute.xlu0 %1078
        %1080 = vrot.lane.b32.xlu0 %v898, 18
        %v1081 = vpop.permute.xlu0 %1080
        %1090 = vrot.lane.b32.xlu0 %v557, 36
        %v1091 = vpop.permute.xlu0 %1090
        %1092 = vrot.lane.b32.xlu0 %v693, 36
        %v1093 = vpop.permute.xlu0 %1092
        %1094 = vrot.lane.b32.xlu0 %v829, 36
        %v1095 = vpop.permute.xlu0 %1094
        %1096 = vrot.lane.b32.xlu0 %v881, 36
        %v1097 = vpop.permute.xlu0 %1096
        %1106 = vrot.lane.b32.xlu0 %v558, 54
        %v1107 = vpop.permute.xlu0 %1106
        %1108 = vrot.lane.b32.xlu0 %v694, 54
        %v1109 = vpop.permute.xlu0 %1108
        %1110 = vrot.lane.b32.xlu0 %v830, 54
        %v1111 = vpop.permute.xlu0 %1110
        %1112 = vrot.lane.b32.xlu0 %v899, 54
        %v1113 = vpop.permute.xlu0 %1112
        %1122 = vrot.lane.b32.xlu0 %v559, 72
        %v1123 = vpop.permute.xlu0 %1122
        %1124 = vrot.lane.b32.xlu0 %v695, 72
        %v1125 = vpop.permute.xlu0 %1124
        %1126 = vrot.lane.b32.xlu0 %v831, 72
        %v1127 = vpop.permute.xlu0 %1126
        %1128 = vrot.lane.b32.xlu0 %v890, 72
        %v1129 = vpop.permute.xlu0 %1128
        %1138 = vrot.lane.b32.xlu0 %v560, 90
        %v1139 = vpop.permute.xlu0 %1138
        %1140 = vrot.lane.b32.xlu0 %v696, 90
        %v1141 = vpop.permute.xlu0 %1140
        %1142 = vrot.lane.b32.xlu0 %v832, 90
        %v1143 = vpop.permute.xlu0 %1142
        %1144 = vrot.lane.b32.xlu0 %v900, 90
        %v1145 = vpop.permute.xlu0 %1144
        %1154 = vrot.lane.b32.xlu0 %v561, 108
        %v1155 = vpop.permute.xlu0 %1154
        %1156 = vrot.lane.b32.xlu0 %v697, 108
        %v1157 = vpop.permute.xlu0 %1156
        %1158 = vrot.lane.b32.xlu0 %v833, 108
        %v1159 = vpop.permute.xlu0 %1158
        %1160 = vrot.lane.b32.xlu0 %v897, 108
        %v1161 = vpop.permute.xlu0 %1160
        %1170 = vrot.lane.b32.xlu0 %v562, 126
        %v1171 = vpop.permute.xlu0 %1170
        %1172 = vrot.lane.b32.xlu0 %v698, 126
        %v1173 = vpop.permute.xlu0 %1172
        %1174 = vrot.lane.b32.xlu0 %v834, 126
        %v1175 = vpop.permute.xlu0 %1174
        %1176 = vrot.lane.b32.xlu0 %v901, 126
        %v1177 = vpop.permute.xlu0 %1176
        %1186 = vrot.lane.b32.xlu0 %v950, 16
        %v1187 = vpop.permute.xlu0 %1186
        %1188 = vrot.lane.b32.xlu0 %v1000, 16
        %v1189 = vpop.permute.xlu0 %1188
        %1190 = vrot.lane.b32.xlu0 %v1050, 16
        %v1191 = vpop.permute.xlu0 %1190
        %1192 = vrot.lane.b32.xlu0 %v1068, 16
        %v1193 = vpop.permute.xlu0 %1192
        %1202 = vrot.lane.b32.xlu0 %v951, 34
        %v1203 = vpop.permute.xlu0 %1202
        %1204 = vrot.lane.b32.xlu0 %v1001, 34
        %v1205 = vpop.permute.xlu0 %1204
        %1206 = vrot.lane.b32.xlu0 %v1051, 34
        %v1207 = vpop.permute.xlu0 %1206
        %1208 = vrot.lane.b32.xlu0 %v1069, 34
        %v1209 = vpop.permute.xlu0 %1208
        %vm1214 = vcmask 146432
        %v1215 = vsel %vm1214, %v555, %v1075
        %v1216 = vsel %vm1214, %v691, %v1077
        %v1217 = vsel %vm1214, %v827, %v1079
        %v1218 = vsel %vm1214, %v874, %v1081
        %vm1219 = vcmask 293888
        %v1220 = vsel %vm1219, %v1215, %v1091
        %v1221 = vsel %vm1219, %v1216, %v1093
        %v1222 = vsel %vm1219, %v1217, %v1095
        %v1223 = vsel %vm1219, %v1218, %v1097
        %vm1224 = vcmask 441344
        %v1225 = vsel %vm1224, %v1220, %v1107
        %v1226 = vsel %vm1224, %v1221, %v1109
        %v1227 = vsel %vm1224, %v1222, %v1111
        %v1228 = vsel %vm1224, %v1223, %v1113
        %vm1229 = vcmask 588800
        %v1230 = vsel %vm1229, %v1225, %v1123
        %v1231 = vsel %vm1229, %v1226, %v1125
        %v1232 = vsel %vm1229, %v1227, %v1127
        %v1233 = vsel %vm1229, %v1228, %v1129
        %vm1234 = vcmask 736256
        %v1235 = vsel %vm1234, %v1230, %v1139
        %v1236 = vsel %vm1234, %v1231, %v1141
        %v1237 = vsel %vm1234, %v1232, %v1143
        %v1238 = vsel %vm1234, %v1233, %v1145
        %vm1239 = vcmask 883712
        %v1240 = vsel %vm1239, %v1235, %v1155
        %v1241 = vsel %vm1239, %v1236, %v1157
        %v1242 = vsel %vm1239, %v1237, %v1159
        %v1243 = vsel %vm1239, %v1238, %v1161
        %vm1244 = vcmask 1031168
        %v1245 = vsel %vm1244, %v1240, %v1171
        %v1246 = vsel %vm1244, %v1241, %v1173
        %v1247 = vsel %vm1244, %v1242, %v1175
        %v1248 = vsel %vm1244, %v1243, %v1177
        %vm1249 = vcmask 130048
        %v1250 = vsel %vm1249, %v1171, %v1187
        %v1251 = vsel %vm1249, %v1173, %v1189
        %v1252 = vsel %vm1249, %v1175, %v1191
        %v1253 = vsel %vm1249, %v1177, %v1193
        %vm1254 = vcmask 277504
        %v1255 = vsel %vm1254, %v1250, %v1203
        %v1256 = vsel %vm1254, %v1251, %v1205
        %v1257 = vsel %vm1254, %v1252, %v1207
        %v1258 = vsel %vm1254, %v1253, %v1209
        %v1259 = vld [vmem:[%s1] sm:$0xff]
        %v1260 = vld [vmem:[%s2] sm:$0xff]
        %1262 = vset.pattern.permute.xlu0 0
        %1263 = vperm.xlu0 %1262, %v1260
        %v1264 = vpop.permute.xlu0 %1263
        %vm1266 = vcmask 220160
        %v1268 = vsel %vm1266, %v1259, 0
        %vm1270 = vcmask 1042432
        %v1272 = vsel %vm1270, %v1248, 0
        %v1275 = vsel %vm1270, %v1258, 0
        %1277 = vmatprep.subr.mxu0 %v1255
        %1278 = vmatpush1.msra.mxu0 %v1245
        %1279 = vmatprep.subr.mxu0 %v1256
        %1280 = vmatpush1.msra.mxu0 %v1246
        %1281 = vmatprep.subr.mxu0 %v1257
        %1282 = vmatpush1.msra.mxu0 %v1247
        %1283 = vmatprep.subr.mxu0 %v1275
        %1284 = vmatpush1.msra.mxu0 %v1272
        %1285 = vmatprep.subr.mxu0 0.0
        %1286 = vmatpush1.msra.mxu0 0.0
        %1287 = vmatprep.subr.mxu0 0.0
        %1288 = vmatpush1.msra.mxu0 0.0
        %1289 = vmatprep.subr.mxu0 0.0
        %1290 = vmatpush1.msra.mxu0 0.0
        %1291 = vmatprep.subr.mxu0 0.0
        %1292 = vmatpush1.msra.mxu0 0.0
        %1293 = vmatprep.subr.mxu0 0.0
        %1294 = vmatpush1.msra.mxu0 0.0
        %1295 = vmatprep.subr.mxu0 0.0
        %1296 = vmatpush1.msra.mxu0 0.0
        %1297 = vmatprep.subr.mxu0 0.0
        %1298 = vmatpush1.msra.mxu0 0.0
        %1299 = vmatprep.subr.mxu0 0.0
        %1300 = vmatpush1.msra.mxu0 0.0
        %1301 = vmatprep.subr.mxu0 0.0
        %1302 = vmatpush1.msra.mxu0 0.0
        %1303 = vmatprep.subr.mxu0 0.0
        %1304 = vmatpush1.msra.mxu0 0.0
        %1305 = vmatprep.subr.mxu0 0.0
        %1306 = vmatpush1.msra.mxu0 0.0
        %1307 = vmatprep.subr.mxu0 0.0
        %1308 = vmatpush1.msra.mxu0 0.0
        %1309 = vmatprep.subr.mxu0 0.0
        %1310 = vmatpush1.msra.mxu0 0.0
        %1311 = vmatprep.subr.mxu0 0.0
        %1312 = vmatpush1.msra.mxu0 0.0
        %1313 = vmatprep.subr.mxu0 0.0
        %1314 = vmatpush1.msra.mxu0 0.0
        %1315 = vmatprep.subr.mxu0 0.0
        %1316 = vmatpush1.msra.mxu0 0.0
        %1317 = vmatprep.subr.mxu0 0.0
        %1318 = vmatpush1.msra.mxu0 0.0
        %1319 = vmatprep.subr.mxu0 0.0
        %1320 = vmatpush1.msra.mxu0 0.0
        %1321 = vmatprep.subr.mxu0 0.0
        %1322 = vmatpush1.msra.mxu0 0.0
        %1323 = vmatprep.subr.mxu0 0.0
        %1324 = vmatpush1.msra.mxu0 0.0
        %1325 = vmatprep.subr.mxu0 0.0
        %1326 = vmatpush1.msra.mxu0 0.0
        %1327 = vmatprep.subr.mxu0 0.0
        %1328 = vmatpush1.msra.mxu0 0.0
        %1329 = vmatprep.subr.mxu0 0.0
        %1330 = vmatpush1.msra.mxu0 0.0
        %1331 = vmatprep.subr.mxu0 0.0
        %1332 = vmatpush1.msra.mxu0 0.0
        %1333 = vmatprep.subr.mxu0 0.0
        %1334 = vmatpush1.msra.mxu0 0.0
        %1335 = vmatprep.subr.mxu0 0.0
        %1336 = vmatpush1.msra.mxu0 0.0
        %1337 = vmatprep.subr.mxu0 0.0
        %1338 = vmatpush1.msra.mxu0 0.0
        %1339 = vmatprep.subr.mxu0 0.0
        %1340 = vmatpush1.msra.mxu0 0.0
        %1341 = vmatprep.mubr.f32.mxu0 0.0
        %1342 = vmatmul.mubr.f32.gmra.mrb[0].mxu0 %v1268
        %v1343 = vpop.f32.mrb[0].mxu0
        %v1344 = vadd.f32 %v1264, %v1343
        %v1345 = vpop.f32.mrb[0].mxu0
        %v1346 = vadd.f32 %v1264, %v1345
        %1347 = vdwg.mxu0
        %v1348 = vmax.f32 %v1344, 0.0
        %v1349 = vmax.f32 %v1346, 0.0
        %1351 = vrot.lane.b32.xlu0 %v1348, 110
        %v1352 = vpop.permute.xlu0 %1351
        %1354 = vrot.lane.b32.xlu0 %v1348, 92
        %v1355 = vpop.permute.xlu0 %1354
        %1357 = vrot.lane.b32.xlu0 %v1348, 74
        %v1358 = vpop.permute.xlu0 %1357
        %1360 = vrot.lane.b32.xlu0 %v1348, 56
        %v1361 = vpop.permute.xlu0 %1360
        %1363 = vrot.lane.b32.xlu0 %v1348, 38
        %v1364 = vpop.permute.xlu0 %1363
        %1366 = vrot.lane.b32.xlu0 %v1348, 20
        %v1367 = vpop.permute.xlu0 %1366
        %1370 = vrot.lane.b32.xlu0 %v1348, 2
        %v1371 = vpop.permute.xlu0 %1370
        %1372 = vrot.lane.b32.xlu0 %v1349, 2
        %v1373 = vpop.permute.xlu0 %1372
        %vm1374 = vcmask 15360
        %v1375 = vsel %vm1374, %v1371, %v1373
        %1377 = vrot.lane.b32.xlu0 %v1349, 112
        %v1378 = vpop.permute.xlu0 %1377
        %1380 = vrot.lane.b32.xlu0 %v1349, 94
        %v1381 = vpop.permute.xlu0 %1380
        %v1383 = vcombine.low %v1348, %v1355
        %v1384 = vcombine.high %v1348, %v1355
        %v1386 = vunpack.c.l.s4 1983009808
        %v1387 = vunpack.c.0.s8 %v1386
        %v1388 = vlaneseq
        %v1389 = vshrl.u32 %v1388, 7
        %v1390 = vsub.s32 %v1387, %v1389
        %v1391 = vrot.slane %v1383, %v1390
        %v1393 = vunpack.c.l.s4 1983009808
        %v1394 = vunpack.c.0.s8 %v1393
        %v1395 = vlaneseq
        %v1396 = vshrl.u32 %v1395, 7
        %v1397 = vsub.s32 %v1394, %v1396
        %v1398 = vrot.slane %v1384, %v1397
        %v1399 = vcombine.low %v1352, %v1358
        %v1400 = vcombine.high %v1352, %v1358
        %v1402 = vunpack.c.l.s4 1983009808
        %v1403 = vunpack.c.0.s8 %v1402
        %v1404 = vlaneseq
        %v1405 = vshrl.u32 %v1404, 7
        %v1406 = vsub.s32 %v1403, %v1405
        %v1407 = vrot.slane %v1399, %v1406
        %v1409 = vunpack.c.l.s4 1983009808
        %v1410 = vunpack.c.0.s8 %v1409
        %v1411 = vlaneseq
        %v1412 = vshrl.u32 %v1411, 7
        %v1413 = vsub.s32 %v1410, %v1412
        %v1414 = vrot.slane %v1400, %v1413
        %v1415 = vcombine.low %v1361, %v1367
        %v1416 = vcombine.high %v1361, %v1367
        %v1418 = vunpack.c.l.s4 1983009808
        %v1419 = vunpack.c.0.s8 %v1418
        %v1420 = vlaneseq
        %v1421 = vshrl.u32 %v1420, 7
        %v1422 = vsub.s32 %v1419, %v1421
        %v1423 = vrot.slane %v1415, %v1422
        %v1425 = vunpack.c.l.s4 1983009808
        %v1426 = vunpack.c.0.s8 %v1425
        %v1427 = vlaneseq
        %v1428 = vshrl.u32 %v1427, 7
        %v1429 = vsub.s32 %v1426, %v1428
        %v1430 = vrot.slane %v1416, %v1429
        %v1431 = vcombine.low %v1364, %v1375
        %v1432 = vcombine.high %v1364, %v1375
        %v1434 = vunpack.c.l.s4 1983009808
        %v1435 = vunpack.c.0.s8 %v1434
        %v1436 = vlaneseq
        %v1437 = vshrl.u32 %v1436, 7
        %v1438 = vsub.s32 %v1435, %v1437
        %v1439 = vrot.slane %v1431, %v1438
        %v1441 = vunpack.c.l.s4 1983009808
        %v1442 = vunpack.c.0.s8 %v1441
        %v1443 = vlaneseq
        %v1444 = vshrl.u32 %v1443, 7
        %v1445 = vsub.s32 %v1442, %v1444
        %v1446 = vrot.slane %v1432, %v1445
        %v1447 = vcombine.low %v1391, %v1407
        %v1448 = vcombine.high %v1391, %v1407
        %v1450 = vunpack.c.l.s4 1934713408
        %v1451 = vunpack.c.0.s8 %v1450
        %v1452 = vlaneseq
        %v1453 = vshrl.u32 %v1452, 7
        %v1454 = vsub.s32 %v1451, %v1453
        %v1455 = vrot.slane %v1447, %v1454
        %v1457 = vunpack.c.l.s4 1934713408
        %v1458 = vunpack.c.0.s8 %v1457
        %v1459 = vlaneseq
        %v1460 = vshrl.u32 %v1459, 7
        %v1461 = vsub.s32 %v1458, %v1460
        %v1462 = vrot.slane %v1448, %v1461
        %v1463 = vcombine.low %v1398, %v1414
        %v1464 = vcombine.high %v1398, %v1414
        %v1466 = vunpack.c.l.s4 1934713408
        %v1467 = vunpack.c.0.s8 %v1466
        %v1468 = vlaneseq
        %v1469 = vshrl.u32 %v1468, 7
        %v1470 = vsub.s32 %v1467, %v1469
        %v1471 = vrot.slane %v1463, %v1470
        %v1473 = vunpack.c.l.s4 1934713408
        %v1474 = vunpack.c.0.s8 %v1473
        %v1475 = vlaneseq
        %v1476 = vshrl.u32 %v1475, 7
        %v1477 = vsub.s32 %v1474, %v1476
        %v1478 = vrot.slane %v1464, %v1477
        %v1479 = vcombine.low %v1423, %v1439
        %v1480 = vcombine.high %v1423, %v1439
        %v1482 = vunpack.c.l.s4 1934713408
        %v1483 = vunpack.c.0.s8 %v1482
        %v1484 = vlaneseq
        %v1485 = vshrl.u32 %v1484, 7
        %v1486 = vsub.s32 %v1483, %v1485
        %v1487 = vrot.slane %v1479, %v1486
        %v1489 = vunpack.c.l.s4 1934713408
        %v1490 = vunpack.c.0.s8 %v1489
        %v1491 = vlaneseq
        %v1492 = vshrl.u32 %v1491, 7
        %v1493 = vsub.s32 %v1490, %v1492
        %v1494 = vrot.slane %v1480, %v1493
        %v1495 = vcombine.low %v1430, %v1446
        %v1496 = vcombine.high %v1430, %v1446
        %v1498 = vunpack.c.l.s4 1934713408
        %v1499 = vunpack.c.0.s8 %v1498
        %v1500 = vlaneseq
        %v1501 = vshrl.u32 %v1500, 7
        %v1502 = vsub.s32 %v1499, %v1501
        %v1503 = vrot.slane %v1495, %v1502
        %v1505 = vunpack.c.l.s4 1934713408
        %v1506 = vunpack.c.0.s8 %v1505
        %v1507 = vlaneseq
        %v1508 = vshrl.u32 %v1507, 7
        %v1509 = vsub.s32 %v1506, %v1508
        %v1510 = vrot.slane %v1496, %v1509
        %v1511 = vcombine.low %v1455, %v1487
        %v1512 = vcombine.high %v1455, %v1487
        %v1513 = vcombine.low %v1462, %v1494
        %v1514 = vcombine.high %v1462, %v1494
        %v1515 = vcombine.low %v1471, %v1503
        %v1516 = vcombine.high %v1471, %v1503
        %v1517 = vcombine.low %v1478, %v1510
        %v1518 = vcombine.high %v1478, %v1510
        %v1519 = vcombine.high %v1378, 0.0
        %v1521 = vunpack.c.l.s4 1983009808
        %v1522 = vunpack.c.0.s8 %v1521
        %v1523 = vlaneseq
        %v1524 = vshrl.u32 %v1523, 7
        %v1525 = vsub.s32 %v1522, %v1524
        %v1526 = vrot.slane %v1378, %v1525
        %v1528 = vunpack.c.l.s4 1983009808
        %v1529 = vunpack.c.0.s8 %v1528
        %v1530 = vlaneseq
        %v1531 = vshrl.u32 %v1530, 7
        %v1532 = vsub.s32 %v1529, %v1531
        %v1533 = vrot.slane %v1519, %v1532
        %v1534 = vcombine.high %v1381, 0.0
        %v1536 = vunpack.c.l.s4 1983009808
        %v1537 = vunpack.c.0.s8 %v1536
        %v1538 = vlaneseq
        %v1539 = vshrl.u32 %v1538, 7
        %v1540 = vsub.s32 %v1537, %v1539
        %v1541 = vrot.slane %v1381, %v1540
        %v1543 = vunpack.c.l.s4 1983009808
        %v1544 = vunpack.c.0.s8 %v1543
        %v1545 = vlaneseq
        %v1546 = vshrl.u32 %v1545, 7
        %v1547 = vsub.s32 %v1544, %v1546
        %v1548 = vrot.slane %v1534, %v1547
        %v1549 = vcombine.low %v1526, %v1541
        %v1550 = vcombine.high %v1526, %v1541
        %v1552 = vunpack.c.l.s4 1934713408
        %v1553 = vunpack.c.0.s8 %v1552
        %v1554 = vlaneseq
        %v1555 = vshrl.u32 %v1554, 7
        %v1556 = vsub.s32 %v1553, %v1555
        %v1557 = vrot.slane %v1549, %v1556
        %v1559 = vunpack.c.l.s4 1934713408
        %v1560 = vunpack.c.0.s8 %v1559
        %v1561 = vlaneseq
        %v1562 = vshrl.u32 %v1561, 7
        %v1563 = vsub.s32 %v1560, %v1562
        %v1564 = vrot.slane %v1550, %v1563
        %v1565 = vcombine.low %v1533, %v1548
        %v1566 = vcombine.high %v1533, %v1548
        %v1568 = vunpack.c.l.s4 1934713408
        %v1569 = vunpack.c.0.s8 %v1568
        %v1570 = vlaneseq
        %v1571 = vshrl.u32 %v1570, 7
        %v1572 = vsub.s32 %v1569, %v1571
        %v1573 = vrot.slane %v1565, %v1572
        %v1575 = vunpack.c.l.s4 1934713408
        %v1576 = vunpack.c.0.s8 %v1575
        %v1577 = vlaneseq
        %v1578 = vshrl.u32 %v1577, 7
        %v1579 = vsub.s32 %v1576, %v1578
        %v1580 = vrot.slane %v1566, %v1579
        %v1581 = vcombine.high %v1557, 0.0
        %v1582 = vcombine.high %v1564, 0.0
        %v1583 = vcombine.high %v1573, 0.0
        %v1584 = vcombine.high %v1580, 0.0
        %1585 = vst.msk [vmem:[#allocation2] sm:$0xff] %vm1214, %v1511
        %vm1586 = vcmask 140288
        %1587 = vst.msk [vmem:[#allocation2 + $0x8] sm:$0x3] %vm1586, %v1557
        %1588 = vst.msk [vmem:[#allocation2 + $0x10] sm:$0xff] %vm1214, %v1512
        %1589 = vst.msk [vmem:[#allocation2 + $0x18] sm:$0x3] %vm1586, %v1581
        %1590 = vst.msk [vmem:[#allocation2 + $0x20] sm:$0xff] %vm1214, %v1513
        %1591 = vst.msk [vmem:[#allocation2 + $0x28] sm:$0x3] %vm1586, %v1564
        %1592 = vst.msk [vmem:[#allocation2 + $0x30] sm:$0xff] %vm1214, %v1514
        %1593 = vst.msk [vmem:[#allocation2 + $0x38] sm:$0x3] %vm1586, %v1582
        %1594 = vst.msk [vmem:[#allocation2 + $0x40] sm:$0xff] %vm1214, %v1515
        %1595 = vst.msk [vmem:[#allocation2 + $0x48] sm:$0x3] %vm1586, %v1573
        %1596 = vst.msk [vmem:[#allocation2 + $0x50] sm:$0xff] %vm1214, %v1516
        %1597 = vst.msk [vmem:[#allocation2 + $0x58] sm:$0x3] %vm1586, %v1583
        %1598 = vst.msk [vmem:[#allocation2 + $0x60] sm:$0xff] %vm1214, %v1517
        %1599 = vst.msk [vmem:[#allocation2 + $0x68] sm:$0x3] %vm1586, %v1580
        %1600 = vst.msk [vmem:[#allocation2 + $0x70] sm:$0xff] %vm1214, %v1518
        %1601 = vst.msk [vmem:[#allocation2 + $0x78] sm:$0x3] %vm1586, %v1584
        %v1602 = vld [vmem:[#allocation2] sm:$0xff]
        %v1603 = vld [vmem:[#allocation2 + $0x1] sm:$0xff]
        %v1604 = vld [vmem:[#allocation2 + $0x2] sm:$0xff]
        %s1605 = scalar_lea.vmem [#allocation2], 16
        %v1606 = vld [vmem:[%s1605] sm:$0xff]
        %v1607 = vld [vmem:[%s1605 + $0x1] sm:$0xff]
        %v1608 = vld [vmem:[%s1605 + $0x2] sm:$0xff]
        %s1609 = scalar_lea.vmem [#allocation2], 32
        %v1610 = vld [vmem:[%s1609] sm:$0xff]
        %v1611 = vld [vmem:[%s1609 + $0x1] sm:$0xff]
        %v1612 = vld [vmem:[%s1609 + $0x2] sm:$0xff]
        %s1613 = scalar_lea.vmem [#allocation2], 48
        %v1614 = vld [vmem:[%s1613] sm:$0xff]
        %v1615 = vld [vmem:[%s1613 + $0x1] sm:$0xff]
        %v1616 = vld [vmem:[%s1613 + $0x2] sm:$0xff]
        %s1617 = scalar_lea.vmem [#allocation2], 64
        %v1618 = vld [vmem:[%s1617] sm:$0xff]
        %v1619 = vld [vmem:[%s1617 + $0x1] sm:$0xff]
        %v1620 = vld [vmem:[%s1617 + $0x2] sm:$0xff]
        %s1621 = scalar_lea.vmem [#allocation2], 80
        %v1622 = vld [vmem:[%s1621] sm:$0xff]
        %v1623 = vld [vmem:[%s1621 + $0x1] sm:$0xff]
        %v1624 = vld [vmem:[%s1621 + $0x2] sm:$0xff]
        %s1625 = scalar_lea.vmem [#allocation2], 96
        %v1626 = vld [vmem:[%s1625] sm:$0xff]
        %v1627 = vld [vmem:[%s1625 + $0x1] sm:$0xff]
        %v1628 = vld [vmem:[%s1625 + $0x2] sm:$0xff]
        %s1629 = scalar_lea.vmem [#allocation2], 112
        %v1630 = vld [vmem:[%s1629] sm:$0xff]
        %v1631 = vld [vmem:[%s1629 + $0x1] sm:$0xff]
        %v1632 = vld [vmem:[%s1629 + $0x2] sm:$0xff]
        %1634 = vrot.lane.b32.xlu0 %v1602, 127
        %v1635 = vpop.permute.xlu0 %1634
        %1637 = vrot.lane.b32.xlu0 %v1602, 126
        %v1638 = vpop.permute.xlu0 %1637
        %1641 = vrot.lane.b32.xlu0 %v1603, 127
        %v1642 = vpop.permute.xlu0 %1641
        %1644 = vrot.lane.b32.xlu0 %v1603, 126
        %v1645 = vpop.permute.xlu0 %1644
        %1648 = vrot.lane.b32.xlu0 %v1604, 127
        %v1649 = vpop.permute.xlu0 %1648
        %1651 = vrot.lane.b32.xlu0 %v1604, 126
        %v1652 = vpop.permute.xlu0 %1651
        %1655 = vrot.lane.b32.xlu0 %v1606, 127
        %v1656 = vpop.permute.xlu0 %1655
        %1658 = vrot.lane.b32.xlu0 %v1606, 126
        %v1659 = vpop.permute.xlu0 %1658
        %1662 = vrot.lane.b32.xlu0 %v1607, 127
        %v1663 = vpop.permute.xlu0 %1662
        %1665 = vrot.lane.b32.xlu0 %v1607, 126
        %v1666 = vpop.permute.xlu0 %1665
        %1669 = vrot.lane.b32.xlu0 %v1608, 127
        %v1670 = vpop.permute.xlu0 %1669
        %1672 = vrot.lane.b32.xlu0 %v1610, 1
        %v1673 = vpop.permute.xlu0 %1672
        %1674 = vrot.lane.b32.xlu0 %v1610, 127
        %v1675 = vpop.permute.xlu0 %1674
        %1677 = vrot.lane.b32.xlu0 %v1611, 1
        %v1678 = vpop.permute.xlu0 %1677
        %1679 = vrot.lane.b32.xlu0 %v1611, 127
        %v1680 = vpop.permute.xlu0 %1679
        %1682 = vrot.lane.b32.xlu0 %v1612, 1
        %v1683 = vpop.permute.xlu0 %1682
        %1684 = vrot.lane.b32.xlu0 %v1612, 127
        %v1685 = vpop.permute.xlu0 %1684
        %1687 = vrot.lane.b32.xlu0 %v1614, 1
        %v1688 = vpop.permute.xlu0 %1687
        %1689 = vrot.lane.b32.xlu0 %v1614, 127
        %v1690 = vpop.permute.xlu0 %1689
        %1692 = vrot.lane.b32.xlu0 %v1615, 1
        %v1693 = vpop.permute.xlu0 %1692
        %1695 = vrot.lane.b32.xlu0 %v1616, 2
        %v1696 = vpop.permute.xlu0 %1695
        %1697 = vrot.lane.b32.xlu0 %v1616, 1
        %v1698 = vpop.permute.xlu0 %1697
        %1700 = vrot.lane.b32.xlu0 %v1618, 2
        %v1701 = vpop.permute.xlu0 %1700
        %1702 = vrot.lane.b32.xlu0 %v1618, 1
        %v1703 = vpop.permute.xlu0 %1702
        %1705 = vrot.lane.b32.xlu0 %v1619, 2
        %v1706 = vpop.permute.xlu0 %1705
        %1707 = vrot.lane.b32.xlu0 %v1619, 1
        %v1708 = vpop.permute.xlu0 %1707
        %1710 = vrot.lane.b32.xlu0 %v1620, 2
        %v1711 = vpop.permute.xlu0 %1710
        %1712 = vrot.lane.b32.xlu0 %v1620, 1
        %v1713 = vpop.permute.xlu0 %1712
        %1715 = vrot.lane.b32.xlu0 %v1622, 2
        %v1716 = vpop.permute.xlu0 %1715
        %1717 = vrot.lane.b32.xlu0 %v1622, 1
        %v1718 = vpop.permute.xlu0 %1717
        %1720 = vrot.lane.b32.xlu0 %v1623, 127
        %v1721 = vpop.permute.xlu0 %1720
        %1723 = vrot.lane.b32.xlu0 %v1623, 126
        %v1724 = vpop.permute.xlu0 %1723
        %1727 = vrot.lane.b32.xlu0 %v1624, 127
        %v1728 = vpop.permute.xlu0 %1727
        %1730 = vrot.lane.b32.xlu0 %v1624, 126
        %v1731 = vpop.permute.xlu0 %1730
        %1734 = vrot.lane.b32.xlu0 %v1626, 127
        %v1735 = vpop.permute.xlu0 %1734
        %1737 = vrot.lane.b32.xlu0 %v1626, 126
        %v1738 = vpop.permute.xlu0 %1737
        %1741 = vrot.lane.b32.xlu0 %v1627, 127
        %v1742 = vpop.permute.xlu0 %1741
        %1744 = vrot.lane.b32.xlu0 %v1627, 126
        %v1745 = vpop.permute.xlu0 %1744
        %1748 = vrot.lane.b32.xlu0 %v1628, 127
        %v1749 = vpop.permute.xlu0 %1748
        %1751 = vrot.lane.b32.xlu0 %v1628, 126
        %v1752 = vpop.permute.xlu0 %1751
        %1755 = vrot.lane.b32.xlu0 %v1630, 127
        %v1756 = vpop.permute.xlu0 %1755
        %1758 = vrot.lane.b32.xlu0 %v1631, 1
        %v1759 = vpop.permute.xlu0 %1758
        %1760 = vrot.lane.b32.xlu0 %v1631, 127
        %v1761 = vpop.permute.xlu0 %1760
        %1763 = vrot.lane.b32.xlu0 %v1632, 1
        %v1764 = vpop.permute.xlu0 %1763
        %1765 = vrot.lane.b32.xlu0 %v1632, 127
        %v1766 = vpop.permute.xlu0 %1765
        %1767 = vrot.lane.b32.xlu0 %v1670, 127
        %v1768 = vpop.permute.xlu0 %1767
        %1769 = vrot.lane.b32.xlu0 %v1673, 127
        %v1770 = vpop.permute.xlu0 %1769
        %1771 = vrot.lane.b32.xlu0 %v1675, 127
        %v1772 = vpop.permute.xlu0 %1771
        %1773 = vrot.lane.b32.xlu0 %v1678, 127
        %v1774 = vpop.permute.xlu0 %1773
        %1775 = vrot.lane.b32.xlu0 %v1680, 127
        %v1776 = vpop.permute.xlu0 %1775
        %1777 = vrot.lane.b32.xlu0 %v1683, 127
        %v1778 = vpop.permute.xlu0 %1777
        %1779 = vrot.lane.b32.xlu0 %v1685, 127
        %v1780 = vpop.permute.xlu0 %1779
        %1781 = vrot.lane.b32.xlu0 %v1688, 127
        %v1782 = vpop.permute.xlu0 %1781
        %1783 = vrot.lane.b32.xlu0 %v1690, 127
        %v1784 = vpop.permute.xlu0 %1783
        %1785 = vrot.lane.b32.xlu0 %v1693, 127
        %v1786 = vpop.permute.xlu0 %1785
        %1787 = vrot.lane.b32.xlu0 %v1615, 127
        %v1788 = vpop.permute.xlu0 %1787
        %1805 = vrot.lane.b32.xlu0 %v1615, 126
        %v1806 = vpop.permute.xlu0 %1805
        %1807 = vrot.lane.b32.xlu0 %v1696, 126
        %v1808 = vpop.permute.xlu0 %1807
        %1809 = vrot.lane.b32.xlu0 %v1698, 126
        %v1810 = vpop.permute.xlu0 %1809
        %1811 = vrot.lane.b32.xlu0 %v1616, 126
        %v1812 = vpop.permute.xlu0 %1811
        %1813 = vrot.lane.b32.xlu0 %v1701, 126
        %v1814 = vpop.permute.xlu0 %1813
        %1815 = vrot.lane.b32.xlu0 %v1703, 126
        %v1816 = vpop.permute.xlu0 %1815
        %1817 = vrot.lane.b32.xlu0 %v1618, 126
        %v1818 = vpop.permute.xlu0 %1817
        %1819 = vrot.lane.b32.xlu0 %v1706, 126
        %v1820 = vpop.permute.xlu0 %1819
        %1821 = vrot.lane.b32.xlu0 %v1708, 126
        %v1822 = vpop.permute.xlu0 %1821
        %1823 = vrot.lane.b32.xlu0 %v1619, 126
        %v1824 = vpop.permute.xlu0 %1823
        %1825 = vrot.lane.b32.xlu0 %v1711, 126
        %v1826 = vpop.permute.xlu0 %1825
        %1827 = vrot.lane.b32.xlu0 %v1713, 126
        %v1828 = vpop.permute.xlu0 %1827
        %1829 = vrot.lane.b32.xlu0 %v1620, 126
        %v1830 = vpop.permute.xlu0 %1829
        %1831 = vrot.lane.b32.xlu0 %v1716, 126
        %v1832 = vpop.permute.xlu0 %1831
        %1833 = vrot.lane.b32.xlu0 %v1718, 126
        %v1834 = vpop.permute.xlu0 %1833
        %1835 = vrot.lane.b32.xlu0 %v1622, 126
        %v1836 = vpop.permute.xlu0 %1835
        %1853 = vrot.lane.b32.xlu0 %v1756, 127
        %v1854 = vpop.permute.xlu0 %1853
        %1855 = vrot.lane.b32.xlu0 %v1759, 127
        %v1856 = vpop.permute.xlu0 %1855
        %1857 = vrot.lane.b32.xlu0 %v1761, 127
        %v1858 = vpop.permute.xlu0 %1857
        %1859 = vrot.lane.b32.xlu0 %v1764, 127
        %v1860 = vpop.permute.xlu0 %1859
        %1861 = vrot.lane.b32.xlu0 %v1766, 127
        %v1862 = vpop.permute.xlu0 %1861
        %v1871 = vcombine.low %v1602, %v1638
        %v1872 = vcombine.high %v1602, %v1638
        %v1874 = vunpack.c.l.s4 1983009808
        %v1875 = vunpack.c.0.s8 %v1874
        %v1876 = vlaneseq
        %v1877 = vshrl.u32 %v1876, 7
        %v1878 = vsub.s32 %v1875, %v1877
        %v1879 = vrot.slane %v1871, %v1878
        %v1881 = vunpack.c.l.s4 1983009808
        %v1882 = vunpack.c.0.s8 %v1881
        %v1883 = vlaneseq
        %v1884 = vshrl.u32 %v1883, 7
        %v1885 = vsub.s32 %v1882, %v1884
        %v1886 = vrot.slane %v1872, %v1885
        %v1887 = vcombine.low %v1635, %v1603
        %v1888 = vcombine.high %v1635, %v1603
        %v1890 = vunpack.c.l.s4 1983009808
        %v1891 = vunpack.c.0.s8 %v1890
        %v1892 = vlaneseq
        %v1893 = vshrl.u32 %v1892, 7
        %v1894 = vsub.s32 %v1891, %v1893
        %v1895 = vrot.slane %v1887, %v1894
        %v1897 = vunpack.c.l.s4 1983009808
        %v1898 = vunpack.c.0.s8 %v1897
        %v1899 = vlaneseq
        %v1900 = vshrl.u32 %v1899, 7
        %v1901 = vsub.s32 %v1898, %v1900
        %v1902 = vrot.slane %v1888, %v1901
        %v1903 = vcombine.low %v1642, %v1604
        %v1904 = vcombine.high %v1642, %v1604
        %v1906 = vunpack.c.l.s4 1983009808
        %v1907 = vunpack.c.0.s8 %v1906
        %v1908 = vlaneseq
        %v1909 = vshrl.u32 %v1908, 7
        %v1910 = vsub.s32 %v1907, %v1909
        %v1911 = vrot.slane %v1903, %v1910
        %v1913 = vunpack.c.l.s4 1983009808
        %v1914 = vunpack.c.0.s8 %v1913
        %v1915 = vlaneseq
        %v1916 = vshrl.u32 %v1915, 7
        %v1917 = vsub.s32 %v1914, %v1916
        %v1918 = vrot.slane %v1904, %v1917
        %v1919 = vcombine.low %v1645, %v1649
        %v1920 = vcombine.high %v1645, %v1649
        %v1922 = vunpack.c.l.s4 1983009808
        %v1923 = vunpack.c.0.s8 %v1922
        %v1924 = vlaneseq
        %v1925 = vshrl.u32 %v1924, 7
        %v1926 = vsub.s32 %v1923, %v1925
        %v1927 = vrot.slane %v1919, %v1926
        %v1929 = vunpack.c.l.s4 1983009808
        %v1930 = vunpack.c.0.s8 %v1929
        %v1931 = vlaneseq
        %v1932 = vshrl.u32 %v1931, 7
        %v1933 = vsub.s32 %v1930, %v1932
        %v1934 = vrot.slane %v1920, %v1933
        %v1935 = vcombine.low %v1879, %v1895
        %v1936 = vcombine.high %v1879, %v1895
        %v1938 = vunpack.c.l.s4 1934713408
        %v1939 = vunpack.c.0.s8 %v1938
        %v1940 = vlaneseq
        %v1941 = vshrl.u32 %v1940, 7
        %v1942 = vsub.s32 %v1939, %v1941
        %v1943 = vrot.slane %v1935, %v1942
        %v1945 = vunpack.c.l.s4 1934713408
        %v1946 = vunpack.c.0.s8 %v1945
        %v1947 = vlaneseq
        %v1948 = vshrl.u32 %v1947, 7
        %v1949 = vsub.s32 %v1946, %v1948
        %v1950 = vrot.slane %v1936, %v1949
        %v1951 = vcombine.low %v1886, %v1902
        %v1952 = vcombine.high %v1886, %v1902
        %v1954 = vunpack.c.l.s4 1934713408
        %v1955 = vunpack.c.0.s8 %v1954
        %v1956 = vlaneseq
        %v1957 = vshrl.u32 %v1956, 7
        %v1958 = vsub.s32 %v1955, %v1957
        %v1959 = vrot.slane %v1951, %v1958
        %v1961 = vunpack.c.l.s4 1934713408
        %v1962 = vunpack.c.0.s8 %v1961
        %v1963 = vlaneseq
        %v1964 = vshrl.u32 %v1963, 7
        %v1965 = vsub.s32 %v1962, %v1964
        %v1966 = vrot.slane %v1952, %v1965
        %v1967 = vcombine.low %v1911, %v1927
        %v1968 = vcombine.high %v1911, %v1927
        %v1970 = vunpack.c.l.s4 1934713408
        %v1971 = vunpack.c.0.s8 %v1970
        %v1972 = vlaneseq
        %v1973 = vshrl.u32 %v1972, 7
        %v1974 = vsub.s32 %v1971, %v1973
        %v1975 = vrot.slane %v1967, %v1974
        %v1977 = vunpack.c.l.s4 1934713408
        %v1978 = vunpack.c.0.s8 %v1977
        %v1979 = vlaneseq
        %v1980 = vshrl.u32 %v1979, 7
        %v1981 = vsub.s32 %v1978, %v1980
        %v1982 = vrot.slane %v1968, %v1981
        %v1983 = vcombine.low %v1918, %v1934
        %v1984 = vcombine.high %v1918, %v1934
        %v1986 = vunpack.c.l.s4 1934713408
        %v1987 = vunpack.c.0.s8 %v1986
        %v1988 = vlaneseq
        %v1989 = vshrl.u32 %v1988, 7
        %v1990 = vsub.s32 %v1987, %v1989
        %v1991 = vrot.slane %v1983, %v1990
        %v1993 = vunpack.c.l.s4 1934713408
        %v1994 = vunpack.c.0.s8 %v1993
        %v1995 = vlaneseq
        %v1996 = vshrl.u32 %v1995, 7
        %v1997 = vsub.s32 %v1994, %v1996
        %v1998 = vrot.slane %v1984, %v1997
        %v1999 = vcombine.low %v1943, %v1975
        %v2000 = vcombine.high %v1943, %v1975
        %v2001 = vcombine.low %v1950, %v1982
        %v2002 = vcombine.high %v1950, %v1982
        %v2003 = vcombine.low %v1959, %v1991
        %v2004 = vcombine.high %v1959, %v1991
        %v2005 = vcombine.low %v1966, %v1998
        %v2006 = vcombine.high %v1966, %v1998
        %v2007 = vcombine.low %v1652, %v1656
        %v2008 = vcombine.high %v1652, %v1656
        %v2010 = vunpack.c.l.s4 1983009808
        %v2011 = vunpack.c.0.s8 %v2010
        %v2012 = vlaneseq
        %v2013 = vshrl.u32 %v2012, 7
        %v2014 = vsub.s32 %v2011, %v2013
        %v2015 = vrot.slane %v2007, %v2014
        %v2017 = vunpack.c.l.s4 1983009808
        %v2018 = vunpack.c.0.s8 %v2017
        %v2019 = vlaneseq
        %v2020 = vshrl.u32 %v2019, 7
        %v2021 = vsub.s32 %v2018, %v2020
        %v2022 = vrot.slane %v2008, %v2021
        %v2023 = vcombine.low %v1606, %v1659
        %v2024 = vcombine.high %v1606, %v1659
        %v2026 = vunpack.c.l.s4 1983009808
        %v2027 = vunpack.c.0.s8 %v2026
        %v2028 = vlaneseq
        %v2029 = vshrl.u32 %v2028, 7
        %v2030 = vsub.s32 %v2027, %v2029
        %v2031 = vrot.slane %v2023, %v2030
        %v2033 = vunpack.c.l.s4 1983009808
        %v2034 = vunpack.c.0.s8 %v2033
        %v2035 = vlaneseq
        %v2036 = vshrl.u32 %v2035, 7
        %v2037 = vsub.s32 %v2034, %v2036
        %v2038 = vrot.slane %v2024, %v2037
        %v2039 = vcombine.low %v1607, %v1666
        %v2040 = vcombine.high %v1607, %v1666
        %v2042 = vunpack.c.l.s4 1983009808
        %v2043 = vunpack.c.0.s8 %v2042
        %v2044 = vlaneseq
        %v2045 = vshrl.u32 %v2044, 7
        %v2046 = vsub.s32 %v2043, %v2045
        %v2047 = vrot.slane %v2039, %v2046
        %v2049 = vunpack.c.l.s4 1983009808
        %v2050 = vunpack.c.0.s8 %v2049
        %v2051 = vlaneseq
        %v2052 = vshrl.u32 %v2051, 7
        %v2053 = vsub.s32 %v2050, %v2052
        %v2054 = vrot.slane %v2040, %v2053
        %v2055 = vcombine.low %v1663, %v1608
        %v2056 = vcombine.high %v1663, %v1608
        %v2058 = vunpack.c.l.s4 1983009808
        %v2059 = vunpack.c.0.s8 %v2058
        %v2060 = vlaneseq
        %v2061 = vshrl.u32 %v2060, 7
        %v2062 = vsub.s32 %v2059, %v2061
        %v2063 = vrot.slane %v2055, %v2062
        %v2065 = vunpack.c.l.s4 1983009808
        %v2066 = vunpack.c.0.s8 %v2065
        %v2067 = vlaneseq
        %v2068 = vshrl.u32 %v2067, 7
        %v2069 = vsub.s32 %v2066, %v2068
        %v2070 = vrot.slane %v2056, %v2069
        %v2071 = vcombine.low %v2015, %v2031
        %v2072 = vcombine.high %v2015, %v2031
        %v2074 = vunpack.c.l.s4 1934713408
        %v2075 = vunpack.c.0.s8 %v2074
        %v2076 = vlaneseq
        %v2077 = vshrl.u32 %v2076, 7
        %v2078 = vsub.s32 %v2075, %v2077
        %v2079 = vrot.slane %v2071, %v2078
        %v2081 = vunpack.c.l.s4 1934713408
        %v2082 = vunpack.c.0.s8 %v2081
        %v2083 = vlaneseq
        %v2084 = vshrl.u32 %v2083, 7
        %v2085 = vsub.s32 %v2082, %v2084
        %v2086 = vrot.slane %v2072, %v2085
        %v2087 = vcombine.low %v2022, %v2038
        %v2088 = vcombine.high %v2022, %v2038
        %v2090 = vunpack.c.l.s4 1934713408
        %v2091 = vunpack.c.0.s8 %v2090
        %v2092 = vlaneseq
        %v2093 = vshrl.u32 %v2092, 7
        %v2094 = vsub.s32 %v2091, %v2093
        %v2095 = vrot.slane %v2087, %v2094
        %v2097 = vunpack.c.l.s4 1934713408
        %v2098 = vunpack.c.0.s8 %v2097
        %v2099 = vlaneseq
        %v2100 = vshrl.u32 %v2099, 7
        %v2101 = vsub.s32 %v2098, %v2100
        %v2102 = vrot.slane %v2088, %v2101
        %v2103 = vcombine.low %v2047, %v2063
        %v2104 = vcombine.high %v2047, %v2063
        %v2106 = vunpack.c.l.s4 1934713408
        %v2107 = vunpack.c.0.s8 %v2106
        %v2108 = vlaneseq
        %v2109 = vshrl.u32 %v2108, 7
        %v2110 = vsub.s32 %v2107, %v2109
        %v2111 = vrot.slane %v2103, %v2110
        %v2113 = vunpack.c.l.s4 1934713408
        %v2114 = vunpack.c.0.s8 %v2113
        %v2115 = vlaneseq
        %v2116 = vshrl.u32 %v2115, 7
        %v2117 = vsub.s32 %v2114, %v2116
        %v2118 = vrot.slane %v2104, %v2117
        %v2119 = vcombine.low %v2054, %v2070
        %v2120 = vcombine.high %v2054, %v2070
        %v2122 = vunpack.c.l.s4 1934713408
        %v2123 = vunpack.c.0.s8 %v2122
        %v2124 = vlaneseq
        %v2125 = vshrl.u32 %v2124, 7
        %v2126 = vsub.s32 %v2123, %v2125
        %v2127 = vrot.slane %v2119, %v2126
        %v2129 = vunpack.c.l.s4 1934713408
        %v2130 = vunpack.c.0.s8 %v2129
        %v2131 = vlaneseq
        %v2132 = vshrl.u32 %v2131, 7
        %v2133 = vsub.s32 %v2130, %v2132
        %v2134 = vrot.slane %v2120, %v2133
        %v2135 = vcombine.low %v2079, %v2111
        %v2136 = vcombine.high %v2079, %v2111
        %v2137 = vcombine.low %v2086, %v2118
        %v2138 = vcombine.high %v2086, %v2118
        %v2139 = vcombine.low %v2095, %v2127
        %v2140 = vcombine.high %v2095, %v2127
        %v2141 = vcombine.low %v2102, %v2134
        %v2142 = vcombine.high %v2102, %v2134
        %v2143 = vcombine.low %v1670, %v1770
        %v2144 = vcombine.high %v1670, %v1770
        %v2146 = vunpack.c.l.s4 1983009808
        %v2147 = vunpack.c.0.s8 %v2146
        %v2148 = vlaneseq
        %v2149 = vshrl.u32 %v2148, 7
        %v2150 = vsub.s32 %v2147, %v2149
        %v2151 = vrot.slane %v2143, %v2150
        %v2153 = vunpack.c.l.s4 1983009808
        %v2154 = vunpack.c.0.s8 %v2153
        %v2155 = vlaneseq
        %v2156 = vshrl.u32 %v2155, 7
        %v2157 = vsub.s32 %v2154, %v2156
        %v2158 = vrot.slane %v2144, %v2157
        %v2159 = vcombine.low %v1768, %v1675
        %v2160 = vcombine.high %v1768, %v1675
        %v2162 = vunpack.c.l.s4 1983009808
        %v2163 = vunpack.c.0.s8 %v2162
        %v2164 = vlaneseq
        %v2165 = vshrl.u32 %v2164, 7
        %v2166 = vsub.s32 %v2163, %v2165
        %v2167 = vrot.slane %v2159, %v2166
        %v2169 = vunpack.c.l.s4 1983009808
        %v2170 = vunpack.c.0.s8 %v2169
        %v2171 = vlaneseq
        %v2172 = vshrl.u32 %v2171, 7
        %v2173 = vsub.s32 %v2170, %v2172
        %v2174 = vrot.slane %v2160, %v2173
        %v2175 = vcombine.low %v1772, %v1680
        %v2176 = vcombine.high %v1772, %v1680
        %v2178 = vunpack.c.l.s4 1983009808
        %v2179 = vunpack.c.0.s8 %v2178
        %v2180 = vlaneseq
        %v2181 = vshrl.u32 %v2180, 7
        %v2182 = vsub.s32 %v2179, %v2181
        %v2183 = vrot.slane %v2175, %v2182
        %v2185 = vunpack.c.l.s4 1983009808
        %v2186 = vunpack.c.0.s8 %v2185
        %v2187 = vlaneseq
        %v2188 = vshrl.u32 %v2187, 7
        %v2189 = vsub.s32 %v2186, %v2188
        %v2190 = vrot.slane %v2176, %v2189
        %v2191 = vcombine.low %v1774, %v1776
        %v2192 = vcombine.high %v1774, %v1776
        %v2194 = vunpack.c.l.s4 1983009808
        %v2195 = vunpack.c.0.s8 %v2194
        %v2196 = vlaneseq
        %v2197 = vshrl.u32 %v2196, 7
        %v2198 = vsub.s32 %v2195, %v2197
        %v2199 = vrot.slane %v2191, %v2198
        %v2201 = vunpack.c.l.s4 1983009808
        %v2202 = vunpack.c.0.s8 %v2201
        %v2203 = vlaneseq
        %v2204 = vshrl.u32 %v2203, 7
        %v2205 = vsub.s32 %v2202, %v2204
        %v2206 = vrot.slane %v2192, %v2205
        %v2207 = vcombine.low %v2151, %v2167
        %v2208 = vcombine.high %v2151, %v2167
        %v2210 = vunpack.c.l.s4 1934713408
        %v2211 = vunpack.c.0.s8 %v2210
        %v2212 = vlaneseq
        %v2213 = vshrl.u32 %v2212, 7
        %v2214 = vsub.s32 %v2211, %v2213
        %v2215 = vrot.slane %v2207, %v2214
        %v2217 = vunpack.c.l.s4 1934713408
        %v2218 = vunpack.c.0.s8 %v2217
        %v2219 = vlaneseq
        %v2220 = vshrl.u32 %v2219, 7
        %v2221 = vsub.s32 %v2218, %v2220
        %v2222 = vrot.slane %v2208, %v2221
        %v2223 = vcombine.low %v2158, %v2174
        %v2224 = vcombine.high %v2158, %v2174
        %v2226 = vunpack.c.l.s4 1934713408
        %v2227 = vunpack.c.0.s8 %v2226
        %v2228 = vlaneseq
        %v2229 = vshrl.u32 %v2228, 7
        %v2230 = vsub.s32 %v2227, %v2229
        %v2231 = vrot.slane %v2223, %v2230
        %v2233 = vunpack.c.l.s4 1934713408
        %v2234 = vunpack.c.0.s8 %v2233
        %v2235 = vlaneseq
        %v2236 = vshrl.u32 %v2235, 7
        %v2237 = vsub.s32 %v2234, %v2236
        %v2238 = vrot.slane %v2224, %v2237
        %v2239 = vcombine.low %v2183, %v2199
        %v2240 = vcombine.high %v2183, %v2199
        %v2242 = vunpack.c.l.s4 1934713408
        %v2243 = vunpack.c.0.s8 %v2242
        %v2244 = vlaneseq
        %v2245 = vshrl.u32 %v2244, 7
        %v2246 = vsub.s32 %v2243, %v2245
        %v2247 = vrot.slane %v2239, %v2246
        %v2249 = vunpack.c.l.s4 1934713408
        %v2250 = vunpack.c.0.s8 %v2249
        %v2251 = vlaneseq
        %v2252 = vshrl.u32 %v2251, 7
        %v2253 = vsub.s32 %v2250, %v2252
        %v2254 = vrot.slane %v2240, %v2253
        %v2255 = vcombine.low %v2190, %v2206
        %v2256 = vcombine.high %v2190, %v2206
        %v2258 = vunpack.c.l.s4 1934713408
        %v2259 = vunpack.c.0.s8 %v2258
        %v2260 = vlaneseq
        %v2261 = vshrl.u32 %v2260, 7
        %v2262 = vsub.s32 %v2259, %v2261
        %v2263 = vrot.slane %v2255, %v2262
        %v2265 = vunpack.c.l.s4 1934713408
        %v2266 = vunpack.c.0.s8 %v2265
        %v2267 = vlaneseq
        %v2268 = vshrl.u32 %v2267, 7
        %v2269 = vsub.s32 %v2266, %v2268
        %v2270 = vrot.slane %v2256, %v2269
        %v2271 = vcombine.low %v2215, %v2247
        %v2272 = vcombine.high %v2215, %v2247
        %v2273 = vcombine.low %v2222, %v2254
        %v2274 = vcombine.high %v2222, %v2254
        %v2275 = vcombine.low %v2231, %v2263
        %v2276 = vcombine.high %v2231, %v2263
        %v2277 = vcombine.low %v2238, %v2270
        %v2278 = vcombine.high %v2238, %v2270
        %v2279 = vcombine.low %v1778, %v1780
        %v2280 = vcombine.high %v1778, %v1780
        %v2282 = vunpack.c.l.s4 1983009808
        %v2283 = vunpack.c.0.s8 %v2282
        %v2284 = vlaneseq
        %v2285 = vshrl.u32 %v2284, 7
        %v2286 = vsub.s32 %v2283, %v2285
        %v2287 = vrot.slane %v2279, %v2286
        %v2289 = vunpack.c.l.s4 1983009808
        %v2290 = vunpack.c.0.s8 %v2289
        %v2291 = vlaneseq
        %v2292 = vshrl.u32 %v2291, 7
        %v2293 = vsub.s32 %v2290, %v2292
        %v2294 = vrot.slane %v2280, %v2293
        %v2295 = vcombine.low %v1685, %v1782
        %v2296 = vcombine.high %v1685, %v1782
        %v2298 = vunpack.c.l.s4 1983009808
        %v2299 = vunpack.c.0.s8 %v2298
        %v2300 = vlaneseq
        %v2301 = vshrl.u32 %v2300, 7
        %v2302 = vsub.s32 %v2299, %v2301
        %v2303 = vrot.slane %v2295, %v2302
        %v2305 = vunpack.c.l.s4 1983009808
        %v2306 = vunpack.c.0.s8 %v2305
        %v2307 = vlaneseq
        %v2308 = vshrl.u32 %v2307, 7
        %v2309 = vsub.s32 %v2306, %v2308
        %v2310 = vrot.slane %v2296, %v2309
        %v2311 = vcombine.low %v1690, %v1786
        %v2312 = vcombine.high %v1690, %v1786
        %v2314 = vunpack.c.l.s4 1983009808
        %v2315 = vunpack.c.0.s8 %v2314
        %v2316 = vlaneseq
        %v2317 = vshrl.u32 %v2316, 7
        %v2318 = vsub.s32 %v2315, %v2317
        %v2319 = vrot.slane %v2311, %v2318
        %v2321 = vunpack.c.l.s4 1983009808
        %v2322 = vunpack.c.0.s8 %v2321
        %v2323 = vlaneseq
        %v2324 = vshrl.u32 %v2323, 7
        %v2325 = vsub.s32 %v2322, %v2324
        %v2326 = vrot.slane %v2312, %v2325
        %v2327 = vcombine.low %v1784, %v1788
        %v2328 = vcombine.high %v1784, %v1788
        %v2330 = vunpack.c.l.s4 1983009808
        %v2331 = vunpack.c.0.s8 %v2330
        %v2332 = vlaneseq
        %v2333 = vshrl.u32 %v2332, 7
        %v2334 = vsub.s32 %v2331, %v2333
        %v2335 = vrot.slane %v2327, %v2334
        %v2337 = vunpack.c.l.s4 1983009808
        %v2338 = vunpack.c.0.s8 %v2337
        %v2339 = vlaneseq
        %v2340 = vshrl.u32 %v2339, 7
        %v2341 = vsub.s32 %v2338, %v2340
        %v2342 = vrot.slane %v2328, %v2341
        %v2343 = vcombine.low %v2287, %v2303
        %v2344 = vcombine.high %v2287, %v2303
        %v2346 = vunpack.c.l.s4 1934713408
        %v2347 = vunpack.c.0.s8 %v2346
        %v2348 = vlaneseq
        %v2349 = vshrl.u32 %v2348, 7
        %v2350 = vsub.s32 %v2347, %v2349
        %v2351 = vrot.slane %v2343, %v2350
        %v2353 = vunpack.c.l.s4 1934713408
        %v2354 = vunpack.c.0.s8 %v2353
        %v2355 = vlaneseq
        %v2356 = vshrl.u32 %v2355, 7
        %v2357 = vsub.s32 %v2354, %v2356
        %v2358 = vrot.slane %v2344, %v2357
        %v2359 = vcombine.low %v2294, %v2310
        %v2360 = vcombine.high %v2294, %v2310
        %v2362 = vunpack.c.l.s4 1934713408
        %v2363 = vunpack.c.0.s8 %v2362
        %v2364 = vlaneseq
        %v2365 = vshrl.u32 %v2364, 7
        %v2366 = vsub.s32 %v2363, %v2365
        %v2367 = vrot.slane %v2359, %v2366
        %v2369 = vunpack.c.l.s4 1934713408
        %v2370 = vunpack.c.0.s8 %v2369
        %v2371 = vlaneseq
        %v2372 = vshrl.u32 %v2371, 7
        %v2373 = vsub.s32 %v2370, %v2372
        %v2374 = vrot.slane %v2360, %v2373
        %v2375 = vcombine.low %v2319, %v2335
        %v2376 = vcombine.high %v2319, %v2335
        %v2378 = vunpack.c.l.s4 1934713408
        %v2379 = vunpack.c.0.s8 %v2378
        %v2380 = vlaneseq
        %v2381 = vshrl.u32 %v2380, 7
        %v2382 = vsub.s32 %v2379, %v2381
        %v2383 = vrot.slane %v2375, %v2382
        %v2385 = vunpack.c.l.s4 1934713408
        %v2386 = vunpack.c.0.s8 %v2385
        %v2387 = vlaneseq
        %v2388 = vshrl.u32 %v2387, 7
        %v2389 = vsub.s32 %v2386, %v2388
        %v2390 = vrot.slane %v2376, %v2389
        %v2391 = vcombine.low %v2326, %v2342
        %v2392 = vcombine.high %v2326, %v2342
        %v2394 = vunpack.c.l.s4 1934713408
        %v2395 = vunpack.c.0.s8 %v2394
        %v2396 = vlaneseq
        %v2397 = vshrl.u32 %v2396, 7
        %v2398 = vsub.s32 %v2395, %v2397
        %v2399 = vrot.slane %v2391, %v2398
        %v2401 = vunpack.c.l.s4 1934713408
        %v2402 = vunpack.c.0.s8 %v2401
        %v2403 = vlaneseq
        %v2404 = vshrl.u32 %v2403, 7
        %v2405 = vsub.s32 %v2402, %v2404
        %v2406 = vrot.slane %v2392, %v2405
        %v2407 = vcombine.low %v2351, %v2383
        %v2408 = vcombine.high %v2351, %v2383
        %v2409 = vcombine.low %v2358, %v2390
        %v2410 = vcombine.high %v2358, %v2390
        %v2411 = vcombine.low %v2367, %v2399
        %v2412 = vcombine.high %v2367, %v2399
        %v2413 = vcombine.low %v2374, %v2406
        %v2414 = vcombine.high %v2374, %v2406
        %v2415 = vcombine.low %v1806, %v1810
        %v2416 = vcombine.high %v1806, %v1810
        %v2418 = vunpack.c.l.s4 1983009808
        %v2419 = vunpack.c.0.s8 %v2418
        %v2420 = vlaneseq
        %v2421 = vshrl.u32 %v2420, 7
        %v2422 = vsub.s32 %v2419, %v2421
        %v2423 = vrot.slane %v2415, %v2422
        %v2425 = vunpack.c.l.s4 1983009808
        %v2426 = vunpack.c.0.s8 %v2425
        %v2427 = vlaneseq
        %v2428 = vshrl.u32 %v2427, 7
        %v2429 = vsub.s32 %v2426, %v2428
        %v2430 = vrot.slane %v2416, %v2429
        %v2431 = vcombine.low %v1808, %v1812
        %v2432 = vcombine.high %v1808, %v1812
        %v2434 = vunpack.c.l.s4 1983009808
        %v2435 = vunpack.c.0.s8 %v2434
        %v2436 = vlaneseq
        %v2437 = vshrl.u32 %v2436, 7
        %v2438 = vsub.s32 %v2435, %v2437
        %v2439 = vrot.slane %v2431, %v2438
        %v2441 = vunpack.c.l.s4 1983009808
        %v2442 = vunpack.c.0.s8 %v2441
        %v2443 = vlaneseq
        %v2444 = vshrl.u32 %v2443, 7
        %v2445 = vsub.s32 %v2442, %v2444
        %v2446 = vrot.slane %v2432, %v2445
        %v2447 = vcombine.low %v1814, %v1818
        %v2448 = vcombine.high %v1814, %v1818
        %v2450 = vunpack.c.l.s4 1983009808
        %v2451 = vunpack.c.0.s8 %v2450
        %v2452 = vlaneseq
        %v2453 = vshrl.u32 %v2452, 7
        %v2454 = vsub.s32 %v2451, %v2453
        %v2455 = vrot.slane %v2447, %v2454
        %v2457 = vunpack.c.l.s4 1983009808
        %v2458 = vunpack.c.0.s8 %v2457
        %v2459 = vlaneseq
        %v2460 = vshrl.u32 %v2459, 7
        %v2461 = vsub.s32 %v2458, %v2460
        %v2462 = vrot.slane %v2448, %v2461
        %v2463 = vcombine.low %v1816, %v1820
        %v2464 = vcombine.high %v1816, %v1820
        %v2466 = vunpack.c.l.s4 1983009808
        %v2467 = vunpack.c.0.s8 %v2466
        %v2468 = vlaneseq
        %v2469 = vshrl.u32 %v2468, 7
        %v2470 = vsub.s32 %v2467, %v2469
        %v2471 = vrot.slane %v2463, %v2470
        %v2473 = vunpack.c.l.s4 1983009808
        %v2474 = vunpack.c.0.s8 %v2473
        %v2475 = vlaneseq
        %v2476 = vshrl.u32 %v2475, 7
        %v2477 = vsub.s32 %v2474, %v2476
        %v2478 = vrot.slane %v2464, %v2477
        %v2479 = vcombine.low %v2423, %v2439
        %v2480 = vcombine.high %v2423, %v2439
        %v2482 = vunpack.c.l.s4 1934713408
        %v2483 = vunpack.c.0.s8 %v2482
        %v2484 = vlaneseq
        %v2485 = vshrl.u32 %v2484, 7
        %v2486 = vsub.s32 %v2483, %v2485
        %v2487 = vrot.slane %v2479, %v2486
        %v2489 = vunpack.c.l.s4 1934713408
        %v2490 = vunpack.c.0.s8 %v2489
        %v2491 = vlaneseq
        %v2492 = vshrl.u32 %v2491, 7
        %v2493 = vsub.s32 %v2490, %v2492
        %v2494 = vrot.slane %v2480, %v2493
        %v2495 = vcombine.low %v2430, %v2446
        %v2496 = vcombine.high %v2430, %v2446
        %v2498 = vunpack.c.l.s4 1934713408
        %v2499 = vunpack.c.0.s8 %v2498
        %v2500 = vlaneseq
        %v2501 = vshrl.u32 %v2500, 7
        %v2502 = vsub.s32 %v2499, %v2501
        %v2503 = vrot.slane %v2495, %v2502
        %v2505 = vunpack.c.l.s4 1934713408
        %v2506 = vunpack.c.0.s8 %v2505
        %v2507 = vlaneseq
        %v2508 = vshrl.u32 %v2507, 7
        %v2509 = vsub.s32 %v2506, %v2508
        %v2510 = vrot.slane %v2496, %v2509
        %v2511 = vcombine.low %v2455, %v2471
        %v2512 = vcombine.high %v2455, %v2471
        %v2514 = vunpack.c.l.s4 1934713408
        %v2515 = vunpack.c.0.s8 %v2514
        %v2516 = vlaneseq
        %v2517 = vshrl.u32 %v2516, 7
        %v2518 = vsub.s32 %v2515, %v2517
        %v2519 = vrot.slane %v2511, %v2518
        %v2521 = vunpack.c.l.s4 1934713408
        %v2522 = vunpack.c.0.s8 %v2521
        %v2523 = vlaneseq
        %v2524 = vshrl.u32 %v2523, 7
        %v2525 = vsub.s32 %v2522, %v2524
        %v2526 = vrot.slane %v2512, %v2525
        %v2527 = vcombine.low %v2462, %v2478
        %v2528 = vcombine.high %v2462, %v2478
        %v2530 = vunpack.c.l.s4 1934713408
        %v2531 = vunpack.c.0.s8 %v2530
        %v2532 = vlaneseq
        %v2533 = vshrl.u32 %v2532, 7
        %v2534 = vsub.s32 %v2531, %v2533
        %v2535 = vrot.slane %v2527, %v2534
        %v2537 = vunpack.c.l.s4 1934713408
        %v2538 = vunpack.c.0.s8 %v2537
        %v2539 = vlaneseq
        %v2540 = vshrl.u32 %v2539, 7
        %v2541 = vsub.s32 %v2538, %v2540
        %v2542 = vrot.slane %v2528, %v2541
        %v2543 = vcombine.low %v2487, %v2519
        %v2544 = vcombine.high %v2487, %v2519
        %v2545 = vcombine.low %v2494, %v2526
        %v2546 = vcombine.high %v2494, %v2526
        %v2547 = vcombine.low %v2503, %v2535
        %v2548 = vcombine.high %v2503, %v2535
        %v2549 = vcombine.low %v2510, %v2542
        %v2550 = vcombine.high %v2510, %v2542
        %v2551 = vcombine.low %v1822, %v1826
        %v2552 = vcombine.high %v1822, %v1826
        %v2554 = vunpack.c.l.s4 1983009808
        %v2555 = vunpack.c.0.s8 %v2554
        %v2556 = vlaneseq
        %v2557 = vshrl.u32 %v2556, 7
        %v2558 = vsub.s32 %v2555, %v2557
        %v2559 = vrot.slane %v2551, %v2558
        %v2561 = vunpack.c.l.s4 1983009808
        %v2562 = vunpack.c.0.s8 %v2561
        %v2563 = vlaneseq
        %v2564 = vshrl.u32 %v2563, 7
        %v2565 = vsub.s32 %v2562, %v2564
        %v2566 = vrot.slane %v2552, %v2565
        %v2567 = vcombine.low %v1824, %v1828
        %v2568 = vcombine.high %v1824, %v1828
        %v2570 = vunpack.c.l.s4 1983009808
        %v2571 = vunpack.c.0.s8 %v2570
        %v2572 = vlaneseq
        %v2573 = vshrl.u32 %v2572, 7
        %v2574 = vsub.s32 %v2571, %v2573
        %v2575 = vrot.slane %v2567, %v2574
        %v2577 = vunpack.c.l.s4 1983009808
        %v2578 = vunpack.c.0.s8 %v2577
        %v2579 = vlaneseq
        %v2580 = vshrl.u32 %v2579, 7
        %v2581 = vsub.s32 %v2578, %v2580
        %v2582 = vrot.slane %v2568, %v2581
        %v2583 = vcombine.low %v1830, %v1834
        %v2584 = vcombine.high %v1830, %v1834
        %v2586 = vunpack.c.l.s4 1983009808
        %v2587 = vunpack.c.0.s8 %v2586
        %v2588 = vlaneseq
        %v2589 = vshrl.u32 %v2588, 7
        %v2590 = vsub.s32 %v2587, %v2589
        %v2591 = vrot.slane %v2583, %v2590
        %v2593 = vunpack.c.l.s4 1983009808
        %v2594 = vunpack.c.0.s8 %v2593
        %v2595 = vlaneseq
        %v2596 = vshrl.u32 %v2595, 7
        %v2597 = vsub.s32 %v2594, %v2596
        %v2598 = vrot.slane %v2584, %v2597
        %v2599 = vcombine.low %v1832, %v1836
        %v2600 = vcombine.high %v1832, %v1836
        %v2602 = vunpack.c.l.s4 1983009808
        %v2603 = vunpack.c.0.s8 %v2602
        %v2604 = vlaneseq
        %v2605 = vshrl.u32 %v2604, 7
        %v2606 = vsub.s32 %v2603, %v2605
        %v2607 = vrot.slane %v2599, %v2606
        %v2609 = vunpack.c.l.s4 1983009808
        %v2610 = vunpack.c.0.s8 %v2609
        %v2611 = vlaneseq
        %v2612 = vshrl.u32 %v2611, 7
        %v2613 = vsub.s32 %v2610, %v2612
        %v2614 = vrot.slane %v2600, %v2613
        %v2615 = vcombine.low %v2559, %v2575
        %v2616 = vcombine.high %v2559, %v2575
        %v2618 = vunpack.c.l.s4 1934713408
        %v2619 = vunpack.c.0.s8 %v2618
        %v2620 = vlaneseq
        %v2621 = vshrl.u32 %v2620, 7
        %v2622 = vsub.s32 %v2619, %v2621
        %v2623 = vrot.slane %v2615, %v2622
        %v2625 = vunpack.c.l.s4 1934713408
        %v2626 = vunpack.c.0.s8 %v2625
        %v2627 = vlaneseq
        %v2628 = vshrl.u32 %v2627, 7
        %v2629 = vsub.s32 %v2626, %v2628
        %v2630 = vrot.slane %v2616, %v2629
        %v2631 = vcombine.low %v2566, %v2582
        %v2632 = vcombine.high %v2566, %v2582
        %v2634 = vunpack.c.l.s4 1934713408
        %v2635 = vunpack.c.0.s8 %v2634
        %v2636 = vlaneseq
        %v2637 = vshrl.u32 %v2636, 7
        %v2638 = vsub.s32 %v2635, %v2637
        %v2639 = vrot.slane %v2631, %v2638
        %v2641 = vunpack.c.l.s4 1934713408
        %v2642 = vunpack.c.0.s8 %v2641
        %v2643 = vlaneseq
        %v2644 = vshrl.u32 %v2643, 7
        %v2645 = vsub.s32 %v2642, %v2644
        %v2646 = vrot.slane %v2632, %v2645
        %v2647 = vcombine.low %v2591, %v2607
        %v2648 = vcombine.high %v2591, %v2607
        %v2650 = vunpack.c.l.s4 1934713408
        %v2651 = vunpack.c.0.s8 %v2650
        %v2652 = vlaneseq
        %v2653 = vshrl.u32 %v2652, 7
        %v2654 = vsub.s32 %v2651, %v2653
        %v2655 = vrot.slane %v2647, %v2654
        %v2657 = vunpack.c.l.s4 1934713408
        %v2658 = vunpack.c.0.s8 %v2657
        %v2659 = vlaneseq
        %v2660 = vshrl.u32 %v2659, 7
        %v2661 = vsub.s32 %v2658, %v2660
        %v2662 = vrot.slane %v2648, %v2661
        %v2663 = vcombine.low %v2598, %v2614
        %v2664 = vcombine.high %v2598, %v2614
        %v2666 = vunpack.c.l.s4 1934713408
        %v2667 = vunpack.c.0.s8 %v2666
        %v2668 = vlaneseq
        %v2669 = vshrl.u32 %v2668, 7
        %v2670 = vsub.s32 %v2667, %v2669
        %v2671 = vrot.slane %v2663, %v2670
        %v2673 = vunpack.c.l.s4 1934713408
        %v2674 = vunpack.c.0.s8 %v2673
        %v2675 = vlaneseq
        %v2676 = vshrl.u32 %v2675, 7
        %v2677 = vsub.s32 %v2674, %v2676
        %v2678 = vrot.slane %v2664, %v2677
        %v2679 = vcombine.low %v2623, %v2655
        %v2680 = vcombine.high %v2623, %v2655
        %v2681 = vcombine.low %v2630, %v2662
        %v2682 = vcombine.high %v2630, %v2662
        %v2683 = vcombine.low %v2639, %v2671
        %v2684 = vcombine.high %v2639, %v2671
        %v2685 = vcombine.low %v2646, %v2678
        %v2686 = vcombine.high %v2646, %v2678
        %v2687 = vcombine.low %v1623, %v1724
        %v2688 = vcombine.high %v1623, %v1724
        %v2690 = vunpack.c.l.s4 1983009808
        %v2691 = vunpack.c.0.s8 %v2690
        %v2692 = vlaneseq
        %v2693 = vshrl.u32 %v2692, 7
        %v2694 = vsub.s32 %v2691, %v2693
        %v2695 = vrot.slane %v2687, %v2694
        %v2697 = vunpack.c.l.s4 1983009808
        %v2698 = vunpack.c.0.s8 %v2697
        %v2699 = vlaneseq
        %v2700 = vshrl.u32 %v2699, 7
        %v2701 = vsub.s32 %v2698, %v2700
        %v2702 = vrot.slane %v2688, %v2701
        %v2703 = vcombine.low %v1721, %v1624
        %v2704 = vcombine.high %v1721, %v1624
        %v2706 = vunpack.c.l.s4 1983009808
        %v2707 = vunpack.c.0.s8 %v2706
        %v2708 = vlaneseq
        %v2709 = vshrl.u32 %v2708, 7
        %v2710 = vsub.s32 %v2707, %v2709
        %v2711 = vrot.slane %v2703, %v2710
        %v2713 = vunpack.c.l.s4 1983009808
        %v2714 = vunpack.c.0.s8 %v2713
        %v2715 = vlaneseq
        %v2716 = vshrl.u32 %v2715, 7
        %v2717 = vsub.s32 %v2714, %v2716
        %v2718 = vrot.slane %v2704, %v2717
        %v2719 = vcombine.low %v1728, %v1626
        %v2720 = vcombine.high %v1728, %v1626
        %v2722 = vunpack.c.l.s4 1983009808
        %v2723 = vunpack.c.0.s8 %v2722
        %v2724 = vlaneseq
        %v2725 = vshrl.u32 %v2724, 7
        %v2726 = vsub.s32 %v2723, %v2725
        %v2727 = vrot.slane %v2719, %v2726
        %v2729 = vunpack.c.l.s4 1983009808
        %v2730 = vunpack.c.0.s8 %v2729
        %v2731 = vlaneseq
        %v2732 = vshrl.u32 %v2731, 7
        %v2733 = vsub.s32 %v2730, %v2732
        %v2734 = vrot.slane %v2720, %v2733
        %v2735 = vcombine.low %v1731, %v1735
        %v2736 = vcombine.high %v1731, %v1735
        %v2738 = vunpack.c.l.s4 1983009808
        %v2739 = vunpack.c.0.s8 %v2738
        %v2740 = vlaneseq
        %v2741 = vshrl.u32 %v2740, 7
        %v2742 = vsub.s32 %v2739, %v2741
        %v2743 = vrot.slane %v2735, %v2742
        %v2745 = vunpack.c.l.s4 1983009808
        %v2746 = vunpack.c.0.s8 %v2745
        %v2747 = vlaneseq
        %v2748 = vshrl.u32 %v2747, 7
        %v2749 = vsub.s32 %v2746, %v2748
        %v2750 = vrot.slane %v2736, %v2749
        %v2751 = vcombine.low %v2695, %v2711
        %v2752 = vcombine.high %v2695, %v2711
        %v2754 = vunpack.c.l.s4 1934713408
        %v2755 = vunpack.c.0.s8 %v2754
        %v2756 = vlaneseq
        %v2757 = vshrl.u32 %v2756, 7
        %v2758 = vsub.s32 %v2755, %v2757
        %v2759 = vrot.slane %v2751, %v2758
        %v2761 = vunpack.c.l.s4 1934713408
        %v2762 = vunpack.c.0.s8 %v2761
        %v2763 = vlaneseq
        %v2764 = vshrl.u32 %v2763, 7
        %v2765 = vsub.s32 %v2762, %v2764
        %v2766 = vrot.slane %v2752, %v2765
        %v2767 = vcombine.low %v2702, %v2718
        %v2768 = vcombine.high %v2702, %v2718
        %v2770 = vunpack.c.l.s4 1934713408
        %v2771 = vunpack.c.0.s8 %v2770
        %v2772 = vlaneseq
        %v2773 = vshrl.u32 %v2772, 7
        %v2774 = vsub.s32 %v2771, %v2773
        %v2775 = vrot.slane %v2767, %v2774
        %v2777 = vunpack.c.l.s4 1934713408
        %v2778 = vunpack.c.0.s8 %v2777
        %v2779 = vlaneseq
        %v2780 = vshrl.u32 %v2779, 7
        %v2781 = vsub.s32 %v2778, %v2780
        %v2782 = vrot.slane %v2768, %v2781
        %v2783 = vcombine.low %v2727, %v2743
        %v2784 = vcombine.high %v2727, %v2743
        %v2786 = vunpack.c.l.s4 1934713408
        %v2787 = vunpack.c.0.s8 %v2786
        %v2788 = vlaneseq
        %v2789 = vshrl.u32 %v2788, 7
        %v2790 = vsub.s32 %v2787, %v2789
        %v2791 = vrot.slane %v2783, %v2790
        %v2793 = vunpack.c.l.s4 1934713408
        %v2794 = vunpack.c.0.s8 %v2793
        %v2795 = vlaneseq
        %v2796 = vshrl.u32 %v2795, 7
        %v2797 = vsub.s32 %v2794, %v2796
        %v2798 = vrot.slane %v2784, %v2797
        %v2799 = vcombine.low %v2734, %v2750
        %v2800 = vcombine.high %v2734, %v2750
        %v2802 = vunpack.c.l.s4 1934713408
        %v2803 = vunpack.c.0.s8 %v2802
        %v2804 = vlaneseq
        %v2805 = vshrl.u32 %v2804, 7
        %v2806 = vsub.s32 %v2803, %v2805
        %v2807 = vrot.slane %v2799, %v2806
        %v2809 = vunpack.c.l.s4 1934713408
        %v2810 = vunpack.c.0.s8 %v2809
        %v2811 = vlaneseq
        %v2812 = vshrl.u32 %v2811, 7
        %v2813 = vsub.s32 %v2810, %v2812
        %v2814 = vrot.slane %v2800, %v2813
        %v2815 = vcombine.low %v2759, %v2791
        %v2816 = vcombine.high %v2759, %v2791
        %v2817 = vcombine.low %v2766, %v2798
        %v2818 = vcombine.high %v2766, %v2798
        %v2819 = vcombine.low %v2775, %v2807
        %v2820 = vcombine.high %v2775, %v2807
        %v2821 = vcombine.low %v2782, %v2814
        %v2822 = vcombine.high %v2782, %v2814
        %v2823 = vcombine.low %v1738, %v1742
        %v2824 = vcombine.high %v1738, %v1742
        %v2826 = vunpack.c.l.s4 1983009808
        %v2827 = vunpack.c.0.s8 %v2826
        %v2828 = vlaneseq
        %v2829 = vshrl.u32 %v2828, 7
        %v2830 = vsub.s32 %v2827, %v2829
        %v2831 = vrot.slane %v2823, %v2830
        %v2833 = vunpack.c.l.s4 1983009808
        %v2834 = vunpack.c.0.s8 %v2833
        %v2835 = vlaneseq
        %v2836 = vshrl.u32 %v2835, 7
        %v2837 = vsub.s32 %v2834, %v2836
        %v2838 = vrot.slane %v2824, %v2837
        %v2839 = vcombine.low %v1627, %v1745
        %v2840 = vcombine.high %v1627, %v1745
        %v2842 = vunpack.c.l.s4 1983009808
        %v2843 = vunpack.c.0.s8 %v2842
        %v2844 = vlaneseq
        %v2845 = vshrl.u32 %v2844, 7
        %v2846 = vsub.s32 %v2843, %v2845
        %v2847 = vrot.slane %v2839, %v2846
        %v2849 = vunpack.c.l.s4 1983009808
        %v2850 = vunpack.c.0.s8 %v2849
        %v2851 = vlaneseq
        %v2852 = vshrl.u32 %v2851, 7
        %v2853 = vsub.s32 %v2850, %v2852
        %v2854 = vrot.slane %v2840, %v2853
        %v2855 = vcombine.low %v1628, %v1752
        %v2856 = vcombine.high %v1628, %v1752
        %v2858 = vunpack.c.l.s4 1983009808
        %v2859 = vunpack.c.0.s8 %v2858
        %v2860 = vlaneseq
        %v2861 = vshrl.u32 %v2860, 7
        %v2862 = vsub.s32 %v2859, %v2861
        %v2863 = vrot.slane %v2855, %v2862
        %v2865 = vunpack.c.l.s4 1983009808
        %v2866 = vunpack.c.0.s8 %v2865
        %v2867 = vlaneseq
        %v2868 = vshrl.u32 %v2867, 7
        %v2869 = vsub.s32 %v2866, %v2868
        %v2870 = vrot.slane %v2856, %v2869
        %v2871 = vcombine.low %v1749, %v1630
        %v2872 = vcombine.high %v1749, %v1630
        %v2874 = vunpack.c.l.s4 1983009808
        %v2875 = vunpack.c.0.s8 %v2874
        %v2876 = vlaneseq
        %v2877 = vshrl.u32 %v2876, 7
        %v2878 = vsub.s32 %v2875, %v2877
        %v2879 = vrot.slane %v2871, %v2878
        %v2881 = vunpack.c.l.s4 1983009808
        %v2882 = vunpack.c.0.s8 %v2881
        %v2883 = vlaneseq
        %v2884 = vshrl.u32 %v2883, 7
        %v2885 = vsub.s32 %v2882, %v2884
        %v2886 = vrot.slane %v2872, %v2885
        %v2887 = vcombine.low %v2831, %v2847
        %v2888 = vcombine.high %v2831, %v2847
        %v2890 = vunpack.c.l.s4 1934713408
        %v2891 = vunpack.c.0.s8 %v2890
        %v2892 = vlaneseq
        %v2893 = vshrl.u32 %v2892, 7
        %v2894 = vsub.s32 %v2891, %v2893
        %v2895 = vrot.slane %v2887, %v2894
        %v2897 = vunpack.c.l.s4 1934713408
        %v2898 = vunpack.c.0.s8 %v2897
        %v2899 = vlaneseq
        %v2900 = vshrl.u32 %v2899, 7
        %v2901 = vsub.s32 %v2898, %v2900
        %v2902 = vrot.slane %v2888, %v2901
        %v2903 = vcombine.low %v2838, %v2854
        %v2904 = vcombine.high %v2838, %v2854
        %v2906 = vunpack.c.l.s4 1934713408
        %v2907 = vunpack.c.0.s8 %v2906
        %v2908 = vlaneseq
        %v2909 = vshrl.u32 %v2908, 7
        %v2910 = vsub.s32 %v2907, %v2909
        %v2911 = vrot.slane %v2903, %v2910
        %v2913 = vunpack.c.l.s4 1934713408
        %v2914 = vunpack.c.0.s8 %v2913
        %v2915 = vlaneseq
        %v2916 = vshrl.u32 %v2915, 7
        %v2917 = vsub.s32 %v2914, %v2916
        %v2918 = vrot.slane %v2904, %v2917
        %v2919 = vcombine.low %v2863, %v2879
        %v2920 = vcombine.high %v2863, %v2879
        %v2922 = vunpack.c.l.s4 1934713408
        %v2923 = vunpack.c.0.s8 %v2922
        %v2924 = vlaneseq
        %v2925 = vshrl.u32 %v2924, 7
        %v2926 = vsub.s32 %v2923, %v2925
        %v2927 = vrot.slane %v2919, %v2926
        %v2929 = vunpack.c.l.s4 1934713408
        %v2930 = vunpack.c.0.s8 %v2929
        %v2931 = vlaneseq
        %v2932 = vshrl.u32 %v2931, 7
        %v2933 = vsub.s32 %v2930, %v2932
        %v2934 = vrot.slane %v2920, %v2933
        %v2935 = vcombine.low %v2870, %v2886
        %v2936 = vcombine.high %v2870, %v2886
        %v2938 = vunpack.c.l.s4 1934713408
        %v2939 = vunpack.c.0.s8 %v2938
        %v2940 = vlaneseq
        %v2941 = vshrl.u32 %v2940, 7
        %v2942 = vsub.s32 %v2939, %v2941
        %v2943 = vrot.slane %v2935, %v2942
        %v2945 = vunpack.c.l.s4 1934713408
        %v2946 = vunpack.c.0.s8 %v2945
        %v2947 = vlaneseq
        %v2948 = vshrl.u32 %v2947, 7
        %v2949 = vsub.s32 %v2946, %v2948
        %v2950 = vrot.slane %v2936, %v2949
        %v2951 = vcombine.low %v2895, %v2927
        %v2952 = vcombine.high %v2895, %v2927
        %v2953 = vcombine.low %v2902, %v2934
        %v2954 = vcombine.high %v2902, %v2934
        %v2955 = vcombine.low %v2911, %v2943
        %v2956 = vcombine.high %v2911, %v2943
        %v2957 = vcombine.low %v2918, %v2950
        %v2958 = vcombine.high %v2918, %v2950
        %v2959 = vcombine.low %v1756, %v1856
        %v2960 = vcombine.high %v1756, %v1856
        %v2962 = vunpack.c.l.s4 1983009808
        %v2963 = vunpack.c.0.s8 %v2962
        %v2964 = vlaneseq
        %v2965 = vshrl.u32 %v2964, 7
        %v2966 = vsub.s32 %v2963, %v2965
        %v2967 = vrot.slane %v2959, %v2966
        %v2969 = vunpack.c.l.s4 1983009808
        %v2970 = vunpack.c.0.s8 %v2969
        %v2971 = vlaneseq
        %v2972 = vshrl.u32 %v2971, 7
        %v2973 = vsub.s32 %v2970, %v2972
        %v2974 = vrot.slane %v2960, %v2973
        %v2975 = vcombine.low %v1854, %v1761
        %v2976 = vcombine.high %v1854, %v1761
        %v2978 = vunpack.c.l.s4 1983009808
        %v2979 = vunpack.c.0.s8 %v2978
        %v2980 = vlaneseq
        %v2981 = vshrl.u32 %v2980, 7
        %v2982 = vsub.s32 %v2979, %v2981
        %v2983 = vrot.slane %v2975, %v2982
        %v2985 = vunpack.c.l.s4 1983009808
        %v2986 = vunpack.c.0.s8 %v2985
        %v2987 = vlaneseq
        %v2988 = vshrl.u32 %v2987, 7
        %v2989 = vsub.s32 %v2986, %v2988
        %v2990 = vrot.slane %v2976, %v2989
        %v2991 = vcombine.low %v1858, %v1766
        %v2992 = vcombine.high %v1858, %v1766
        %v2994 = vunpack.c.l.s4 1983009808
        %v2995 = vunpack.c.0.s8 %v2994
        %v2996 = vlaneseq
        %v2997 = vshrl.u32 %v2996, 7
        %v2998 = vsub.s32 %v2995, %v2997
        %v2999 = vrot.slane %v2991, %v2998
        %v3001 = vunpack.c.l.s4 1983009808
        %v3002 = vunpack.c.0.s8 %v3001
        %v3003 = vlaneseq
        %v3004 = vshrl.u32 %v3003, 7
        %v3005 = vsub.s32 %v3002, %v3004
        %v3006 = vrot.slane %v2992, %v3005
        %v3007 = vcombine.low %v1860, %v1862
        %v3008 = vcombine.high %v1860, %v1862
        %v3010 = vunpack.c.l.s4 1983009808
        %v3011 = vunpack.c.0.s8 %v3010
        %v3012 = vlaneseq
        %v3013 = vshrl.u32 %v3012, 7
        %v3014 = vsub.s32 %v3011, %v3013
        %v3015 = vrot.slane %v3007, %v3014
        %v3017 = vunpack.c.l.s4 1983009808
        %v3018 = vunpack.c.0.s8 %v3017
        %v3019 = vlaneseq
        %v3020 = vshrl.u32 %v3019, 7
        %v3021 = vsub.s32 %v3018, %v3020
        %v3022 = vrot.slane %v3008, %v3021
        %v3023 = vcombine.low %v2967, %v2983
        %v3024 = vcombine.high %v2967, %v2983
        %v3026 = vunpack.c.l.s4 1934713408
        %v3027 = vunpack.c.0.s8 %v3026
        %v3028 = vlaneseq
        %v3029 = vshrl.u32 %v3028, 7
        %v3030 = vsub.s32 %v3027, %v3029
        %v3031 = vrot.slane %v3023, %v3030
        %v3033 = vunpack.c.l.s4 1934713408
        %v3034 = vunpack.c.0.s8 %v3033
        %v3035 = vlaneseq
        %v3036 = vshrl.u32 %v3035, 7
        %v3037 = vsub.s32 %v3034, %v3036
        %v3038 = vrot.slane %v3024, %v3037
        %v3039 = vcombine.low %v2974, %v2990
        %v3040 = vcombine.high %v2974, %v2990
        %v3042 = vunpack.c.l.s4 1934713408
        %v3043 = vunpack.c.0.s8 %v3042
        %v3044 = vlaneseq
        %v3045 = vshrl.u32 %v3044, 7
        %v3046 = vsub.s32 %v3043, %v3045
        %v3047 = vrot.slane %v3039, %v3046
        %v3049 = vunpack.c.l.s4 1934713408
        %v3050 = vunpack.c.0.s8 %v3049
        %v3051 = vlaneseq
        %v3052 = vshrl.u32 %v3051, 7
        %v3053 = vsub.s32 %v3050, %v3052
        %v3054 = vrot.slane %v3040, %v3053
        %v3055 = vcombine.low %v2999, %v3015
        %v3056 = vcombine.high %v2999, %v3015
        %v3058 = vunpack.c.l.s4 1934713408
        %v3059 = vunpack.c.0.s8 %v3058
        %v3060 = vlaneseq
        %v3061 = vshrl.u32 %v3060, 7
        %v3062 = vsub.s32 %v3059, %v3061
        %v3063 = vrot.slane %v3055, %v3062
        %v3065 = vunpack.c.l.s4 1934713408
        %v3066 = vunpack.c.0.s8 %v3065
        %v3067 = vlaneseq
        %v3068 = vshrl.u32 %v3067, 7
        %v3069 = vsub.s32 %v3066, %v3068
        %v3070 = vrot.slane %v3056, %v3069
        %v3071 = vcombine.low %v3006, %v3022
        %v3072 = vcombine.high %v3006, %v3022
        %v3074 = vunpack.c.l.s4 1934713408
        %v3075 = vunpack.c.0.s8 %v3074
        %v3076 = vlaneseq
        %v3077 = vshrl.u32 %v3076, 7
        %v3078 = vsub.s32 %v3075, %v3077
        %v3079 = vrot.slane %v3071, %v3078
        %v3081 = vunpack.c.l.s4 1934713408
        %v3082 = vunpack.c.0.s8 %v3081
        %v3083 = vlaneseq
        %v3084 = vshrl.u32 %v3083, 7
        %v3085 = vsub.s32 %v3082, %v3084
        %v3086 = vrot.slane %v3072, %v3085
        %v3087 = vcombine.low %v3031, %v3063
        %v3088 = vcombine.high %v3031, %v3063
        %v3089 = vcombine.low %v3038, %v3070
        %v3090 = vcombine.high %v3038, %v3070
        %v3091 = vcombine.low %v3047, %v3079
        %v3092 = vcombine.high %v3047, %v3079
        %v3093 = vcombine.low %v3054, %v3086
        %v3094 = vcombine.high %v3054, %v3086
        %3104 = vrot.lane.b32.xlu0 %v2000, 16
        %v3105 = vpop.permute.xlu0 %3104
        %3106 = vrot.lane.b32.xlu0 %v2136, 16
        %v3107 = vpop.permute.xlu0 %3106
        %3108 = vrot.lane.b32.xlu0 %v2272, 16
        %v3109 = vpop.permute.xlu0 %3108
        %3110 = vrot.lane.b32.xlu0 %v2408, 16
        %v3111 = vpop.permute.xlu0 %3110
        %3112 = vrot.lane.b32.xlu0 %v2544, 16
        %v3113 = vpop.permute.xlu0 %3112
        %3114 = vrot.lane.b32.xlu0 %v2680, 16
        %v3115 = vpop.permute.xlu0 %3114
        %3116 = vrot.lane.b32.xlu0 %v2816, 16
        %v3117 = vpop.permute.xlu0 %3116
        %3118 = vrot.lane.b32.xlu0 %v2952, 16
        %v3119 = vpop.permute.xlu0 %3118
        %3120 = vrot.lane.b32.xlu0 %v3088, 16
        %v3121 = vpop.permute.xlu0 %3120
        %3140 = vrot.lane.b32.xlu0 %v2001, 32
        %v3141 = vpop.permute.xlu0 %3140
        %3142 = vrot.lane.b32.xlu0 %v2137, 32
        %v3143 = vpop.permute.xlu0 %3142
        %3144 = vrot.lane.b32.xlu0 %v2273, 32
        %v3145 = vpop.permute.xlu0 %3144
        %3146 = vrot.lane.b32.xlu0 %v2409, 32
        %v3147 = vpop.permute.xlu0 %3146
        %3148 = vrot.lane.b32.xlu0 %v2545, 32
        %v3149 = vpop.permute.xlu0 %3148
        %3150 = vrot.lane.b32.xlu0 %v2681, 32
        %v3151 = vpop.permute.xlu0 %3150
        %3152 = vrot.lane.b32.xlu0 %v2817, 32
        %v3153 = vpop.permute.xlu0 %3152
        %3154 = vrot.lane.b32.xlu0 %v2953, 32
        %v3155 = vpop.permute.xlu0 %3154
        %3156 = vrot.lane.b32.xlu0 %v3089, 32
        %v3157 = vpop.permute.xlu0 %3156
        %3176 = vrot.lane.b32.xlu0 %v2002, 48
        %v3177 = vpop.permute.xlu0 %3176
        %3178 = vrot.lane.b32.xlu0 %v2138, 48
        %v3179 = vpop.permute.xlu0 %3178
        %3180 = vrot.lane.b32.xlu0 %v2274, 48
        %v3181 = vpop.permute.xlu0 %3180
        %3182 = vrot.lane.b32.xlu0 %v2410, 48
        %v3183 = vpop.permute.xlu0 %3182
        %3184 = vrot.lane.b32.xlu0 %v2546, 48
        %v3185 = vpop.permute.xlu0 %3184
        %3186 = vrot.lane.b32.xlu0 %v2682, 48
        %v3187 = vpop.permute.xlu0 %3186
        %3188 = vrot.lane.b32.xlu0 %v2818, 48
        %v3189 = vpop.permute.xlu0 %3188
        %3190 = vrot.lane.b32.xlu0 %v2954, 48
        %v3191 = vpop.permute.xlu0 %3190
        %3192 = vrot.lane.b32.xlu0 %v3090, 48
        %v3193 = vpop.permute.xlu0 %3192
        %3212 = vrot.lane.b32.xlu0 %v2003, 64
        %v3213 = vpop.permute.xlu0 %3212
        %3214 = vrot.lane.b32.xlu0 %v2139, 64
        %v3215 = vpop.permute.xlu0 %3214
        %3216 = vrot.lane.b32.xlu0 %v2275, 64
        %v3217 = vpop.permute.xlu0 %3216
        %3218 = vrot.lane.b32.xlu0 %v2411, 64
        %v3219 = vpop.permute.xlu0 %3218
        %3220 = vrot.lane.b32.xlu0 %v2547, 64
        %v3221 = vpop.permute.xlu0 %3220
        %3222 = vrot.lane.b32.xlu0 %v2683, 64
        %v3223 = vpop.permute.xlu0 %3222
        %3224 = vrot.lane.b32.xlu0 %v2819, 64
        %v3225 = vpop.permute.xlu0 %3224
        %3226 = vrot.lane.b32.xlu0 %v2955, 64
        %v3227 = vpop.permute.xlu0 %3226
        %3228 = vrot.lane.b32.xlu0 %v3091, 64
        %v3229 = vpop.permute.xlu0 %3228
        %3248 = vrot.lane.b32.xlu0 %v2004, 80
        %v3249 = vpop.permute.xlu0 %3248
        %3250 = vrot.lane.b32.xlu0 %v2140, 80
        %v3251 = vpop.permute.xlu0 %3250
        %3252 = vrot.lane.b32.xlu0 %v2276, 80
        %v3253 = vpop.permute.xlu0 %3252
        %3254 = vrot.lane.b32.xlu0 %v2412, 80
        %v3255 = vpop.permute.xlu0 %3254
        %3256 = vrot.lane.b32.xlu0 %v2548, 80
        %v3257 = vpop.permute.xlu0 %3256
        %3258 = vrot.lane.b32.xlu0 %v2684, 80
        %v3259 = vpop.permute.xlu0 %3258
        %3260 = vrot.lane.b32.xlu0 %v2820, 80
        %v3261 = vpop.permute.xlu0 %3260
        %3262 = vrot.lane.b32.xlu0 %v2956, 80
        %v3263 = vpop.permute.xlu0 %3262
        %3264 = vrot.lane.b32.xlu0 %v3092, 80
        %v3265 = vpop.permute.xlu0 %3264
        %3284 = vrot.lane.b32.xlu0 %v2005, 96
        %v3285 = vpop.permute.xlu0 %3284
        %3286 = vrot.lane.b32.xlu0 %v2141, 96
        %v3287 = vpop.permute.xlu0 %3286
        %3288 = vrot.lane.b32.xlu0 %v2277, 96
        %v3289 = vpop.permute.xlu0 %3288
        %3290 = vrot.lane.b32.xlu0 %v2413, 96
        %v3291 = vpop.permute.xlu0 %3290
        %3292 = vrot.lane.b32.xlu0 %v2549, 96
        %v3293 = vpop.permute.xlu0 %3292
        %3294 = vrot.lane.b32.xlu0 %v2685, 96
        %v3295 = vpop.permute.xlu0 %3294
        %3296 = vrot.lane.b32.xlu0 %v2821, 96
        %v3297 = vpop.permute.xlu0 %3296
        %3298 = vrot.lane.b32.xlu0 %v2957, 96
        %v3299 = vpop.permute.xlu0 %3298
        %3300 = vrot.lane.b32.xlu0 %v3093, 96
        %v3301 = vpop.permute.xlu0 %3300
        %3320 = vrot.lane.b32.xlu0 %v2006, 112
        %v3321 = vpop.permute.xlu0 %3320
        %3322 = vrot.lane.b32.xlu0 %v2142, 112
        %v3323 = vpop.permute.xlu0 %3322
        %3324 = vrot.lane.b32.xlu0 %v2278, 112
        %v3325 = vpop.permute.xlu0 %3324
        %3326 = vrot.lane.b32.xlu0 %v2414, 112
        %v3327 = vpop.permute.xlu0 %3326
        %3328 = vrot.lane.b32.xlu0 %v2550, 112
        %v3329 = vpop.permute.xlu0 %3328
        %3330 = vrot.lane.b32.xlu0 %v2686, 112
        %v3331 = vpop.permute.xlu0 %3330
        %3332 = vrot.lane.b32.xlu0 %v2822, 112
        %v3333 = vpop.permute.xlu0 %3332
        %3334 = vrot.lane.b32.xlu0 %v2958, 112
        %v3335 = vpop.permute.xlu0 %3334
        %3336 = vrot.lane.b32.xlu0 %v3094, 112
        %v3337 = vpop.permute.xlu0 %3336
        %v3347 = vsel %vm1249, %v1999, %v3105
        %v3348 = vsel %vm1249, %v2135, %v3107
        %v3349 = vsel %vm1249, %v2271, %v3109
        %v3350 = vsel %vm1249, %v2407, %v3111
        %v3351 = vsel %vm1249, %v2543, %v3113
        %v3352 = vsel %vm1249, %v2679, %v3115
        %v3353 = vsel %vm1249, %v2815, %v3117
        %v3354 = vsel %vm1249, %v2951, %v3119
        %v3355 = vsel %vm1249, %v3087, %v3121
        %vm3356 = vcmask 261120
        %v3357 = vsel %vm3356, %v3347, %v3141
        %v3358 = vsel %vm3356, %v3348, %v3143
        %v3359 = vsel %vm3356, %v3349, %v3145
        %v3360 = vsel %vm3356, %v3350, %v3147
        %v3361 = vsel %vm3356, %v3351, %v3149
        %v3362 = vsel %vm3356, %v3352, %v3151
        %v3363 = vsel %vm3356, %v3353, %v3153
        %v3364 = vsel %vm3356, %v3354, %v3155
        %v3365 = vsel %vm3356, %v3355, %v3157
        %vm3366 = vcmask 392192
        %v3367 = vsel %vm3366, %v3357, %v3177
        %v3368 = vsel %vm3366, %v3358, %v3179
        %v3369 = vsel %vm3366, %v3359, %v3181
        %v3370 = vsel %vm3366, %v3360, %v3183
        %v3371 = vsel %vm3366, %v3361, %v3185
        %v3372 = vsel %vm3366, %v3362, %v3187
        %v3373 = vsel %vm3366, %v3363, %v3189
        %v3374 = vsel %vm3366, %v3364, %v3191
        %v3375 = vsel %vm3366, %v3365, %v3193
        %vm3376 = vcmask 523264
        %v3377 = vsel %vm3376, %v3367, %v3213
        %v3378 = vsel %vm3376, %v3368, %v3215
        %v3379 = vsel %vm3376, %v3369, %v3217
        %v3380 = vsel %vm3376, %v3370, %v3219
        %v3381 = vsel %vm3376, %v3371, %v3221
        %v3382 = vsel %vm3376, %v3372, %v3223
        %v3383 = vsel %vm3376, %v3373, %v3225
        %v3384 = vsel %vm3376, %v3374, %v3227
        %v3385 = vsel %vm3376, %v3375, %v3229
        %vm3386 = vcmask 654336
        %v3387 = vsel %vm3386, %v3377, %v3249
        %v3388 = vsel %vm3386, %v3378, %v3251
        %v3389 = vsel %vm3386, %v3379, %v3253
        %v3390 = vsel %vm3386, %v3380, %v3255
        %v3391 = vsel %vm3386, %v3381, %v3257
        %v3392 = vsel %vm3386, %v3382, %v3259
        %v3393 = vsel %vm3386, %v3383, %v3261
        %v3394 = vsel %vm3386, %v3384, %v3263
        %v3395 = vsel %vm3386, %v3385, %v3265
        %vm3396 = vcmask 785408
        %v3397 = vsel %vm3396, %v3387, %v3285
        %v3398 = vsel %vm3396, %v3388, %v3287
        %v3399 = vsel %vm3396, %v3389, %v3289
        %v3400 = vsel %vm3396, %v3390, %v3291
        %v3401 = vsel %vm3396, %v3391, %v3293
        %v3402 = vsel %vm3396, %v3392, %v3295
        %v3403 = vsel %vm3396, %v3393, %v3297
        %v3404 = vsel %vm3396, %v3394, %v3299
        %v3405 = vsel %vm3396, %v3395, %v3301
        %vm3406 = vcmask 916480
        %v3407 = vsel %vm3406, %v3397, %v3321
        %v3408 = vsel %vm3406, %v3398, %v3323
        %v3409 = vsel %vm3406, %v3399, %v3325
        %v3410 = vsel %vm3406, %v3400, %v3327
        %v3411 = vsel %vm3406, %v3401, %v3329
        %v3412 = vsel %vm3406, %v3402, %v3331
        %v3413 = vsel %vm3406, %v3403, %v3333
        %v3414 = vsel %vm3406, %v3404, %v3335
        %v3415 = vsel %vm3406, %v3405, %v3337
        %v3416 = vld [vmem:[%s3] sm:$0x1]
        %v3417 = vld [vmem:[#allocation3] sm:$0x1]
        %3419 = vset.pattern.permute.xlu0 0
        %3420 = vperm.xlu0 %3419, %v3417
        %v3421 = vpop.permute.xlu0 %3420
        %v3423 = vlaneseq
        %v3424 = vshrl.u32 %v3423, 7
        %v3425 = vsub.s32 0, %v3424
        %v3426 = vrot.slane %v3421, %v3425
        %v3428 = vsel %vm1229, %v3416, 0
        %3430 = vmatprep.subr.mxu0 0.0
        %3431 = vmatpush1.msra.mxu0 %v3407
        %3432 = vmatprep.subr.mxu0 0.0
        %3433 = vmatpush1.msra.mxu0 %v3408
        %3434 = vmatprep.subr.mxu0 0.0
        %3435 = vmatpush1.msra.mxu0 %v3409
        %3436 = vmatprep.subr.mxu0 0.0
        %3437 = vmatpush1.msra.mxu0 %v3410
        %3438 = vmatprep.subr.mxu0 0.0
        %3439 = vmatpush1.msra.mxu0 %v3411
        %3440 = vmatprep.subr.mxu0 0.0
        %3441 = vmatpush1.msra.mxu0 %v3412
        %3442 = vmatprep.subr.mxu0 0.0
        %3443 = vmatpush1.msra.mxu0 %v3413
        %3444 = vmatprep.subr.mxu0 0.0
        %3445 = vmatpush1.msra.mxu0 %v3414
        %3446 = vmatprep.subr.mxu0 0.0
        %3447 = vmatpush1.msra.mxu0 %v3415
        %3448 = vmatprep.subr.mxu0 0.0
        %3449 = vmatpush1.msra.mxu0 0.0
        %3450 = vmatprep.subr.mxu0 0.0
        %3451 = vmatpush1.msra.mxu0 0.0
        %3452 = vmatprep.subr.mxu0 0.0
        %3453 = vmatpush1.msra.mxu0 0.0
        %3454 = vmatprep.subr.mxu0 0.0
        %3455 = vmatpush1.msra.mxu0 0.0
        %3456 = vmatprep.subr.mxu0 0.0
        %3457 = vmatpush1.msra.mxu0 0.0
        %3458 = vmatprep.subr.mxu0 0.0
        %3459 = vmatpush1.msra.mxu0 0.0
        %3460 = vmatprep.subr.mxu0 0.0
        %3461 = vmatpush1.msra.mxu0 0.0
        %3462 = vmatprep.subr.mxu0 0.0
        %3463 = vmatpush1.msra.mxu0 0.0
        %3464 = vmatprep.subr.mxu0 0.0
        %3465 = vmatpush1.msra.mxu0 0.0
        %3466 = vmatprep.subr.mxu0 0.0
        %3467 = vmatpush1.msra.mxu0 0.0
        %3468 = vmatprep.subr.mxu0 0.0
        %3469 = vmatpush1.msra.mxu0 0.0
        %3470 = vmatprep.subr.mxu0 0.0
        %3471 = vmatpush1.msra.mxu0 0.0
        %3472 = vmatprep.subr.mxu0 0.0
        %3473 = vmatpush1.msra.mxu0 0.0
        %3474 = vmatprep.subr.mxu0 0.0
        %3475 = vmatpush1.msra.mxu0 0.0
        %3476 = vmatprep.subr.mxu0 0.0
        %3477 = vmatpush1.msra.mxu0 0.0
        %3478 = vmatprep.subr.mxu0 0.0
        %3479 = vmatpush1.msra.mxu0 0.0
        %3480 = vmatprep.subr.mxu0 0.0
        %3481 = vmatpush1.msra.mxu0 0.0
        %3482 = vmatprep.subr.mxu0 0.0
        %3483 = vmatpush1.msra.mxu0 0.0
        %3484 = vmatprep.subr.mxu0 0.0
        %3485 = vmatpush1.msra.mxu0 0.0
        %3486 = vmatprep.subr.mxu0 0.0
        %3487 = vmatpush1.msra.mxu0 0.0
        %3488 = vmatprep.subr.mxu0 0.0
        %3489 = vmatpush1.msra.mxu0 0.0
        %3490 = vmatprep.subr.mxu0 0.0
        %3491 = vmatpush1.msra.mxu0 0.0
        %3492 = vmatprep.subr.mxu0 0.0
        %3493 = vmatpush1.msra.mxu0 0.0
        %3494 = vmatprep.mubr.f32.mxu0 0.0
        %3495 = vmatmul.mubr.f32.gmra.mrb[0].mxu0 %v3428
        %v3496 = vpop.f32.mrb[0].mxu0
        %v3497 = vadd.f32 %v3426, %v3496
        %v3498 = vpop.f32.mrb[0].mxu0
        %3499 = vdwg.mxu0
        %v3500 = vsub.f32 0.0, %v3497
        %v3501 = vmul.f32 %v3500, 1.442695
        %v3502 = vpow.pop %v3501
        %v3503 = vadd.f32 %v3502, 1.0
        %v3504 = vrcp.pop %v3503
        %3505 = vst [vmem:[%s242] sm:$0x1] %v3504
        %s3506 = sand.u32 %s155, 1
        %s3507 = scalar_lea.sflag [#allocation5], %s3506
        %s3508 = sand.u32 %s155, 1
        %s3509 = scalar_lea.vmem [#allocation4], %s3508
        // Predicated region
        $region41: #{tpu_custom_call.1} parent=39 // pred_check
          %p3510 = pneg %p165
        $region42: #{tpu_custom_call.1} parent=39 // pred_check_branch
          %3512 = sbr.rel (%p3510) target = $region44
        $region43: #{tpu_custom_call.1} parent=39 // pred_region
          %s3514 = ssub.s32 16, 16
          %3515 = vsyncadd %s3507, %s3514
          %s3516 = smul.addr %s25, 2
          %s3517 = sadd.s32 %s26, %s3516
          %s3518 = smul.addr %s3517, 16
          %s3519 = scalar_lea.hbm %s5, %s3518
          %s3521 = sshll.u32 %s3509, 4
          %s3522 = int_to_ptr.vmem [resolvable:$true] %s3521
          %3524 = dma.vmem_to_hbm [thread:$0]  %s3522, 16, %s3519, %s3507
        $region44: #{tpu_custom_call.1} parent=39 // pred_fallthru
          _
      $region40: #{tpu_custom_call.1} parent=5 // pred_fallthru
        _
      %p3525 = scmp.le.s32.totalorder 2, %s16
      // Predicated region
      $region45: #{tpu_custom_call.1} parent=5 // pred_check
        %p3526 = pneg %p3525
      $region46: #{tpu_custom_call.1} parent=5 // pred_check_branch
        %3528 = sbr.rel (%p3526) target = $region48
      $region47: #{tpu_custom_call.1} parent=5 // pred_region
        %s3529 = ssub.s32 %s16, 2
        // Predicated region
        $region49: #{tpu_custom_call.1} parent=47 // pred_check
          %p3530 = pneg %p171
        $region50: #{tpu_custom_call.1} parent=47 // pred_check_branch
          %3532 = sbr.rel (%p3530) target = $region52
        $region51: #{tpu_custom_call.1} parent=47 // pred_region
          %s3533 = sand.u32 %s156, 1
          %s3534 = scalar_lea.sflag [#allocation5], %s3533
          %s3535 = sand.u32 %s156, 1
          %s3536 = scalar_lea.vmem [#allocation4], %s3535
          %3537 = dma.done %s3534, 16
        $region52: #{tpu_custom_call.1} parent=47 // pred_fallthru
          _
      $region48: #{tpu_custom_call.1} parent=5 // pred_fallthru
        _
    $region6: #{tpu_custom_call.1} parent=1 // loop_footer
      %s20 = sadd.s32 1, %s16
    $region7: #{tpu_custom_call.1} parent=1 // loop_footer_branch
      %15 = sbr.rel target = $region3
    $region8: #{tpu_custom_call.1} parent=1 // loop_exit
      _
    %3538 = vsyncpa [#allocation5], 1
    %s3539 = scalar_lea.sflag [#allocation5], 1
    %3540 = vsyncpa %s3539, 1

</llo_original>
